<compile_context>
chip_gen: v7x
topology: tpu7x:2x2x1
jax: 0.10.0
libtpu: 0.0.40
codegen_flags: <defaults>
</compile_context>

<pallas_src>
import functools

import jax
import jax.numpy as jnp
from jax import lax
from jax.experimental import pallas as pl
from jax.experimental.pallas import tpu as pltpu

# ---------------- small shapes consistent with the module's forward ----------
B = 2                      # batch
C_IN = 1                   # single-channel 3D medical volume
D_IN, H_IN, W_IN = 8, 16, 16
C_CONV = 8                 # conv stem channels
FEAT = 16                  # per-image encoder feature dim
INPUT_SIZE = 2 * FEAT      # GRU input_size (= concat of the two encoder outputs)
HIDDEN = 32                # GRU hidden_size
OUTPUT = 4                 # fc output_size
SEQ_LEN = 8
K, STRIDE, PAD = 3, 2, 1   # conv stem geometry
BN_EPS = 1e-5

GW = 128                   # padded per-gate lane width (gate data in lanes [0:HIDDEN))
GATES_W = 3 * GW           # 384

P_RAW = C_IN * K ** 3      # 27 (im2col patch depth)
P_PAD = 32                 # patch depth padded (row 27 = ones-row for conv bias)

D_OUT = (D_IN + 2 * PAD - K) // STRIDE + 1
H_OUT = (H_IN + 2 * PAD - K) // STRIDE + 1
W_OUT = (W_IN + 2 * PAD - K) // STRIDE + 1
S = D_OUT * H_OUT * W_OUT  # spatial positions per image (256)
NCOL = 2 * B * S           # conv-stem columns (1024)


# ------------------------------ glue: im2col ---------------------------------
def im2col_3d_T(x, k, stride, pad):
    """x: (N, C, D, H, W) -> (C*k^3, N*Do*Ho*Wo)  (layout the kernel consumes)."""
    n, c, d, h, w = x.shape
    xp = jnp.pad(x, ((0, 0), (0, 0), (pad, pad), (pad, pad), (pad, pad)))
    do = (d + 2 * pad - k) // stride + 1
    ho = (h + 2 * pad - k) // stride + 1
    wo = (w + 2 * pad - k) // stride + 1
    views = []
    for dz in range(k):
        for dy in range(k):
            for dx in range(k):
                views.append(
                    xp[:, :,
                       dz:dz + do * stride:stride,
                       dy:dy + ho * stride:stride,
                       dx:dx + wo * stride:stride])            # (N, C, Do, Ho, Wo)
    pat = jnp.stack(views, axis=2)                             # (N, C, k^3, Do, Ho, Wo)
    pat = jnp.transpose(pat, (1, 2, 0, 3, 4, 5))               # (C, k^3, N, Do, Ho, Wo)
    return pat.reshape(c * k * k * k, n * do * ho * wo)


# --------------------------- fused Pallas kernel ------------------------------
def fused_forward_kernel(patches_ref, wc_ref, pool_ref, a23_ref, w_ref, bias_ref,
                         out_ref):
    # ---- encoder stand-in: conv stem (bias via ones-row) + ReLU, lane-dense ----
    yT = jnp.maximum(
        jnp.dot(wc_ref[...], patches_ref[...],
                preferred_element_type=jnp.float32), 0.0)        # (C_CONV, NCOL)

    # global average pool on the MXU (NT dots: contract the column axis)
    nt = (((1,), (1,)), ((), ()))
    z2 = lax.dot_general(pool_ref[0], yT, nt,
                         preferred_element_type=jnp.float32)     # (B, C_CONV)  image2
    z3 = lax.dot_general(pool_ref[1], yT, nt,
                         preferred_element_type=jnp.float32)     # (B, C_CONV)  image3

    a23 = a23_ref[...]
    biases = bias_ref[...]
    b_ih0 = biases[0:1, :]
    b_hh0 = biases[1:2, :]
    b_ih1 = biases[2:3, :]
    b_hh1 = biases[3:4, :]
    b_fc = biases[4:5, :]

    # time-invariant layer-0 input-gate preactivations
    # (1x1 projection + cat([ddf2, ddf3], 1) + W_ih_l0 folded into A2/A3 at init)
    gi0 = (b_ih0
           + jnp.dot(z2, a23[:C_CONV], preferred_element_type=jnp.float32)
           + jnp.dot(z3, a23[C_CONV:], preferred_element_type=jnp.float32))  # (B, 3GW)
    gi0_rz = gi0[:, :2 * GW]
    gi0_n = gi0[:, 2 * GW:]

    whh0 = w_ref[0]
    wih1 = w_ref[1]
    whh1 = w_ref[2]
    wfc = w_ref[3]

    # ---- 2-layer GRU, unrolled; gates lane-aligned at 128-lane slots ----------
    def step(_, carry):
        h0, h1 = carry
        # layer 0 (PyTorch gate order r, z, n; b_hn inside the r-scaled term)
        gh0 = jnp.dot(h0, whh0, preferred_element_type=jnp.float32) + b_hh0
        rz0 = jax.nn.sigmoid(gi0_rz + gh0[:, :2 * GW])
        n0 = jnp.tanh(gi0_n + rz0[:, :GW] * gh0[:, 2 * GW:])
        z0 = rz0[:, GW:]
        h0n = (1.0 - z0) * n0 + z0 * h0
        # layer 1 (inter-layer dropout disabled: eval semantics)
        gi1 = jnp.dot(h0n, wih1, preferred_element_type=jnp.float32) + b_ih1
        gh1 = jnp.dot(h1, whh1, preferred_element_type=jnp.float32) + b_hh1
        rz1 = jax.nn.sigmoid(gi1[:, :2 * GW] + gh1[:, :2 * GW])
        n1 = jnp.tanh(gi1[:, 2 * GW:] + rz1[:, :GW] * gh1[:, 2 * GW:])
        z1 = rz1[:, GW:]
        h1n = (1.0 - z1) * n1 + z1 * h1
        return h0n, h1n

    h_init = (jnp.zeros((B, GW), jnp.float32), jnp.zeros((B, GW), jnp.float32))
    _, h1 = lax.fori_loop(0, SEQ_LEN, step, h_init, unroll=True)

    # ---- BatchNorm1d (eval) folded into fc at init; lane-dense padded store ----
    out_ref[...] = jnp.dot(h1, wfc, preferred_element_type=jnp.float32) + b_fc


# ------------------------------ wrapper ---------------------------------------
def _full_spec(shape):
    zeros = (0,) * len(shape)
    return pl.BlockSpec(shape, lambda i: zeros)


def forward(image2, image3, params):
    # one im2col over both images (stacked on batch), built directly in the
    # (P, N*S) layout the kernel consumes; row 27 = ones (conv-bias column).
    imgs = jnp.concatenate([image2, image3], axis=0)            # (2B, C, D, H, W)
    pcols = im2col_3d_T(imgs, K, STRIDE, PAD)                   # (P_RAW, NCOL)
    patchesT = jnp.concatenate(
        [pcols,
         jnp.ones((1, NCOL), jnp.float32),
         jnp.zeros((P_PAD - P_RAW - 1, NCOL), jnp.float32)], axis=0)  # (P_PAD, NCOL)

    args = (patchesT, params["wc_T"], params["pool23"], params["a23"],
            params["w_stack"], params["bias_slab"])

    out_pad = pl.pallas_call(
        fused_forward_kernel,
        out_shape=jax.ShapeDtypeStruct((B, GATES_W), jnp.float32),
        grid=(1,),
        in_specs=[_full_spec(a.shape) for a in args],
        out_specs=_full_spec((B, GATES_W)),
        compiler_params=pltpu.CompilerParams(dimension_semantics=("arbitrary",)),
    )(*args)
    return out_pad[:, :OUTPUT]                                  # (B, OUTPUT)


# ----------------------------- parameters --------------------------------------
def _pad_gates_lane(w):
    """(in_dim, 3H) -> (in_dim, 3*GW), each gate in lanes [g*GW, g*GW+H)."""
    out = jnp.zeros((w.shape[0], GATES_W), jnp.float32)
    for g in range(3):
        out = out.at[:, g * GW:g * GW + HIDDEN].set(w[:, g * HIDDEN:(g + 1) * HIDDEN])
    return out


def _pad_gates_bias(b):
    out = jnp.zeros((GATES_W,), jnp.float32)
    for g in range(3):
        out = out.at[g * GW:g * GW + HIDDEN].set(b[g * HIDDEN:(g + 1) * HIDDEN])
    return out


def _pad_rows(w):
    return jnp.zeros((GW, w.shape[1]), jnp.float32).at[:w.shape[0]].set(w)


def init_params(key):
    keys = jax.random.split(key, 20)

    def u(k, shape, bound):
        return jax.random.uniform(k, shape, jnp.float32, -bound, bound)

    # conv stem + projection (stand-in for resnet50 reduce_channels/conv_seg head)
    kc = 1.0 / float(C_IN * K ** 3) ** 0.5
    conv_w = u(keys[0], (C_CONV, C_IN, K, K, K), kc)
    conv_b = u(keys[1], (C_CONV,), kc)
    kp = 1.0 / float(C_CONV) ** 0.5
    proj_w = u(keys[2], (FEAT, C_CONV), kp)                   # (out, in) like nn.Linear
    proj_b = u(keys[3], (FEAT,), kp)

    # GRU(input_size, hidden_size, num_layers=2)  -- PyTorch-style uniform init
    kg = 1.0 / float(HIDDEN) ** 0.5
    wih_l0 = u(keys[4], (3 * HIDDEN, INPUT_SIZE), kg)
    whh_l0 = u(keys[5], (3 * HIDDEN, HIDDEN), kg)
    bih_l0 = u(keys[6], (3 * HIDDEN,), kg)
    bhh_l0 = u(keys[7], (3 * HIDDEN,), kg)
    wih_l1 = u(keys[8], (3 * HIDDEN, HIDDEN), kg)
    whh_l1 = u(keys[9], (3 * HIDDEN, HIDDEN), kg)
    bih_l1 = u(keys[10], (3 * HIDDEN,), kg)
    bhh_l1 = u(keys[11], (3 * HIDDEN,), kg)

    # BatchNorm1d(hidden_size) running stats / affine
    bn_gamma = 1.0 + 0.1 * jax.random.normal(keys[12], (HIDDEN,), jnp.float32)
    bn_beta = 0.1 * jax.random.normal(keys[13], (HIDDEN,), jnp.float32)
    bn_mean = 0.1 * jax.random.normal(keys[14], (HIDDEN,), jnp.float32)
    bn_var = jax.random.uniform(keys[15], (HIDDEN,), jnp.float32, 0.5, 1.5)

    # fc = Linear(hidden_size, output_size)
    kf = 1.0 / float(HIDDEN) ** 0.5
    fc_w = u(keys[16], (OUTPUT, HIDDEN), kf)
    fc_b = u(keys[17], (OUTPUT,), kf)

    # ---------------- kernel-friendly packing ----------------
    # conv weight (C_CONV, P_PAD); column 27 carries the conv bias (ones-row trick)
    wc_T = jnp.zeros((C_CONV, P_PAD), jnp.float32)
    wc_T = wc_T.at[:, :P_RAW].set(conv_w.reshape(C_CONV, P_RAW))
    wc_T = wc_T.at[:, P_RAW].set(conv_b)

    # per-image averaging matrices (MXU global-avg-pool): pool23[0]=image2, [1]=image3
    pool23 = jnp.zeros((2, B, NCOL), jnp.float32)
    for b in range(B):
        pool23 = pool23.at[0, b, b * S:(b + 1) * S].set(1.0 / S)
        pool23 = pool23.at[1, b, (B + b) * S:(B + b + 1) * S].set(1.0 / S)

    # fold 1x1 projection + concat + layer-0 input weights into A2/A3
    proj_w_io = proj_w.T                                          # (C_CONV, FEAT)
    wih0_lane = _pad_gates_lane(wih_l0.T)                         # (INPUT_SIZE, 3GW)
    A2 = proj_w_io @ wih0_lane[:FEAT]                             # (C_CONV, 3GW)
    A3 = proj_w_io @ wih0_lane[FEAT:]                             # (C_CONV, 3GW)
    a23 = jnp.concatenate([A2, A3], axis=0)                       # (2*C_CONV, 3GW)
    bih0_eff = (_pad_gates_bias(bih_l0)
                + proj_b @ (wih0_lane[:FEAT] + wih0_lane[FEAT:]))  # (3GW,)

    # lane-aligned recurrent / layer-1 input weights
    whh0_pad = _pad_rows(_pad_gates_lane(whh_l0.T))               # (GW, 3GW)
    wih1_pad = _pad_rows(_pad_gates_lane(wih_l1.T))               # (GW, 3GW)
    whh1_pad = _pad_rows(_pad_gates_lane(whh_l1.T))               # (GW, 3GW)

    # fold eval-mode BatchNorm1d into fc
    s = bn_gamma / jnp.sqrt(bn_var + BN_EPS)                      # (HIDDEN,)
    wfc_rows = fc_w.T * s[:, None]                                # (HIDDEN, OUTPUT)
    wfc_pad = jnp.zeros((GW, GATES_W), jnp.float32).at[:HIDDEN, :OUTPUT].set(wfc_rows)
    bfc_fold = fc_b + (bn_beta - bn_mean * s) @ fc_w.T            # (OUTPUT,)

    w_stack = jnp.stack([whh0_pad, wih1_pad, whh1_pad, wfc_pad], axis=0)  # (4, GW, 3GW)

    # one (8, 3GW) bias slab: rows = [bih0_eff, bhh0, bih1, bhh1, bfc, 0, 0, 0]
    bias_slab = jnp.zeros((8, GATES_W), jnp.float32)
    bias_slab = bias_slab.at[0].set(bih0_eff)
    bias_slab = bias_slab.at[1].set(_pad_gates_bias(bhh_l0))
    bias_slab = bias_slab.at[2].set(_pad_gates_bias(bih_l1))
    bias_slab = bias_slab.at[3].set(_pad_gates_bias(bhh_l1))
    bias_slab = bias_slab.at[4, :OUTPUT].set(bfc_fold)

    return {
        "wc_T": wc_T,
        "pool23": pool23,
        "a23": a23,
        "w_stack": w_stack,
        "bias_slab": bias_slab,
    }


# -------------------------------- main -----------------------------------------
if __name__ == "__main__":
    root = jax.random.PRNGKey(0)
    kparams, k2, k3 = jax.random.split(root, 3)
    params = init_params(kparams)

    image2 = jax.random.normal(k2, (B, C_IN, D_IN, H_IN, W_IN), jnp.float32)
    image3 = jax.random.normal(k3, (B, C_IN, D_IN, H_IN, W_IN), jnp.float32)

    fwd = jax.jit(functools.partial(forward, params=params))
    out = fwd(image2, image3)
    out = jax.block_until_ready(out)
    assert out.shape == (B, OUTPUT) and out.dtype == jnp.float32
    assert bool(jnp.all(jnp.isfinite(out)))
    print("KERNEL_OK")
</pallas_src>

<mosaic_0001>
module attributes {stable_mosaic.version = 11 : i64} {
  func.func @fused_forward_kernel(%arg0: i32, %arg1: memref<32x1024xf32, #tpu.memory_space<vmem>>, %arg2: memref<8x32xf32, #tpu.memory_space<vmem>>, %arg3: memref<2x2x1024xf32, #tpu.memory_space<vmem>>, %arg4: memref<16x384xf32, #tpu.memory_space<vmem>>, %arg5: memref<4x128x384xf32, #tpu.memory_space<vmem>>, %arg6: memref<8x384xf32, #tpu.memory_space<vmem>>, %arg7: memref<2x384xf32, #tpu.memory_space<vmem>>) attributes {dimension_semantics = [#tpu.dimension_semantics<arbitrary>], iteration_bounds = array<i64: 1>, scalar_prefetch = 0 : i64, scratch_operands = 0 : i64, tpu.core_type = #tpu.core_type<tc>, window_params = [{pipeline_mode = #tpu.pipeline_mode<synchronous>, transform_indices = @transform_0, window_bounds = array<i64: 32, 1024>}, {pipeline_mode = #tpu.pipeline_mode<synchronous>, transform_indices = @transform_1, window_bounds = array<i64: 8, 32>}, {pipeline_mode = #tpu.pipeline_mode<synchronous>, transform_indices = @transform_2, window_bounds = array<i64: 2, 2, 1024>}, {pipeline_mode = #tpu.pipeline_mode<synchronous>, transform_indices = @transform_3, window_bounds = array<i64: 16, 384>}, {pipeline_mode = #tpu.pipeline_mode<synchronous>, transform_indices = @transform_4, window_bounds = array<i64: 4, 128, 384>}, {pipeline_mode = #tpu.pipeline_mode<synchronous>, transform_indices = @transform_5, window_bounds = array<i64: 8, 384>}, {pipeline_mode = #tpu.pipeline_mode<synchronous>, transform_indices = @transform_6, window_bounds = array<i64: 2, 384>}]} {
    %c0 = arith.constant 0 : index
    %c0_0 = arith.constant 0 : index
    %0 = vector.load %arg2[%c0, %c0_0] : memref<8x32xf32, #tpu.memory_space<vmem>>, vector<8x32xf32>
    %c0_1 = arith.constant 0 : index
    %c0_2 = arith.constant 0 : index
    %1 = vector.load %arg1[%c0_1, %c0_2] : memref<32x1024xf32, #tpu.memory_space<vmem>>, vector<32x1024xf32>
    %cst = arith.constant dense<0.000000e+00> : vector<8x1024xf32>
    %2 = tpu.matmul %0, %1, %cst {dimension_numbers = #tpu.dot_dimension_numbers<[1], [0], [0], [1], [0, 0, 1, 1], [], []>} : vector<8x32xf32>, vector<32x1024xf32>, vector<8x1024xf32> -> vector<8x1024xf32>
    %cst_3 = arith.constant 0.000000e+00 : f32
    %3 = vector.broadcast %cst_3 : f32 to vector<8x1024xf32>
    %4 = arith.maximumf %2, %3 : vector<8x1024xf32>
    %c0_4 = arith.constant 0 : index
    %c0_5 = arith.constant 0 : index
    %c0_6 = arith.constant 0 : index
    %5 = vector.load %arg3[%c0_4, %c0_5, %c0_6] : memref<2x2x1024xf32, #tpu.memory_space<vmem>>, vector<1x2x1024xf32>
    %6 = vector.shape_cast %5 : vector<1x2x1024xf32> to vector<2x1024xf32>
    %cst_7 = arith.constant dense<0.000000e+00> : vector<2x8xf32>
    %7 = tpu.matmul %6, %4, %cst_7 {dimension_numbers = #tpu.dot_dimension_numbers<[1], [1], [0], [0], [0, 0, 1, 0], [], []>} : vector<2x1024xf32>, vector<8x1024xf32>, vector<2x8xf32> -> vector<2x8xf32>
    %c1 = arith.constant 1 : index
    %c0_8 = arith.constant 0 : index
    %c0_9 = arith.constant 0 : index
    %8 = vector.load %arg3[%c1, %c0_8, %c0_9] : memref<2x2x1024xf32, #tpu.memory_space<vmem>>, vector<1x2x1024xf32>
    %9 = vector.shape_cast %8 : vector<1x2x1024xf32> to vector<2x1024xf32>
    %cst_10 = arith.constant dense<0.000000e+00> : vector<2x8xf32>
    %10 = tpu.matmul %9, %4, %cst_10 {dimension_numbers = #tpu.dot_dimension_numbers<[1], [1], [0], [0], [0, 0, 1, 0], [], []>} : vector<2x1024xf32>, vector<8x1024xf32>, vector<2x8xf32> -> vector<2x8xf32>
    %c0_11 = arith.constant 0 : index
    %c0_12 = arith.constant 0 : index
    %11 = vector.load %arg4[%c0_11, %c0_12] : memref<16x384xf32, #tpu.memory_space<vmem>>, vector<16x384xf32>
    %c0_13 = arith.constant 0 : index
    %c0_14 = arith.constant 0 : index
    %12 = vector.load %arg6[%c0_13, %c0_14] : memref<8x384xf32, #tpu.memory_space<vmem>>, vector<8x384xf32>
    %13 = vector.extract_strided_slice %12 {offsets = [0, 0], sizes = [1, 384], strides = [1, 1]} : vector<8x384xf32> to vector<1x384xf32>
    %14 = vector.extract_strided_slice %12 {offsets = [1, 0], sizes = [1, 384], strides = [1, 1]} : vector<8x384xf32> to vector<1x384xf32>
    %15 = vector.extract_strided_slice %12 {offsets = [2, 0], sizes = [1, 384], strides = [1, 1]} : vector<8x384xf32> to vector<1x384xf32>
    %16 = vector.extract_strided_slice %12 {offsets = [3, 0], sizes = [1, 384], strides = [1, 1]} : vector<8x384xf32> to vector<1x384xf32>
    %17 = vector.extract_strided_slice %12 {offsets = [4, 0], sizes = [1, 384], strides = [1, 1]} : vector<8x384xf32> to vector<1x384xf32>
    %18 = vector.extract_strided_slice %11 {offsets = [0, 0], sizes = [8, 384], strides = [1, 1]} : vector<16x384xf32> to vector<8x384xf32>
    %cst_15 = arith.constant dense<0.000000e+00> : vector<2x384xf32>
    %19 = tpu.matmul %7, %18, %cst_15 {dimension_numbers = #tpu.dot_dimension_numbers<[1], [0], [0], [1], [0, 0, 1, 1], [], []>} : vector<2x8xf32>, vector<8x384xf32>, vector<2x384xf32> -> vector<2x384xf32>
    %20 = vector.broadcast %13 : vector<1x384xf32> to vector<2x384xf32>
    %21 = arith.addf %20, %19 : vector<2x384xf32>
    %22 = vector.extract_strided_slice %11 {offsets = [8, 0], sizes = [8, 384], strides = [1, 1]} : vector<16x384xf32> to vector<8x384xf32>
    %cst_16 = arith.constant dense<0.000000e+00> : vector<2x384xf32>
    %23 = tpu.matmul %10, %22, %cst_16 {dimension_numbers = #tpu.dot_dimension_numbers<[1], [0], [0], [1], [0, 0, 1, 1], [], []>} : vector<2x8xf32>, vector<8x384xf32>, vector<2x384xf32> -> vector<2x384xf32>
    %24 = arith.addf %21, %23 : vector<2x384xf32>
    %25 = vector.extract_strided_slice %24 {offsets = [0, 0], sizes = [2, 256], strides = [1, 1]} : vector<2x384xf32> to vector<2x256xf32>
    %26 = vector.extract_strided_slice %24 {offsets = [0, 256], sizes = [2, 128], strides = [1, 1]} : vector<2x384xf32> to vector<2x128xf32>
    %c0_17 = arith.constant 0 : index
    %c0_18 = arith.constant 0 : index
    %c0_19 = arith.constant 0 : index
    %27 = vector.load %arg5[%c0_17, %c0_18, %c0_19] : memref<4x128x384xf32, #tpu.memory_space<vmem>>, vector<1x128x384xf32>
    %28 = vector.shape_cast %27 : vector<1x128x384xf32> to vector<128x384xf32>
    %c1_20 = arith.constant 1 : index
    %c0_21 = arith.constant 0 : index
    %c0_22 = arith.constant 0 : index
    %29 = vector.load %arg5[%c1_20, %c0_21, %c0_22] : memref<4x128x384xf32, #tpu.memory_space<vmem>>, vector<1x128x384xf32>
    %30 = vector.shape_cast %29 : vector<1x128x384xf32> to vector<128x384xf32>
    %c2 = arith.constant 2 : index
    %c0_23 = arith.constant 0 : index
    %c0_24 = arith.constant 0 : index
    %31 = vector.load %arg5[%c2, %c0_23, %c0_24] : memref<4x128x384xf32, #tpu.memory_space<vmem>>, vector<1x128x384xf32>
    %32 = vector.shape_cast %31 : vector<1x128x384xf32> to vector<128x384xf32>
    %c3 = arith.constant 3 : index
    %c0_25 = arith.constant 0 : index
    %c0_26 = arith.constant 0 : index
    %33 = vector.load %arg5[%c3, %c0_25, %c0_26] : memref<4x128x384xf32, #tpu.memory_space<vmem>>, vector<1x128x384xf32>
    %34 = vector.shape_cast %33 : vector<1x128x384xf32> to vector<128x384xf32>
    %cst_27 = arith.constant 0.000000e+00 : f32
    %35 = vector.broadcast %cst_27 : f32 to vector<2x128xf32>
    %cst_28 = arith.constant 0.000000e+00 : f32
    %36 = vector.broadcast %cst_28 : f32 to vector<2x128xf32>
    %c0_i32 = arith.constant 0 : i32
    %cst_29 = arith.constant dense<0.000000e+00> : vector<2x384xf32>
    %37 = tpu.matmul %35, %28, %cst_29 {dimension_numbers = #tpu.dot_dimension_numbers<[1], [0], [0], [1], [0, 0, 1, 1], [], []>} : vector<2x128xf32>, vector<128x384xf32>, vector<2x384xf32> -> vector<2x384xf32>
    %38 = vector.broadcast %14 : vector<1x384xf32> to vector<2x384xf32>
    %39 = arith.addf %37, %38 : vector<2x384xf32>
    %40 = vector.extract_strided_slice %39 {offsets = [0, 0], sizes = [2, 256], strides = [1, 1]} : vector<2x384xf32> to vector<2x256xf32>
    %41 = arith.addf %25, %40 : vector<2x256xf32>
    %42 = arith.negf %41 : vector<2x256xf32>
    %43 = math.exp %42 : vector<2x256xf32>
    %cst_30 = arith.constant 1.000000e+00 : f32
    %44 = vector.broadcast %cst_30 : f32 to vector<2x256xf32>
    %45 = arith.addf %44, %43 : vector<2x256xf32>
    %46 = arith.divf %44, %45 : vector<2x256xf32>
    %47 = vector.extract_strided_slice %46 {offsets = [0, 0], sizes = [2, 128], strides = [1, 1]} : vector<2x256xf32> to vector<2x128xf32>
    %48 = vector.extract_strided_slice %39 {offsets = [0, 256], sizes = [2, 128], strides = [1, 1]} : vector<2x384xf32> to vector<2x128xf32>
    %49 = arith.mulf %47, %48 : vector<2x128xf32>
    %50 = arith.addf %26, %49 : vector<2x128xf32>
    %51 = math.tanh %50 : vector<2x128xf32>
    %52 = vector.extract_strided_slice %46 {offsets = [0, 128], sizes = [2, 128], strides = [1, 1]} : vector<2x256xf32> to vector<2x128xf32>
    %cst_31 = arith.constant 1.000000e+00 : f32
    %53 = vector.broadcast %cst_31 : f32 to vector<2x128xf32>
    %54 = arith.subf %53, %52 : vector<2x128xf32>
    %55 = arith.mulf %54, %51 : vector<2x128xf32>
    %56 = arith.mulf %52, %35 : vector<2x128xf32>
    %57 = arith.addf %55, %56 : vector<2x128xf32>
    %cst_32 = arith.constant dense<0.000000e+00> : vector<2x384xf32>
    %58 = tpu.matmul %57, %30, %cst_32 {dimension_numbers = #tpu.dot_dimension_numbers<[1], [0], [0], [1], [0, 0, 1, 1], [], []>} : vector<2x128xf32>, vector<128x384xf32>, vector<2x384xf32> -> vector<2x384xf32>
    %59 = vector.broadcast %15 : vector<1x384xf32> to vector<2x384xf32>
    %60 = arith.addf %58, %59 : vector<2x384xf32>
    %cst_33 = arith.constant dense<0.000000e+00> : vector<2x384xf32>
    %61 = tpu.matmul %36, %32, %cst_33 {dimension_numbers = #tpu.dot_dimension_numbers<[1], [0], [0], [1], [0, 0, 1, 1], [], []>} : vector<2x128xf32>, vector<128x384xf32>, vector<2x384xf32> -> vector<2x384xf32>
    %62 = vector.broadcast %16 : vector<1x384xf32> to vector<2x384xf32>
    %63 = arith.addf %61, %62 : vector<2x384xf32>
    %64 = vector.extract_strided_slice %60 {offsets = [0, 0], sizes = [2, 256], strides = [1, 1]} : vector<2x384xf32> to vector<2x256xf32>
    %65 = vector.extract_strided_slice %63 {offsets = [0, 0], sizes = [2, 256], strides = [1, 1]} : vector<2x384xf32> to vector<2x256xf32>
    %66 = arith.addf %64, %65 : vector<2x256xf32>
    %67 = arith.negf %66 : vector<2x256xf32>
    %68 = math.exp %67 : vector<2x256xf32>
    %cst_34 = arith.constant 1.000000e+00 : f32
    %69 = vector.broadcast %cst_34 : f32 to vector<2x256xf32>
    %70 = arith.addf %69, %68 : vector<2x256xf32>
    %71 = arith.divf %69, %70 : vector<2x256xf32>
    %72 = vector.extract_strided_slice %60 {offsets = [0, 256], sizes = [2, 128], strides = [1, 1]} : vector<2x384xf32> to vector<2x128xf32>
    %73 = vector.extract_strided_slice %71 {offsets = [0, 0], sizes = [2, 128], strides = [1, 1]} : vector<2x256xf32> to vector<2x128xf32>
    %74 = vector.extract_strided_slice %63 {offsets = [0, 256], sizes = [2, 128], strides = [1, 1]} : vector<2x384xf32> to vector<2x128xf32>
    %75 = arith.mulf %73, %74 : vector<2x128xf32>
    %76 = arith.addf %72, %75 : vector<2x128xf32>
    %77 = math.tanh %76 : vector<2x128xf32>
    %78 = vector.extract_strided_slice %71 {offsets = [0, 128], sizes = [2, 128], strides = [1, 1]} : vector<2x256xf32> to vector<2x128xf32>
    %cst_35 = arith.constant 1.000000e+00 : f32
    %79 = vector.broadcast %cst_35 : f32 to vector<2x128xf32>
    %80 = arith.subf %79, %78 : vector<2x128xf32>
    %81 = arith.mulf %80, %77 : vector<2x128xf32>
    %82 = arith.mulf %78, %36 : vector<2x128xf32>
    %83 = arith.addf %81, %82 : vector<2x128xf32>
    %c1_i32 = arith.constant 1 : i32
    %cst_36 = arith.constant dense<0.000000e+00> : vector<2x384xf32>
    %84 = tpu.matmul %57, %28, %cst_36 {dimension_numbers = #tpu.dot_dimension_numbers<[1], [0], [0], [1], [0, 0, 1, 1], [], []>} : vector<2x128xf32>, vector<128x384xf32>, vector<2x384xf32> -> vector<2x384xf32>
    %85 = vector.broadcast %14 : vector<1x384xf32> to vector<2x384xf32>
    %86 = arith.addf %84, %85 : vector<2x384xf32>
    %87 = vector.extract_strided_slice %86 {offsets = [0, 0], sizes = [2, 256], strides = [1, 1]} : vector<2x384xf32> to vector<2x256xf32>
    %88 = arith.addf %25, %87 : vector<2x256xf32>
    %89 = arith.negf %88 : vector<2x256xf32>
    %90 = math.exp %89 : vector<2x256xf32>
    %cst_37 = arith.constant 1.000000e+00 : f32
    %91 = vector.broadcast %cst_37 : f32 to vector<2x256xf32>
    %92 = arith.addf %91, %90 : vector<2x256xf32>
    %93 = arith.divf %91, %92 : vector<2x256xf32>
    %94 = vector.extract_strided_slice %93 {offsets = [0, 0], sizes = [2, 128], strides = [1, 1]} : vector<2x256xf32> to vector<2x128xf32>
    %95 = vector.extract_strided_slice %86 {offsets = [0, 256], sizes = [2, 128], strides = [1, 1]} : vector<2x384xf32> to vector<2x128xf32>
    %96 = arith.mulf %94, %95 : vector<2x128xf32>
    %97 = arith.addf %26, %96 : vector<2x128xf32>
    %98 = math.tanh %97 : vector<2x128xf32>
    %99 = vector.extract_strided_slice %93 {offsets = [0, 128], sizes = [2, 128], strides = [1, 1]} : vector<2x256xf32> to vector<2x128xf32>
    %cst_38 = arith.constant 1.000000e+00 : f32
    %100 = vector.broadcast %cst_38 : f32 to vector<2x128xf32>
    %101 = arith.subf %100, %99 : vector<2x128xf32>
    %102 = arith.mulf %101, %98 : vector<2x128xf32>
    %103 = arith.mulf %99, %57 : vector<2x128xf32>
    %104 = arith.addf %102, %103 : vector<2x128xf32>
    %cst_39 = arith.constant dense<0.000000e+00> : vector<2x384xf32>
    %105 = tpu.matmul %104, %30, %cst_39 {dimension_numbers = #tpu.dot_dimension_numbers<[1], [0], [0], [1], [0, 0, 1, 1], [], []>} : vector<2x128xf32>, vector<128x384xf32>, vector<2x384xf32> -> vector<2x384xf32>
    %106 = vector.broadcast %15 : vector<1x384xf32> to vector<2x384xf32>
    %107 = arith.addf %105, %106 : vector<2x384xf32>
    %cst_40 = arith.constant dense<0.000000e+00> : vector<2x384xf32>
    %108 = tpu.matmul %83, %32, %cst_40 {dimension_numbers = #tpu.dot_dimension_numbers<[1], [0], [0], [1], [0, 0, 1, 1], [], []>} : vector<2x128xf32>, vector<128x384xf32>, vector<2x384xf32> -> vector<2x384xf32>
    %109 = vector.broadcast %16 : vector<1x384xf32> to vector<2x384xf32>
    %110 = arith.addf %108, %109 : vector<2x384xf32>
    %111 = vector.extract_strided_slice %107 {offsets = [0, 0], sizes = [2, 256], strides = [1, 1]} : vector<2x384xf32> to vector<2x256xf32>
    %112 = vector.extract_strided_slice %110 {offsets = [0, 0], sizes = [2, 256], strides = [1, 1]} : vector<2x384xf32> to vector<2x256xf32>
    %113 = arith.addf %111, %112 : vector<2x256xf32>
    %114 = arith.negf %113 : vector<2x256xf32>
    %115 = math.exp %114 : vector<2x256xf32>
    %cst_41 = arith.constant 1.000000e+00 : f32
    %116 = vector.broadcast %cst_41 : f32 to vector<2x256xf32>
    %117 = arith.addf %116, %115 : vector<2x256xf32>
    %118 = arith.divf %116, %117 : vector<2x256xf32>
    %119 = vector.extract_strided_slice %107 {offsets = [0, 256], sizes = [2, 128], strides = [1, 1]} : vector<2x384xf32> to vector<2x128xf32>
    %120 = vector.extract_strided_slice %118 {offsets = [0, 0], sizes = [2, 128], strides = [1, 1]} : vector<2x256xf32> to vector<2x128xf32>
    %121 = vector.extract_strided_slice %110 {offsets = [0, 256], sizes = [2, 128], strides = [1, 1]} : vector<2x384xf32> to vector<2x128xf32>
    %122 = arith.mulf %120, %121 : vector<2x128xf32>
    %123 = arith.addf %119, %122 : vector<2x128xf32>
    %124 = math.tanh %123 : vector<2x128xf32>
    %125 = vector.extract_strided_slice %118 {offsets = [0, 128], sizes = [2, 128], strides = [1, 1]} : vector<2x256xf32> to vector<2x128xf32>
    %cst_42 = arith.constant 1.000000e+00 : f32
    %126 = vector.broadcast %cst_42 : f32 to vector<2x128xf32>
    %127 = arith.subf %126, %125 : vector<2x128xf32>
    %128 = arith.mulf %127, %124 : vector<2x128xf32>
    %129 = arith.mulf %125, %83 : vector<2x128xf32>
    %130 = arith.addf %128, %129 : vector<2x128xf32>
    %c2_i32 = arith.constant 2 : i32
    %cst_43 = arith.constant dense<0.000000e+00> : vector<2x384xf32>
    %131 = tpu.matmul %104, %28, %cst_43 {dimension_numbers = #tpu.dot_dimension_numbers<[1], [0], [0], [1], [0, 0, 1, 1], [], []>} : vector<2x128xf32>, vector<128x384xf32>, vector<2x384xf32> -> vector<2x384xf32>
    %132 = vector.broadcast %14 : vector<1x384xf32> to vector<2x384xf32>
    %133 = arith.addf %131, %132 : vector<2x384xf32>
    %134 = vector.extract_strided_slice %133 {offsets = [0, 0], sizes = [2, 256], strides = [1, 1]} : vector<2x384xf32> to vector<2x256xf32>
    %135 = arith.addf %25, %134 : vector<2x256xf32>
    %136 = arith.negf %135 : vector<2x256xf32>
    %137 = math.exp %136 : vector<2x256xf32>
    %cst_44 = arith.constant 1.000000e+00 : f32
    %138 = vector.broadcast %cst_44 : f32 to vector<2x256xf32>
    %139 = arith.addf %138, %137 : vector<2x256xf32>
    %140 = arith.divf %138, %139 : vector<2x256xf32>
    %141 = vector.extract_strided_slice %140 {offsets = [0, 0], sizes = [2, 128], strides = [1, 1]} : vector<2x256xf32> to vector<2x128xf32>
    %142 = vector.extract_strided_slice %133 {offsets = [0, 256], sizes = [2, 128], strides = [1, 1]} : vector<2x384xf32> to vector<2x128xf32>
    %143 = arith.mulf %141, %142 : vector<2x128xf32>
    %144 = arith.addf %26, %143 : vector<2x128xf32>
    %145 = math.tanh %144 : vector<2x128xf32>
    %146 = vector.extract_strided_slice %140 {offsets = [0, 128], sizes = [2, 128], strides = [1, 1]} : vector<2x256xf32> to vector<2x128xf32>
    %cst_45 = arith.constant 1.000000e+00 : f32
    %147 = vector.broadcast %cst_45 : f32 to vector<2x128xf32>
    %148 = arith.subf %147, %146 : vector<2x128xf32>
    %149 = arith.mulf %148, %145 : vector<2x128xf32>
    %150 = arith.mulf %146, %104 : vector<2x128xf32>
    %151 = arith.addf %149, %150 : vector<2x128xf32>
    %cst_46 = arith.constant dense<0.000000e+00> : vector<2x384xf32>
    %152 = tpu.matmul %151, %30, %cst_46 {dimension_numbers = #tpu.dot_dimension_numbers<[1], [0], [0], [1], [0, 0, 1, 1], [], []>} : vector<2x128xf32>, vector<128x384xf32>, vector<2x384xf32> -> vector<2x384xf32>
    %153 = vector.broadcast %15 : vector<1x384xf32> to vector<2x384xf32>
    %154 = arith.addf %152, %153 : vector<2x384xf32>
    %cst_47 = arith.constant dense<0.000000e+00> : vector<2x384xf32>
    %155 = tpu.matmul %130, %32, %cst_47 {dimension_numbers = #tpu.dot_dimension_numbers<[1], [0], [0], [1], [0, 0, 1, 1], [], []>} : vector<2x128xf32>, vector<128x384xf32>, vector<2x384xf32> -> vector<2x384xf32>
    %156 = vector.broadcast %16 : vector<1x384xf32> to vector<2x384xf32>
    %157 = arith.addf %155, %156 : vector<2x384xf32>
    %158 = vector.extract_strided_slice %154 {offsets = [0, 0], sizes = [2, 256], strides = [1, 1]} : vector<2x384xf32> to vector<2x256xf32>
    %159 = vector.extract_strided_slice %157 {offsets = [0, 0], sizes = [2, 256], strides = [1, 1]} : vector<2x384xf32> to vector<2x256xf32>
    %160 = arith.addf %158, %159 : vector<2x256xf32>
    %161 = arith.negf %160 : vector<2x256xf32>
    %162 = math.exp %161 : vector<2x256xf32>
    %cst_48 = arith.constant 1.000000e+00 : f32
    %163 = vector.broadcast %cst_48 : f32 to vector<2x256xf32>
    %164 = arith.addf %163, %162 : vector<2x256xf32>
    %165 = arith.divf %163, %164 : vector<2x256xf32>
    %166 = vector.extract_strided_slice %154 {offsets = [0, 256], sizes = [2, 128], strides = [1, 1]} : vector<2x384xf32> to vector<2x128xf32>
    %167 = vector.extract_strided_slice %165 {offsets = [0, 0], sizes = [2, 128], strides = [1, 1]} : vector<2x256xf32> to vector<2x128xf32>
    %168 = vector.extract_strided_slice %157 {offsets = [0, 256], sizes = [2, 128], strides = [1, 1]} : vector<2x384xf32> to vector<2x128xf32>
    %169 = arith.mulf %167, %168 : vector<2x128xf32>
    %170 = arith.addf %166, %169 : vector<2x128xf32>
    %171 = math.tanh %170 : vector<2x128xf32>
    %172 = vector.extract_strided_slice %165 {offsets = [0, 128], sizes = [2, 128], strides = [1, 1]} : vector<2x256xf32> to vector<2x128xf32>
    %cst_49 = arith.constant 1.000000e+00 : f32
    %173 = vector.broadcast %cst_49 : f32 to vector<2x128xf32>
    %174 = arith.subf %173, %172 : vector<2x128xf32>
    %175 = arith.mulf %174, %171 : vector<2x128xf32>
    %176 = arith.mulf %172, %130 : vector<2x128xf32>
    %177 = arith.addf %175, %176 : vector<2x128xf32>
    %c3_i32 = arith.constant 3 : i32
    %cst_50 = arith.constant dense<0.000000e+00> : vector<2x384xf32>
    %178 = tpu.matmul %151, %28, %cst_50 {dimension_numbers = #tpu.dot_dimension_numbers<[1], [0], [0], [1], [0, 0, 1, 1], [], []>} : vector<2x128xf32>, vector<128x384xf32>, vector<2x384xf32> -> vector<2x384xf32>
    %179 = vector.broadcast %14 : vector<1x384xf32> to vector<2x384xf32>
    %180 = arith.addf %178, %179 : vector<2x384xf32>
    %181 = vector.extract_strided_slice %180 {offsets = [0, 0], sizes = [2, 256], strides = [1, 1]} : vector<2x384xf32> to vector<2x256xf32>
    %182 = arith.addf %25, %181 : vector<2x256xf32>
    %183 = arith.negf %182 : vector<2x256xf32>
    %184 = math.exp %183 : vector<2x256xf32>
    %cst_51 = arith.constant 1.000000e+00 : f32
    %185 = vector.broadcast %cst_51 : f32 to vector<2x256xf32>
    %186 = arith.addf %185, %184 : vector<2x256xf32>
    %187 = arith.divf %185, %186 : vector<2x256xf32>
    %188 = vector.extract_strided_slice %187 {offsets = [0, 0], sizes = [2, 128], strides = [1, 1]} : vector<2x256xf32> to vector<2x128xf32>
    %189 = vector.extract_strided_slice %180 {offsets = [0, 256], sizes = [2, 128], strides = [1, 1]} : vector<2x384xf32> to vector<2x128xf32>
    %190 = arith.mulf %188, %189 : vector<2x128xf32>
    %191 = arith.addf %26, %190 : vector<2x128xf32>
    %192 = math.tanh %191 : vector<2x128xf32>
    %193 = vector.extract_strided_slice %187 {offsets = [0, 128], sizes = [2, 128], strides = [1, 1]} : vector<2x256xf32> to vector<2x128xf32>
    %cst_52 = arith.constant 1.000000e+00 : f32
    %194 = vector.broadcast %cst_52 : f32 to vector<2x128xf32>
    %195 = arith.subf %194, %193 : vector<2x128xf32>
    %196 = arith.mulf %195, %192 : vector<2x128xf32>
    %197 = arith.mulf %193, %151 : vector<2x128xf32>
    %198 = arith.addf %196, %197 : vector<2x128xf32>
    %cst_53 = arith.constant dense<0.000000e+00> : vector<2x384xf32>
    %199 = tpu.matmul %198, %30, %cst_53 {dimension_numbers = #tpu.dot_dimension_numbers<[1], [0], [0], [1], [0, 0, 1, 1], [], []>} : vector<2x128xf32>, vector<128x384xf32>, vector<2x384xf32> -> vector<2x384xf32>
    %200 = vector.broadcast %15 : vector<1x384xf32> to vector<2x384xf32>
    %201 = arith.addf %199, %200 : vector<2x384xf32>
    %cst_54 = arith.constant dense<0.000000e+00> : vector<2x384xf32>
    %202 = tpu.matmul %177, %32, %cst_54 {dimension_numbers = #tpu.dot_dimension_numbers<[1], [0], [0], [1], [0, 0, 1, 1], [], []>} : vector<2x128xf32>, vector<128x384xf32>, vector<2x384xf32> -> vector<2x384xf32>
    %203 = vector.broadcast %16 : vector<1x384xf32> to vector<2x384xf32>
    %204 = arith.addf %202, %203 : vector<2x384xf32>
    %205 = vector.extract_strided_slice %201 {offsets = [0, 0], sizes = [2, 256], strides = [1, 1]} : vector<2x384xf32> to vector<2x256xf32>
    %206 = vector.extract_strided_slice %204 {offsets = [0, 0], sizes = [2, 256], strides = [1, 1]} : vector<2x384xf32> to vector<2x256xf32>
    %207 = arith.addf %205, %206 : vector<2x256xf32>
    %208 = arith.negf %207 : vector<2x256xf32>
    %209 = math.exp %208 : vector<2x256xf32>
    %cst_55 = arith.constant 1.000000e+00 : f32
    %210 = vector.broadcast %cst_55 : f32 to vector<2x256xf32>
    %211 = arith.addf %210, %209 : vector<2x256xf32>
    %212 = arith.divf %210, %211 : vector<2x256xf32>
    %213 = vector.extract_strided_slice %201 {offsets = [0, 256], sizes = [2, 128], strides = [1, 1]} : vector<2x384xf32> to vector<2x128xf32>
    %214 = vector.extract_strided_slice %212 {offsets = [0, 0], sizes = [2, 128], strides = [1, 1]} : vector<2x256xf32> to vector<2x128xf32>
    %215 = vector.extract_strided_slice %204 {offsets = [0, 256], sizes = [2, 128], strides = [1, 1]} : vector<2x384xf32> to vector<2x128xf32>
    %216 = arith.mulf %214, %215 : vector<2x128xf32>
    %217 = arith.addf %213, %216 : vector<2x128xf32>
    %218 = math.tanh %217 : vector<2x128xf32>
    %219 = vector.extract_strided_slice %212 {offsets = [0, 128], sizes = [2, 128], strides = [1, 1]} : vector<2x256xf32> to vector<2x128xf32>
    %cst_56 = arith.constant 1.000000e+00 : f32
    %220 = vector.broadcast %cst_56 : f32 to vector<2x128xf32>
    %221 = arith.subf %220, %219 : vector<2x128xf32>
    %222 = arith.mulf %221, %218 : vector<2x128xf32>
    %223 = arith.mulf %219, %177 : vector<2x128xf32>
    %224 = arith.addf %222, %223 : vector<2x128xf32>
    %c4_i32 = arith.constant 4 : i32
    %cst_57 = arith.constant dense<0.000000e+00> : vector<2x384xf32>
    %225 = tpu.matmul %198, %28, %cst_57 {dimension_numbers = #tpu.dot_dimension_numbers<[1], [0], [0], [1], [0, 0, 1, 1], [], []>} : vector<2x128xf32>, vector<128x384xf32>, vector<2x384xf32> -> vector<2x384xf32>
    %226 = vector.broadcast %14 : vector<1x384xf32> to vector<2x384xf32>
    %227 = arith.addf %225, %226 : vector<2x384xf32>
    %228 = vector.extract_strided_slice %227 {offsets = [0, 0], sizes = [2, 256], strides = [1, 1]} : vector<2x384xf32> to vector<2x256xf32>
    %229 = arith.addf %25, %228 : vector<2x256xf32>
    %230 = arith.negf %229 : vector<2x256xf32>
    %231 = math.exp %230 : vector<2x256xf32>
    %cst_58 = arith.constant 1.000000e+00 : f32
    %232 = vector.broadcast %cst_58 : f32 to vector<2x256xf32>
    %233 = arith.addf %232, %231 : vector<2x256xf32>
    %234 = arith.divf %232, %233 : vector<2x256xf32>
    %235 = vector.extract_strided_slice %234 {offsets = [0, 0], sizes = [2, 128], strides = [1, 1]} : vector<2x256xf32> to vector<2x128xf32>
    %236 = vector.extract_strided_slice %227 {offsets = [0, 256], sizes = [2, 128], strides = [1, 1]} : vector<2x384xf32> to vector<2x128xf32>
    %237 = arith.mulf %235, %236 : vector<2x128xf32>
    %238 = arith.addf %26, %237 : vector<2x128xf32>
    %239 = math.tanh %238 : vector<2x128xf32>
    %240 = vector.extract_strided_slice %234 {offsets = [0, 128], sizes = [2, 128], strides = [1, 1]} : vector<2x256xf32> to vector<2x128xf32>
    %cst_59 = arith.constant 1.000000e+00 : f32
    %241 = vector.broadcast %cst_59 : f32 to vector<2x128xf32>
    %242 = arith.subf %241, %240 : vector<2x128xf32>
    %243 = arith.mulf %242, %239 : vector<2x128xf32>
    %244 = arith.mulf %240, %198 : vector<2x128xf32>
    %245 = arith.addf %243, %244 : vector<2x128xf32>
    %cst_60 = arith.constant dense<0.000000e+00> : vector<2x384xf32>
    %246 = tpu.matmul %245, %30, %cst_60 {dimension_numbers = #tpu.dot_dimension_numbers<[1], [0], [0], [1], [0, 0, 1, 1], [], []>} : vector<2x128xf32>, vector<128x384xf32>, vector<2x384xf32> -> vector<2x384xf32>
    %247 = vector.broadcast %15 : vector<1x384xf32> to vector<2x384xf32>
    %248 = arith.addf %246, %247 : vector<2x384xf32>
    %cst_61 = arith.constant dense<0.000000e+00> : vector<2x384xf32>
    %249 = tpu.matmul %224, %32, %cst_61 {dimension_numbers = #tpu.dot_dimension_numbers<[1], [0], [0], [1], [0, 0, 1, 1], [], []>} : vector<2x128xf32>, vector<128x384xf32>, vector<2x384xf32> -> vector<2x384xf32>
    %250 = vector.broadcast %16 : vector<1x384xf32> to vector<2x384xf32>
    %251 = arith.addf %249, %250 : vector<2x384xf32>
    %252 = vector.extract_strided_slice %248 {offsets = [0, 0], sizes = [2, 256], strides = [1, 1]} : vector<2x384xf32> to vector<2x256xf32>
    %253 = vector.extract_strided_slice %251 {offsets = [0, 0], sizes = [2, 256], strides = [1, 1]} : vector<2x384xf32> to vector<2x256xf32>
    %254 = arith.addf %252, %253 : vector<2x256xf32>
    %255 = arith.negf %254 : vector<2x256xf32>
    %256 = math.exp %255 : vector<2x256xf32>
    %cst_62 = arith.constant 1.000000e+00 : f32
    %257 = vector.broadcast %cst_62 : f32 to vector<2x256xf32>
    %258 = arith.addf %257, %256 : vector<2x256xf32>
    %259 = arith.divf %257, %258 : vector<2x256xf32>
    %260 = vector.extract_strided_slice %248 {offsets = [0, 256], sizes = [2, 128], strides = [1, 1]} : vector<2x384xf32> to vector<2x128xf32>
    %261 = vector.extract_strided_slice %259 {offsets = [0, 0], sizes = [2, 128], strides = [1, 1]} : vector<2x256xf32> to vector<2x128xf32>
    %262 = vector.extract_strided_slice %251 {offsets = [0, 256], sizes = [2, 128], strides = [1, 1]} : vector<2x384xf32> to vector<2x128xf32>
    %263 = arith.mulf %261, %262 : vector<2x128xf32>
    %264 = arith.addf %260, %263 : vector<2x128xf32>
    %265 = math.tanh %264 : vector<2x128xf32>
    %266 = vector.extract_strided_slice %259 {offsets = [0, 128], sizes = [2, 128], strides = [1, 1]} : vector<2x256xf32> to vector<2x128xf32>
    %cst_63 = arith.constant 1.000000e+00 : f32
    %267 = vector.broadcast %cst_63 : f32 to vector<2x128xf32>
    %268 = arith.subf %267, %266 : vector<2x128xf32>
    %269 = arith.mulf %268, %265 : vector<2x128xf32>
    %270 = arith.mulf %266, %224 : vector<2x128xf32>
    %271 = arith.addf %269, %270 : vector<2x128xf32>
    %c5_i32 = arith.constant 5 : i32
    %cst_64 = arith.constant dense<0.000000e+00> : vector<2x384xf32>
    %272 = tpu.matmul %245, %28, %cst_64 {dimension_numbers = #tpu.dot_dimension_numbers<[1], [0], [0], [1], [0, 0, 1, 1], [], []>} : vector<2x128xf32>, vector<128x384xf32>, vector<2x384xf32> -> vector<2x384xf32>
    %273 = vector.broadcast %14 : vector<1x384xf32> to vector<2x384xf32>
    %274 = arith.addf %272, %273 : vector<2x384xf32>
    %275 = vector.extract_strided_slice %274 {offsets = [0, 0], sizes = [2, 256], strides = [1, 1]} : vector<2x384xf32> to vector<2x256xf32>
    %276 = arith.addf %25, %275 : vector<2x256xf32>
    %277 = arith.negf %276 : vector<2x256xf32>
    %278 = math.exp %277 : vector<2x256xf32>
    %cst_65 = arith.constant 1.000000e+00 : f32
    %279 = vector.broadcast %cst_65 : f32 to vector<2x256xf32>
    %280 = arith.addf %279, %278 : vector<2x256xf32>
    %281 = arith.divf %279, %280 : vector<2x256xf32>
    %282 = vector.extract_strided_slice %281 {offsets = [0, 0], sizes = [2, 128], strides = [1, 1]} : vector<2x256xf32> to vector<2x128xf32>
    %283 = vector.extract_strided_slice %274 {offsets = [0, 256], sizes = [2, 128], strides = [1, 1]} : vector<2x384xf32> to vector<2x128xf32>
    %284 = arith.mulf %282, %283 : vector<2x128xf32>
    %285 = arith.addf %26, %284 : vector<2x128xf32>
    %286 = math.tanh %285 : vector<2x128xf32>
    %287 = vector.extract_strided_slice %281 {offsets = [0, 128], sizes = [2, 128], strides = [1, 1]} : vector<2x256xf32> to vector<2x128xf32>
    %cst_66 = arith.constant 1.000000e+00 : f32
    %288 = vector.broadcast %cst_66 : f32 to vector<2x128xf32>
    %289 = arith.subf %288, %287 : vector<2x128xf32>
    %290 = arith.mulf %289, %286 : vector<2x128xf32>
    %291 = arith.mulf %287, %245 : vector<2x128xf32>
    %292 = arith.addf %290, %291 : vector<2x128xf32>
    %cst_67 = arith.constant dense<0.000000e+00> : vector<2x384xf32>
    %293 = tpu.matmul %292, %30, %cst_67 {dimension_numbers = #tpu.dot_dimension_numbers<[1], [0], [0], [1], [0, 0, 1, 1], [], []>} : vector<2x128xf32>, vector<128x384xf32>, vector<2x384xf32> -> vector<2x384xf32>
    %294 = vector.broadcast %15 : vector<1x384xf32> to vector<2x384xf32>
    %295 = arith.addf %293, %294 : vector<2x384xf32>
    %cst_68 = arith.constant dense<0.000000e+00> : vector<2x384xf32>
    %296 = tpu.matmul %271, %32, %cst_68 {dimension_numbers = #tpu.dot_dimension_numbers<[1], [0], [0], [1], [0, 0, 1, 1], [], []>} : vector<2x128xf32>, vector<128x384xf32>, vector<2x384xf32> -> vector<2x384xf32>
    %297 = vector.broadcast %16 : vector<1x384xf32> to vector<2x384xf32>
    %298 = arith.addf %296, %297 : vector<2x384xf32>
    %299 = vector.extract_strided_slice %295 {offsets = [0, 0], sizes = [2, 256], strides = [1, 1]} : vector<2x384xf32> to vector<2x256xf32>
    %300 = vector.extract_strided_slice %298 {offsets = [0, 0], sizes = [2, 256], strides = [1, 1]} : vector<2x384xf32> to vector<2x256xf32>
    %301 = arith.addf %299, %300 : vector<2x256xf32>
    %302 = arith.negf %301 : vector<2x256xf32>
    %303 = math.exp %302 : vector<2x256xf32>
    %cst_69 = arith.constant 1.000000e+00 : f32
    %304 = vector.broadcast %cst_69 : f32 to vector<2x256xf32>
    %305 = arith.addf %304, %303 : vector<2x256xf32>
    %306 = arith.divf %304, %305 : vector<2x256xf32>
    %307 = vector.extract_strided_slice %295 {offsets = [0, 256], sizes = [2, 128], strides = [1, 1]} : vector<2x384xf32> to vector<2x128xf32>
    %308 = vector.extract_strided_slice %306 {offsets = [0, 0], sizes = [2, 128], strides = [1, 1]} : vector<2x256xf32> to vector<2x128xf32>
    %309 = vector.extract_strided_slice %298 {offsets = [0, 256], sizes = [2, 128], strides = [1, 1]} : vector<2x384xf32> to vector<2x128xf32>
    %310 = arith.mulf %308, %309 : vector<2x128xf32>
    %311 = arith.addf %307, %310 : vector<2x128xf32>
    %312 = math.tanh %311 : vector<2x128xf32>
    %313 = vector.extract_strided_slice %306 {offsets = [0, 128], sizes = [2, 128], strides = [1, 1]} : vector<2x256xf32> to vector<2x128xf32>
    %cst_70 = arith.constant 1.000000e+00 : f32
    %314 = vector.broadcast %cst_70 : f32 to vector<2x128xf32>
    %315 = arith.subf %314, %313 : vector<2x128xf32>
    %316 = arith.mulf %315, %312 : vector<2x128xf32>
    %317 = arith.mulf %313, %271 : vector<2x128xf32>
    %318 = arith.addf %316, %317 : vector<2x128xf32>
    %c6_i32 = arith.constant 6 : i32
    %cst_71 = arith.constant dense<0.000000e+00> : vector<2x384xf32>
    %319 = tpu.matmul %292, %28, %cst_71 {dimension_numbers = #tpu.dot_dimension_numbers<[1], [0], [0], [1], [0, 0, 1, 1], [], []>} : vector<2x128xf32>, vector<128x384xf32>, vector<2x384xf32> -> vector<2x384xf32>
    %320 = vector.broadcast %14 : vector<1x384xf32> to vector<2x384xf32>
    %321 = arith.addf %319, %320 : vector<2x384xf32>
    %322 = vector.extract_strided_slice %321 {offsets = [0, 0], sizes = [2, 256], strides = [1, 1]} : vector<2x384xf32> to vector<2x256xf32>
    %323 = arith.addf %25, %322 : vector<2x256xf32>
    %324 = arith.negf %323 : vector<2x256xf32>
    %325 = math.exp %324 : vector<2x256xf32>
    %cst_72 = arith.constant 1.000000e+00 : f32
    %326 = vector.broadcast %cst_72 : f32 to vector<2x256xf32>
    %327 = arith.addf %326, %325 : vector<2x256xf32>
    %328 = arith.divf %326, %327 : vector<2x256xf32>
    %329 = vector.extract_strided_slice %328 {offsets = [0, 0], sizes = [2, 128], strides = [1, 1]} : vector<2x256xf32> to vector<2x128xf32>
    %330 = vector.extract_strided_slice %321 {offsets = [0, 256], sizes = [2, 128], strides = [1, 1]} : vector<2x384xf32> to vector<2x128xf32>
    %331 = arith.mulf %329, %330 : vector<2x128xf32>
    %332 = arith.addf %26, %331 : vector<2x128xf32>
    %333 = math.tanh %332 : vector<2x128xf32>
    %334 = vector.extract_strided_slice %328 {offsets = [0, 128], sizes = [2, 128], strides = [1, 1]} : vector<2x256xf32> to vector<2x128xf32>
    %cst_73 = arith.constant 1.000000e+00 : f32
    %335 = vector.broadcast %cst_73 : f32 to vector<2x128xf32>
    %336 = arith.subf %335, %334 : vector<2x128xf32>
    %337 = arith.mulf %336, %333 : vector<2x128xf32>
    %338 = arith.mulf %334, %292 : vector<2x128xf32>
    %339 = arith.addf %337, %338 : vector<2x128xf32>
    %cst_74 = arith.constant dense<0.000000e+00> : vector<2x384xf32>
    %340 = tpu.matmul %339, %30, %cst_74 {dimension_numbers = #tpu.dot_dimension_numbers<[1], [0], [0], [1], [0, 0, 1, 1], [], []>} : vector<2x128xf32>, vector<128x384xf32>, vector<2x384xf32> -> vector<2x384xf32>
    %341 = vector.broadcast %15 : vector<1x384xf32> to vector<2x384xf32>
    %342 = arith.addf %340, %341 : vector<2x384xf32>
    %cst_75 = arith.constant dense<0.000000e+00> : vector<2x384xf32>
    %343 = tpu.matmul %318, %32, %cst_75 {dimension_numbers = #tpu.dot_dimension_numbers<[1], [0], [0], [1], [0, 0, 1, 1], [], []>} : vector<2x128xf32>, vector<128x384xf32>, vector<2x384xf32> -> vector<2x384xf32>
    %344 = vector.broadcast %16 : vector<1x384xf32> to vector<2x384xf32>
    %345 = arith.addf %343, %344 : vector<2x384xf32>
    %346 = vector.extract_strided_slice %342 {offsets = [0, 0], sizes = [2, 256], strides = [1, 1]} : vector<2x384xf32> to vector<2x256xf32>
    %347 = vector.extract_strided_slice %345 {offsets = [0, 0], sizes = [2, 256], strides = [1, 1]} : vector<2x384xf32> to vector<2x256xf32>
    %348 = arith.addf %346, %347 : vector<2x256xf32>
    %349 = arith.negf %348 : vector<2x256xf32>
    %350 = math.exp %349 : vector<2x256xf32>
    %cst_76 = arith.constant 1.000000e+00 : f32
    %351 = vector.broadcast %cst_76 : f32 to vector<2x256xf32>
    %352 = arith.addf %351, %350 : vector<2x256xf32>
    %353 = arith.divf %351, %352 : vector<2x256xf32>
    %354 = vector.extract_strided_slice %342 {offsets = [0, 256], sizes = [2, 128], strides = [1, 1]} : vector<2x384xf32> to vector<2x128xf32>
    %355 = vector.extract_strided_slice %353 {offsets = [0, 0], sizes = [2, 128], strides = [1, 1]} : vector<2x256xf32> to vector<2x128xf32>
    %356 = vector.extract_strided_slice %345 {offsets = [0, 256], sizes = [2, 128], strides = [1, 1]} : vector<2x384xf32> to vector<2x128xf32>
    %357 = arith.mulf %355, %356 : vector<2x128xf32>
    %358 = arith.addf %354, %357 : vector<2x128xf32>
    %359 = math.tanh %358 : vector<2x128xf32>
    %360 = vector.extract_strided_slice %353 {offsets = [0, 128], sizes = [2, 128], strides = [1, 1]} : vector<2x256xf32> to vector<2x128xf32>
    %cst_77 = arith.constant 1.000000e+00 : f32
    %361 = vector.broadcast %cst_77 : f32 to vector<2x128xf32>
    %362 = arith.subf %361, %360 : vector<2x128xf32>
    %363 = arith.mulf %362, %359 : vector<2x128xf32>
    %364 = arith.mulf %360, %318 : vector<2x128xf32>
    %365 = arith.addf %363, %364 : vector<2x128xf32>
    %c7_i32 = arith.constant 7 : i32
    %cst_78 = arith.constant dense<0.000000e+00> : vector<2x384xf32>
    %366 = tpu.matmul %339, %28, %cst_78 {dimension_numbers = #tpu.dot_dimension_numbers<[1], [0], [0], [1], [0, 0, 1, 1], [], []>} : vector<2x128xf32>, vector<128x384xf32>, vector<2x384xf32> -> vector<2x384xf32>
    %367 = vector.broadcast %14 : vector<1x384xf32> to vector<2x384xf32>
    %368 = arith.addf %366, %367 : vector<2x384xf32>
    %369 = vector.extract_strided_slice %368 {offsets = [0, 0], sizes = [2, 256], strides = [1, 1]} : vector<2x384xf32> to vector<2x256xf32>
    %370 = arith.addf %25, %369 : vector<2x256xf32>
    %371 = arith.negf %370 : vector<2x256xf32>
    %372 = math.exp %371 : vector<2x256xf32>
    %cst_79 = arith.constant 1.000000e+00 : f32
    %373 = vector.broadcast %cst_79 : f32 to vector<2x256xf32>
    %374 = arith.addf %373, %372 : vector<2x256xf32>
    %375 = arith.divf %373, %374 : vector<2x256xf32>
    %376 = vector.extract_strided_slice %375 {offsets = [0, 0], sizes = [2, 128], strides = [1, 1]} : vector<2x256xf32> to vector<2x128xf32>
    %377 = vector.extract_strided_slice %368 {offsets = [0, 256], sizes = [2, 128], strides = [1, 1]} : vector<2x384xf32> to vector<2x128xf32>
    %378 = arith.mulf %376, %377 : vector<2x128xf32>
    %379 = arith.addf %26, %378 : vector<2x128xf32>
    %380 = math.tanh %379 : vector<2x128xf32>
    %381 = vector.extract_strided_slice %375 {offsets = [0, 128], sizes = [2, 128], strides = [1, 1]} : vector<2x256xf32> to vector<2x128xf32>
    %cst_80 = arith.constant 1.000000e+00 : f32
    %382 = vector.broadcast %cst_80 : f32 to vector<2x128xf32>
    %383 = arith.subf %382, %381 : vector<2x128xf32>
    %384 = arith.mulf %383, %380 : vector<2x128xf32>
    %385 = arith.mulf %381, %339 : vector<2x128xf32>
    %386 = arith.addf %384, %385 : vector<2x128xf32>
    %cst_81 = arith.constant dense<0.000000e+00> : vector<2x384xf32>
    %387 = tpu.matmul %386, %30, %cst_81 {dimension_numbers = #tpu.dot_dimension_numbers<[1], [0], [0], [1], [0, 0, 1, 1], [], []>} : vector<2x128xf32>, vector<128x384xf32>, vector<2x384xf32> -> vector<2x384xf32>
    %388 = vector.broadcast %15 : vector<1x384xf32> to vector<2x384xf32>
    %389 = arith.addf %387, %388 : vector<2x384xf32>
    %cst_82 = arith.constant dense<0.000000e+00> : vector<2x384xf32>
    %390 = tpu.matmul %365, %32, %cst_82 {dimension_numbers = #tpu.dot_dimension_numbers<[1], [0], [0], [1], [0, 0, 1, 1], [], []>} : vector<2x128xf32>, vector<128x384xf32>, vector<2x384xf32> -> vector<2x384xf32>
    %391 = vector.broadcast %16 : vector<1x384xf32> to vector<2x384xf32>
    %392 = arith.addf %390, %391 : vector<2x384xf32>
    %393 = vector.extract_strided_slice %389 {offsets = [0, 0], sizes = [2, 256], strides = [1, 1]} : vector<2x384xf32> to vector<2x256xf32>
    %394 = vector.extract_strided_slice %392 {offsets = [0, 0], sizes = [2, 256], strides = [1, 1]} : vector<2x384xf32> to vector<2x256xf32>
    %395 = arith.addf %393, %394 : vector<2x256xf32>
    %396 = arith.negf %395 : vector<2x256xf32>
    %397 = math.exp %396 : vector<2x256xf32>
    %cst_83 = arith.constant 1.000000e+00 : f32
    %398 = vector.broadcast %cst_83 : f32 to vector<2x256xf32>
    %399 = arith.addf %398, %397 : vector<2x256xf32>
    %400 = arith.divf %398, %399 : vector<2x256xf32>
    %401 = vector.extract_strided_slice %389 {offsets = [0, 256], sizes = [2, 128], strides = [1, 1]} : vector<2x384xf32> to vector<2x128xf32>
    %402 = vector.extract_strided_slice %400 {offsets = [0, 0], sizes = [2, 128], strides = [1, 1]} : vector<2x256xf32> to vector<2x128xf32>
    %403 = vector.extract_strided_slice %392 {offsets = [0, 256], sizes = [2, 128], strides = [1, 1]} : vector<2x384xf32> to vector<2x128xf32>
    %404 = arith.mulf %402, %403 : vector<2x128xf32>
    %405 = arith.addf %401, %404 : vector<2x128xf32>
    %406 = math.tanh %405 : vector<2x128xf32>
    %407 = vector.extract_strided_slice %400 {offsets = [0, 128], sizes = [2, 128], strides = [1, 1]} : vector<2x256xf32> to vector<2x128xf32>
    %cst_84 = arith.constant 1.000000e+00 : f32
    %408 = vector.broadcast %cst_84 : f32 to vector<2x128xf32>
    %409 = arith.subf %408, %407 : vector<2x128xf32>
    %410 = arith.mulf %409, %406 : vector<2x128xf32>
    %411 = arith.mulf %407, %365 : vector<2x128xf32>
    %412 = arith.addf %410, %411 : vector<2x128xf32>
    %cst_85 = arith.constant dense<0.000000e+00> : vector<2x384xf32>
    %413 = tpu.matmul %412, %34, %cst_85 {dimension_numbers = #tpu.dot_dimension_numbers<[1], [0], [0], [1], [0, 0, 1, 1], [], []>} : vector<2x128xf32>, vector<128x384xf32>, vector<2x384xf32> -> vector<2x384xf32>
    %414 = vector.broadcast %17 : vector<1x384xf32> to vector<2x384xf32>
    %415 = arith.addf %413, %414 : vector<2x384xf32>
    %c0_86 = arith.constant 0 : index
    %c0_87 = arith.constant 0 : index
    %416 = vector.load %arg7[%c0_86, %c0_87] : memref<2x384xf32, #tpu.memory_space<vmem>>, vector<2x384xf32>
    tpu.vector_store %arg7[%c0_86, %c0_87], %415 {strides = array<i32>} : memref<2x384xf32, #tpu.memory_space<vmem>>, vector<2x384xf32>,
    return
  }
  func.func @transform_0(%arg0: i32) -> (i32, i32) {
    %c0_i32 = arith.constant 0 : i32
    %c0_i32_0 = arith.constant 0 : i32
    %c0_i32_1 = arith.constant 0 : i32
    return %c0_i32, %c0_i32_0 : i32, i32
  }
  func.func @transform_1(%arg0: i32) -> (i32, i32) {
    %c0_i32 = arith.constant 0 : i32
    %c0_i32_0 = arith.constant 0 : i32
    %c0_i32_1 = arith.constant 0 : i32
    return %c0_i32, %c0_i32_0 : i32, i32
  }
  func.func @transform_2(%arg0: i32) -> (i32, i32, i32) {
    %c0_i32 = arith.constant 0 : i32
    %c0_i32_0 = arith.constant 0 : i32
    %c0_i32_1 = arith.constant 0 : i32
    %c0_i32_2 = arith.constant 0 : i32
    return %c0_i32, %c0_i32_0, %c0_i32_1 : i32, i32, i32
  }
  func.func @transform_3(%arg0: i32) -> (i32, i32) {
    %c0_i32 = arith.constant 0 : i32
    %c0_i32_0 = arith.constant 0 : i32
    %c0_i32_1 = arith.constant 0 : i32
    return %c0_i32, %c0_i32_0 : i32, i32
  }
  func.func @transform_4(%arg0: i32) -> (i32, i32, i32) {
    %c0_i32 = arith.constant 0 : i32
    %c0_i32_0 = arith.constant 0 : i32
    %c0_i32_1 = arith.constant 0 : i32
    %c0_i32_2 = arith.constant 0 : i32
    return %c0_i32, %c0_i32_0, %c0_i32_1 : i32, i32, i32
  }
  func.func @transform_5(%arg0: i32) -> (i32, i32) {
    %c0_i32 = arith.constant 0 : i32
    %c0_i32_0 = arith.constant 0 : i32
    %c0_i32_1 = arith.constant 0 : i32
    return %c0_i32, %c0_i32_0 : i32, i32
  }
  func.func @transform_6(%arg0: i32) -> (i32, i32) {
    %c0_i32 = arith.constant 0 : i32
    %c0_i32_0 = arith.constant 0 : i32
    %c0_i32_1 = arith.constant 0 : i32
    return %c0_i32, %c0_i32_0 : i32, i32
  }
}

</mosaic_0001>

<llo_original>
// kernel: forward.1
$region0: #{forward.1}
  #allocation0 [shape = 'u32[]', space=smem, size = 0x4, offset = 0x4, fixed_abs, tag = 'smem constant byte address 0x4 - core index']
  #allocation1 [shape = 'u32[144,128]{1,0:T(1,128)}', space=vmem, size = 0x12000, scoped, tag = 'internal scratch']
  %s0 = inlined_call_operand.vmem [shape: f32[32,1024], index: 0, kind: input, shape index: {}]
  %s1 = inlined_call_operand.vmem [shape: f32[8,32], index: 1, kind: input, shape index: {}]
  %s2 = inlined_call_operand.vmem [shape: f32[2,2,1024], index: 2, kind: input, shape index: {}]
  %s3 = inlined_call_operand.vmem [shape: f32[16,384], index: 3, kind: input, shape index: {}]
  %s4 = inlined_call_operand.vmem [shape: f32[4,128,384], index: 4, kind: input, shape index: {}]
  %s5 = inlined_call_operand.vmem [shape: f32[8,384], index: 5, kind: input, shape index: {}]
  %s6 = inlined_call_operand.vmem [shape: f32[2,384], index: 6, kind: output, shape index: {}]
  %s7 = sld [smem:[#allocation0]]
  $region34: #{forward.1} parent=0
    _
  %s9 = ssub.s32 1, %s7
  %s10 = scalar_select 0, %s9, %s7
  // Predicated region
  $region2: #{forward.1} parent=0 // pred_check
    _
  $region3: #{forward.1} parent=0 // pred_check_branch
    %12 = sbr.rel (0) target = $region5
  $region4: #{forward.1} parent=0 // pred_region
    _
  $region5: #{forward.1} parent=0 // pred_fallthru
    _
  // Predicated region
  $region6: #{forward.1} parent=0 // pred_check
    _
  $region7: #{forward.1} parent=0 // pred_check_branch
    %14 = sbr.rel (0) target = $region9
  $region8: #{forward.1} parent=0 // pred_region
    _
  $region9: #{forward.1} parent=0 // pred_fallthru
    _
  // Predicated region
  $region10: #{forward.1} parent=0 // pred_check
    _
  $region11: #{forward.1} parent=0 // pred_check_branch
    %16 = sbr.rel (0) target = $region13
  $region12: #{forward.1} parent=0 // pred_region
    _
  $region13: #{forward.1} parent=0 // pred_fallthru
    _
  // Predicated region
  $region14: #{forward.1} parent=0 // pred_check
    _
  $region15: #{forward.1} parent=0 // pred_check_branch
    %18 = sbr.rel (0) target = $region17
  $region16: #{forward.1} parent=0 // pred_region
    _
  $region17: #{forward.1} parent=0 // pred_fallthru
    _
  // Predicated region
  $region18: #{forward.1} parent=0 // pred_check
    _
  $region19: #{forward.1} parent=0 // pred_check_branch
    %20 = sbr.rel (0) target = $region21
  $region20: #{forward.1} parent=0 // pred_region
    _
  $region21: #{forward.1} parent=0 // pred_fallthru
    _
  // Predicated region
  $region22: #{forward.1} parent=0 // pred_check
    _
  $region23: #{forward.1} parent=0 // pred_check_branch
    %22 = sbr.rel (0) target = $region25
  $region24: #{forward.1} parent=0 // pred_region
    _
  $region25: #{forward.1} parent=0 // pred_fallthru
    _
  %v23 = vld [vmem:[%s1] sm:$0xff]
  %v24 = vld [vmem:[%s0] sm:$0xff]
  %v25 = vld [vmem:[%s0 + $0x8] sm:$0xff]
  %v26 = vld [vmem:[%s0 + $0x10] sm:$0xff]
  %v27 = vld [vmem:[%s0 + $0x18] sm:$0xff]
  %v28 = vld [vmem:[%s0 + $0x20] sm:$0xff]
  %v29 = vld [vmem:[%s0 + $0x28] sm:$0xff]
  %v30 = vld [vmem:[%s0 + $0x30] sm:$0xff]
  %v31 = vld [vmem:[%s0 + $0x38] sm:$0xff]
  %v32 = vld [vmem:[%s0 + $0x40] sm:$0xff]
  %v33 = vld [vmem:[%s0 + $0x48] sm:$0xff]
  %v34 = vld [vmem:[%s0 + $0x50] sm:$0xff]
  %v35 = vld [vmem:[%s0 + $0x58] sm:$0xff]
  %v36 = vld [vmem:[%s0 + $0x60] sm:$0xff]
  %v37 = vld [vmem:[%s0 + $0x68] sm:$0xff]
  %v38 = vld [vmem:[%s0 + $0x70] sm:$0xff]
  %v39 = vld [vmem:[%s0 + $0x78] sm:$0xff]
  %v40 = vld [vmem:[%s0 + $0x80] sm:$0xff]
  %v41 = vld [vmem:[%s0 + $0x88] sm:$0xff]
  %v42 = vld [vmem:[%s0 + $0x90] sm:$0xff]
  %v43 = vld [vmem:[%s0 + $0x98] sm:$0xff]
  %v44 = vld [vmem:[%s0 + $0xa0] sm:$0xff]
  %v45 = vld [vmem:[%s0 + $0xa8] sm:$0xff]
  %v46 = vld [vmem:[%s0 + $0xb0] sm:$0xff]
  %v47 = vld [vmem:[%s0 + $0xb8] sm:$0xff]
  %v48 = vld [vmem:[%s0 + $0xc0] sm:$0xff]
  %v49 = vld [vmem:[%s0 + $0xc8] sm:$0xff]
  %v50 = vld [vmem:[%s0 + $0xd0] sm:$0xff]
  %v51 = vld [vmem:[%s0 + $0xd8] sm:$0xff]
  %v52 = vld [vmem:[%s0 + $0xe0] sm:$0xff]
  %v53 = vld [vmem:[%s0 + $0xe8] sm:$0xff]
  %v54 = vld [vmem:[%s0 + $0xf0] sm:$0xff]
  %v55 = vld [vmem:[%s0 + $0xf8] sm:$0xff]
  %vm56 = vcmask 261120
  %v58 = vsel %vm56, %v23, 0
  %60 = vmatprep.subr.mxu0 %v25
  %61 = vmatpush1.msra.mxu0 %v24
  %62 = vmatprep.subr.mxu0 %v33
  %63 = vmatpush1.msra.mxu0 %v32
  %64 = vmatprep.subr.mxu0 %v41
  %65 = vmatpush1.msra.mxu0 %v40
  %66 = vmatprep.subr.mxu0 %v49
  %67 = vmatpush1.msra.mxu0 %v48
  %68 = vmatprep.subr.mxu0 0.0
  %69 = vmatpush1.msra.mxu0 0.0
  %70 = vmatprep.subr.mxu0 0.0
  %71 = vmatpush1.msra.mxu0 0.0
  %72 = vmatprep.subr.mxu0 0.0
  %73 = vmatpush1.msra.mxu0 0.0
  %74 = vmatprep.subr.mxu0 0.0
  %75 = vmatpush1.msra.mxu0 0.0
  %76 = vmatprep.subr.mxu0 0.0
  %77 = vmatpush1.msra.mxu0 0.0
  %78 = vmatprep.subr.mxu0 0.0
  %79 = vmatpush1.msra.mxu0 0.0
  %80 = vmatprep.subr.mxu0 0.0
  %81 = vmatpush1.msra.mxu0 0.0
  %82 = vmatprep.subr.mxu0 0.0
  %83 = vmatpush1.msra.mxu0 0.0
  %84 = vmatprep.subr.mxu0 0.0
  %85 = vmatpush1.msra.mxu0 0.0
  %86 = vmatprep.subr.mxu0 0.0
  %87 = vmatpush1.msra.mxu0 0.0
  %88 = vmatprep.subr.mxu0 0.0
  %89 = vmatpush1.msra.mxu0 0.0
  %90 = vmatprep.subr.mxu0 0.0
  %91 = vmatpush1.msra.mxu0 0.0
  %92 = vmatprep.subr.mxu0 0.0
  %93 = vmatpush1.msra.mxu0 0.0
  %94 = vmatprep.subr.mxu0 0.0
  %95 = vmatpush1.msra.mxu0 0.0
  %96 = vmatprep.subr.mxu0 0.0
  %97 = vmatpush1.msra.mxu0 0.0
  %98 = vmatprep.subr.mxu0 0.0
  %99 = vmatpush1.msra.mxu0 0.0
  %100 = vmatprep.subr.mxu0 0.0
  %101 = vmatpush1.msra.mxu0 0.0
  %102 = vmatprep.subr.mxu0 0.0
  %103 = vmatpush1.msra.mxu0 0.0
  %104 = vmatprep.subr.mxu0 0.0
  %105 = vmatpush1.msra.mxu0 0.0
  %106 = vmatprep.subr.mxu0 0.0
  %107 = vmatpush1.msra.mxu0 0.0
  %108 = vmatprep.subr.mxu0 0.0
  %109 = vmatpush1.msra.mxu0 0.0
  %110 = vmatprep.subr.mxu0 0.0
  %111 = vmatpush1.msra.mxu0 0.0
  %112 = vmatprep.subr.mxu0 0.0
  %113 = vmatpush1.msra.mxu0 0.0
  %114 = vmatprep.subr.mxu0 0.0
  %115 = vmatpush1.msra.mxu0 0.0
  %116 = vmatprep.subr.mxu0 0.0
  %117 = vmatpush1.msra.mxu0 0.0
  %118 = vmatprep.subr.mxu0 0.0
  %119 = vmatpush1.msra.mxu0 0.0
  %120 = vmatprep.subr.mxu0 0.0
  %121 = vmatpush1.msra.mxu0 0.0
  %122 = vmatprep.subr.mxu0 0.0
  %123 = vmatpush1.msra.mxu0 0.0
  %124 = vmatprep.mubr.f32.mxu0 0.0
  %125 = vmatmul.mubr.f32.gmra.mrb[0].mxu0 %v58
  %v126 = vpop.f32.mrb[0].mxu0
  %v127 = vadd.f32 0.0, %v126
  %v128 = vpop.f32.mrb[0].mxu0
  %v129 = vadd.f32 0.0, %v128
  %130 = vdwg.mxu0
  %131 = vmatprep.subr.mxu0 %v27
  %132 = vmatpush1.msra.mxu0 %v26
  %133 = vmatprep.subr.mxu0 %v35
  %134 = vmatpush1.msra.mxu0 %v34
  %135 = vmatprep.subr.mxu0 %v43
  %136 = vmatpush1.msra.mxu0 %v42
  %137 = vmatprep.subr.mxu0 %v51
  %138 = vmatpush1.msra.mxu0 %v50
  %139 = vmatprep.subr.mxu0 0.0
  %140 = vmatpush1.msra.mxu0 0.0
  %141 = vmatprep.subr.mxu0 0.0
  %142 = vmatpush1.msra.mxu0 0.0
  %143 = vmatprep.subr.mxu0 0.0
  %144 = vmatpush1.msra.mxu0 0.0
  %145 = vmatprep.subr.mxu0 0.0
  %146 = vmatpush1.msra.mxu0 0.0
  %147 = vmatprep.subr.mxu0 0.0
  %148 = vmatpush1.msra.mxu0 0.0
  %149 = vmatprep.subr.mxu0 0.0
  %150 = vmatpush1.msra.mxu0 0.0
  %151 = vmatprep.subr.mxu0 0.0
  %152 = vmatpush1.msra.mxu0 0.0
  %153 = vmatprep.subr.mxu0 0.0
  %154 = vmatpush1.msra.mxu0 0.0
  %155 = vmatprep.subr.mxu0 0.0
  %156 = vmatpush1.msra.mxu0 0.0
  %157 = vmatprep.subr.mxu0 0.0
  %158 = vmatpush1.msra.mxu0 0.0
  %159 = vmatprep.subr.mxu0 0.0
  %160 = vmatpush1.msra.mxu0 0.0
  %161 = vmatprep.subr.mxu0 0.0
  %162 = vmatpush1.msra.mxu0 0.0
  %163 = vmatprep.subr.mxu0 0.0
  %164 = vmatpush1.msra.mxu0 0.0
  %165 = vmatprep.subr.mxu0 0.0
  %166 = vmatpush1.msra.mxu0 0.0
  %167 = vmatprep.subr.mxu0 0.0
  %168 = vmatpush1.msra.mxu0 0.0
  %169 = vmatprep.subr.mxu0 0.0
  %170 = vmatpush1.msra.mxu0 0.0
  %171 = vmatprep.subr.mxu0 0.0
  %172 = vmatpush1.msra.mxu0 0.0
  %173 = vmatprep.subr.mxu0 0.0
  %174 = vmatpush1.msra.mxu0 0.0
  %175 = vmatprep.subr.mxu0 0.0
  %176 = vmatpush1.msra.mxu0 0.0
  %177 = vmatprep.subr.mxu0 0.0
  %178 = vmatpush1.msra.mxu0 0.0
  %179 = vmatprep.subr.mxu0 0.0
  %180 = vmatpush1.msra.mxu0 0.0
  %181 = vmatprep.subr.mxu0 0.0
  %182 = vmatpush1.msra.mxu0 0.0
  %183 = vmatprep.subr.mxu0 0.0
  %184 = vmatpush1.msra.mxu0 0.0
  %185 = vmatprep.subr.mxu0 0.0
  %186 = vmatpush1.msra.mxu0 0.0
  %187 = vmatprep.subr.mxu0 0.0
  %188 = vmatpush1.msra.mxu0 0.0
  %189 = vmatprep.subr.mxu0 0.0
  %190 = vmatpush1.msra.mxu0 0.0
  %191 = vmatprep.subr.mxu0 0.0
  %192 = vmatpush1.msra.mxu0 0.0
  %193 = vmatprep.subr.mxu0 0.0
  %194 = vmatpush1.msra.mxu0 0.0
  %195 = vmatprep.mubr.f32.mxu0 0.0
  %196 = vmatmul.mubr.f32.gmra.mrb[0].mxu0 %v58
  %v197 = vpop.f32.mrb[0].mxu0
  %v198 = vadd.f32 0.0, %v197
  %v199 = vpop.f32.mrb[0].mxu0
  %v200 = vadd.f32 0.0, %v199
  %201 = vdwg.mxu0
  %202 = vmatprep.subr.mxu0 %v29
  %203 = vmatpush1.msra.mxu0 %v28
  %204 = vmatprep.subr.mxu0 %v37
  %205 = vmatpush1.msra.mxu0 %v36
  %206 = vmatprep.subr.mxu0 %v45
  %207 = vmatpush1.msra.mxu0 %v44
  %208 = vmatprep.subr.mxu0 %v53
  %209 = vmatpush1.msra.mxu0 %v52
  %210 = vmatprep.subr.mxu0 0.0
  %211 = vmatpush1.msra.mxu0 0.0
  %212 = vmatprep.subr.mxu0 0.0
  %213 = vmatpush1.msra.mxu0 0.0
  %214 = vmatprep.subr.mxu0 0.0
  %215 = vmatpush1.msra.mxu0 0.0
  %216 = vmatprep.subr.mxu0 0.0
  %217 = vmatpush1.msra.mxu0 0.0
  %218 = vmatprep.subr.mxu0 0.0
  %219 = vmatpush1.msra.mxu0 0.0
  %220 = vmatprep.subr.mxu0 0.0
  %221 = vmatpush1.msra.mxu0 0.0
  %222 = vmatprep.subr.mxu0 0.0
  %223 = vmatpush1.msra.mxu0 0.0
  %224 = vmatprep.subr.mxu0 0.0
  %225 = vmatpush1.msra.mxu0 0.0
  %226 = vmatprep.subr.mxu0 0.0
  %227 = vmatpush1.msra.mxu0 0.0
  %228 = vmatprep.subr.mxu0 0.0
  %229 = vmatpush1.msra.mxu0 0.0
  %230 = vmatprep.subr.mxu0 0.0
  %231 = vmatpush1.msra.mxu0 0.0
  %232 = vmatprep.subr.mxu0 0.0
  %233 = vmatpush1.msra.mxu0 0.0
  %234 = vmatprep.subr.mxu0 0.0
  %235 = vmatpush1.msra.mxu0 0.0
  %236 = vmatprep.subr.mxu0 0.0
  %237 = vmatpush1.msra.mxu0 0.0
  %238 = vmatprep.subr.mxu0 0.0
  %239 = vmatpush1.msra.mxu0 0.0
  %240 = vmatprep.subr.mxu0 0.0
  %241 = vmatpush1.msra.mxu0 0.0
  %242 = vmatprep.subr.mxu0 0.0
  %243 = vmatpush1.msra.mxu0 0.0
  %244 = vmatprep.subr.mxu0 0.0
  %245 = vmatpush1.msra.mxu0 0.0
  %246 = vmatprep.subr.mxu0 0.0
  %247 = vmatpush1.msra.mxu0 0.0
  %248 = vmatprep.subr.mxu0 0.0
  %249 = vmatpush1.msra.mxu0 0.0
  %250 = vmatprep.subr.mxu0 0.0
  %251 = vmatpush1.msra.mxu0 0.0
  %252 = vmatprep.subr.mxu0 0.0
  %253 = vmatpush1.msra.mxu0 0.0
  %254 = vmatprep.subr.mxu0 0.0
  %255 = vmatpush1.msra.mxu0 0.0
  %256 = vmatprep.subr.mxu0 0.0
  %257 = vmatpush1.msra.mxu0 0.0
  %258 = vmatprep.subr.mxu0 0.0
  %259 = vmatpush1.msra.mxu0 0.0
  %260 = vmatprep.subr.mxu0 0.0
  %261 = vmatpush1.msra.mxu0 0.0
  %262 = vmatprep.subr.mxu0 0.0
  %263 = vmatpush1.msra.mxu0 0.0
  %264 = vmatprep.subr.mxu0 0.0
  %265 = vmatpush1.msra.mxu0 0.0
  %266 = vmatprep.mubr.f32.mxu0 0.0
  %267 = vmatmul.mubr.f32.gmra.mrb[0].mxu0 %v58
  %v268 = vpop.f32.mrb[0].mxu0
  %v269 = vadd.f32 0.0, %v268
  %v270 = vpop.f32.mrb[0].mxu0
  %v271 = vadd.f32 0.0, %v270
  %272 = vdwg.mxu0
  %273 = vmatprep.subr.mxu0 %v31
  %274 = vmatpush1.msra.mxu0 %v30
  %275 = vmatprep.subr.mxu0 %v39
  %276 = vmatpush1.msra.mxu0 %v38
  %277 = vmatprep.subr.mxu0 %v47
  %278 = vmatpush1.msra.mxu0 %v46
  %279 = vmatprep.subr.mxu0 %v55
  %280 = vmatpush1.msra.mxu0 %v54
  %281 = vmatprep.subr.mxu0 0.0
  %282 = vmatpush1.msra.mxu0 0.0
  %283 = vmatprep.subr.mxu0 0.0
  %284 = vmatpush1.msra.mxu0 0.0
  %285 = vmatprep.subr.mxu0 0.0
  %286 = vmatpush1.msra.mxu0 0.0
  %287 = vmatprep.subr.mxu0 0.0
  %288 = vmatpush1.msra.mxu0 0.0
  %289 = vmatprep.subr.mxu0 0.0
  %290 = vmatpush1.msra.mxu0 0.0
  %291 = vmatprep.subr.mxu0 0.0
  %292 = vmatpush1.msra.mxu0 0.0
  %293 = vmatprep.subr.mxu0 0.0
  %294 = vmatpush1.msra.mxu0 0.0
  %295 = vmatprep.subr.mxu0 0.0
  %296 = vmatpush1.msra.mxu0 0.0
  %297 = vmatprep.subr.mxu0 0.0
  %298 = vmatpush1.msra.mxu0 0.0
  %299 = vmatprep.subr.mxu0 0.0
  %300 = vmatpush1.msra.mxu0 0.0
  %301 = vmatprep.subr.mxu0 0.0
  %302 = vmatpush1.msra.mxu0 0.0
  %303 = vmatprep.subr.mxu0 0.0
  %304 = vmatpush1.msra.mxu0 0.0
  %305 = vmatprep.subr.mxu0 0.0
  %306 = vmatpush1.msra.mxu0 0.0
  %307 = vmatprep.subr.mxu0 0.0
  %308 = vmatpush1.msra.mxu0 0.0
  %309 = vmatprep.subr.mxu0 0.0
  %310 = vmatpush1.msra.mxu0 0.0
  %311 = vmatprep.subr.mxu0 0.0
  %312 = vmatpush1.msra.mxu0 0.0
  %313 = vmatprep.subr.mxu0 0.0
  %314 = vmatpush1.msra.mxu0 0.0
  %315 = vmatprep.subr.mxu0 0.0
  %316 = vmatpush1.msra.mxu0 0.0
  %317 = vmatprep.subr.mxu0 0.0
  %318 = vmatpush1.msra.mxu0 0.0
  %319 = vmatprep.subr.mxu0 0.0
  %320 = vmatpush1.msra.mxu0 0.0
  %321 = vmatprep.subr.mxu0 0.0
  %322 = vmatpush1.msra.mxu0 0.0
  %323 = vmatprep.subr.mxu0 0.0
  %324 = vmatpush1.msra.mxu0 0.0
  %325 = vmatprep.subr.mxu0 0.0
  %326 = vmatpush1.msra.mxu0 0.0
  %327 = vmatprep.subr.mxu0 0.0
  %328 = vmatpush1.msra.mxu0 0.0
  %329 = vmatprep.subr.mxu0 0.0
  %330 = vmatpush1.msra.mxu0 0.0
  %331 = vmatprep.subr.mxu0 0.0
  %332 = vmatpush1.msra.mxu0 0.0
  %333 = vmatprep.subr.mxu0 0.0
  %334 = vmatpush1.msra.mxu0 0.0
  %335 = vmatprep.subr.mxu0 0.0
  %336 = vmatpush1.msra.mxu0 0.0
  %337 = vmatprep.mubr.f32.mxu0 0.0
  %338 = vmatmul.mubr.f32.gmra.mrb[0].mxu0 %v58
  %v339 = vpop.f32.mrb[0].mxu0
  %v340 = vadd.f32 0.0, %v339
  %v341 = vpop.f32.mrb[0].mxu0
  %v342 = vadd.f32 0.0, %v341
  %343 = vdwg.mxu0
  %v344 = vmax.f32 %v127, 0.0
  %v345 = vmax.f32 %v129, 0.0
  %v346 = vmax.f32 %v198, 0.0
  %v347 = vmax.f32 %v200, 0.0
  %v348 = vmax.f32 %v269, 0.0
  %v349 = vmax.f32 %v271, 0.0
  %v350 = vmax.f32 %v340, 0.0
  %v351 = vmax.f32 %v342, 0.0
  %v352 = vld [vmem:[%s2] sm:$0xff]
  %v353 = vld [vmem:[%s2 + $0x8] sm:$0xff]
  %v356 = vcombine.high %v352, %v352
  %v358 = vunpack.c.l.s4 1983009808
  %v359 = vunpack.c.0.s8 %v358
  %v360 = vlaneseq
  %v361 = vshrl.u32 %v360, 7
  %v362 = vsub.s32 %v359, %v361
  %v363 = vrot.slane %v352, %v362
  %v365 = vunpack.c.l.s4 1983009808
  %v366 = vunpack.c.0.s8 %v365
  %v367 = vlaneseq
  %v368 = vshrl.u32 %v367, 7
  %v369 = vsub.s32 %v366, %v368
  %v370 = vrot.slane %v356, %v369
  %v371 = vcombine.high %v363, %v363
  %v372 = vcombine.high %v370, %v370
  %v373 = vcombine.high %v353, %v353
  %v375 = vunpack.c.l.s4 1983009808
  %v376 = vunpack.c.0.s8 %v375
  %v377 = vlaneseq
  %v378 = vshrl.u32 %v377, 7
  %v379 = vsub.s32 %v376, %v378
  %v380 = vrot.slane %v353, %v379
  %v382 = vunpack.c.l.s4 1983009808
  %v383 = vunpack.c.0.s8 %v382
  %v384 = vlaneseq
  %v385 = vshrl.u32 %v384, 7
  %v386 = vsub.s32 %v383, %v385
  %v387 = vrot.slane %v373, %v386
  %v388 = vcombine.high %v380, %v380
  %v389 = vcombine.high %v387, %v387
  %398 = vmatprep.subr.mxu0 %v345
  %399 = vmatpush1.xpose.msra.mxu0 %v344
  %400 = vmatprep.subr.mxu0 0.0
  %401 = vmatpush1.xpose.msra.mxu0 0.0
  %402 = vmatprep.subr.mxu0 0.0
  %403 = vmatpush1.xpose.msra.mxu0 0.0
  %404 = vmatprep.subr.mxu0 0.0
  %405 = vmatpush1.xpose.msra.mxu0 0.0
  %406 = vmatprep.subr.mxu0 0.0
  %407 = vmatpush1.xpose.msra.mxu0 0.0
  %408 = vmatprep.subr.mxu0 0.0
  %409 = vmatpush1.xpose.msra.mxu0 0.0
  %410 = vmatprep.subr.mxu0 0.0
  %411 = vmatpush1.xpose.msra.mxu0 0.0
  %412 = vmatprep.subr.mxu0 0.0
  %413 = vmatpush1.xpose.msra.mxu0 0.0
  %414 = vmatprep.subr.mxu0 0.0
  %415 = vmatpush1.xpose.msra.mxu0 0.0
  %416 = vmatprep.subr.mxu0 0.0
  %417 = vmatpush1.xpose.msra.mxu0 0.0
  %418 = vmatprep.subr.mxu0 0.0
  %419 = vmatpush1.xpose.msra.mxu0 0.0
  %420 = vmatprep.subr.mxu0 0.0
  %421 = vmatpush1.xpose.msra.mxu0 0.0
  %422 = vmatprep.subr.mxu0 0.0
  %423 = vmatpush1.xpose.msra.mxu0 0.0
  %424 = vmatprep.subr.mxu0 0.0
  %425 = vmatpush1.xpose.msra.mxu0 0.0
  %426 = vmatprep.subr.mxu0 0.0
  %427 = vmatpush1.xpose.msra.mxu0 0.0
  %428 = vmatprep.subr.mxu0 0.0
  %429 = vmatpush1.xpose.msra.mxu0 0.0
  %430 = vmatprep.subr.mxu0 0.0
  %431 = vmatpush1.xpose.msra.mxu0 0.0
  %432 = vmatprep.subr.mxu0 0.0
  %433 = vmatpush1.xpose.msra.mxu0 0.0
  %434 = vmatprep.subr.mxu0 0.0
  %435 = vmatpush1.xpose.msra.mxu0 0.0
  %436 = vmatprep.subr.mxu0 0.0
  %437 = vmatpush1.xpose.msra.mxu0 0.0
  %438 = vmatprep.subr.mxu0 0.0
  %439 = vmatpush1.xpose.msra.mxu0 0.0
  %440 = vmatprep.subr.mxu0 0.0
  %441 = vmatpush1.xpose.msra.mxu0 0.0
  %442 = vmatprep.subr.mxu0 0.0
  %443 = vmatpush1.xpose.msra.mxu0 0.0
  %444 = vmatprep.subr.mxu0 0.0
  %445 = vmatpush1.xpose.msra.mxu0 0.0
  %446 = vmatprep.subr.mxu0 0.0
  %447 = vmatpush1.xpose.msra.mxu0 0.0
  %448 = vmatprep.subr.mxu0 0.0
  %449 = vmatpush1.xpose.msra.mxu0 0.0
  %450 = vmatprep.subr.mxu0 0.0
  %451 = vmatpush1.xpose.msra.mxu0 0.0
  %452 = vmatprep.subr.mxu0 0.0
  %453 = vmatpush1.xpose.msra.mxu0 0.0
  %454 = vmatprep.subr.mxu0 0.0
  %455 = vmatpush1.xpose.msra.mxu0 0.0
  %456 = vmatprep.subr.mxu0 0.0
  %457 = vmatpush1.xpose.msra.mxu0 0.0
  %458 = vmatprep.subr.mxu0 0.0
  %459 = vmatpush1.xpose.msra.mxu0 0.0
  %460 = vmatprep.subr.mxu0 0.0
  %461 = vmatpush1.xpose.msra.mxu0 0.0
  %462 = vmatprep.mubr.f32.mxu0 %v371
  %463 = vmatmul.mubr.f32.gmra.mrb[0].mxu0 %v363
  %v464 = vpop.f32.mrb[0].mxu0
  %v465 = vadd.f32 0.0, %v464
  %v466 = vpop.f32.mrb[0].mxu0
  %467 = vdwg.mxu0
  %468 = vmatprep.subr.mxu0 %v347
  %469 = vmatpush1.xpose.msra.mxu0 %v346
  %470 = vmatprep.subr.mxu0 0.0
  %471 = vmatpush1.xpose.msra.mxu0 0.0
  %472 = vmatprep.subr.mxu0 0.0
  %473 = vmatpush1.xpose.msra.mxu0 0.0
  %474 = vmatprep.subr.mxu0 0.0
  %475 = vmatpush1.xpose.msra.mxu0 0.0
  %476 = vmatprep.subr.mxu0 0.0
  %477 = vmatpush1.xpose.msra.mxu0 0.0
  %478 = vmatprep.subr.mxu0 0.0
  %479 = vmatpush1.xpose.msra.mxu0 0.0
  %480 = vmatprep.subr.mxu0 0.0
  %481 = vmatpush1.xpose.msra.mxu0 0.0
  %482 = vmatprep.subr.mxu0 0.0
  %483 = vmatpush1.xpose.msra.mxu0 0.0
  %484 = vmatprep.subr.mxu0 0.0
  %485 = vmatpush1.xpose.msra.mxu0 0.0
  %486 = vmatprep.subr.mxu0 0.0
  %487 = vmatpush1.xpose.msra.mxu0 0.0
  %488 = vmatprep.subr.mxu0 0.0
  %489 = vmatpush1.xpose.msra.mxu0 0.0
  %490 = vmatprep.subr.mxu0 0.0
  %491 = vmatpush1.xpose.msra.mxu0 0.0
  %492 = vmatprep.subr.mxu0 0.0
  %493 = vmatpush1.xpose.msra.mxu0 0.0
  %494 = vmatprep.subr.mxu0 0.0
  %495 = vmatpush1.xpose.msra.mxu0 0.0
  %496 = vmatprep.subr.mxu0 0.0
  %497 = vmatpush1.xpose.msra.mxu0 0.0
  %498 = vmatprep.subr.mxu0 0.0
  %499 = vmatpush1.xpose.msra.mxu0 0.0
  %500 = vmatprep.subr.mxu0 0.0
  %501 = vmatpush1.xpose.msra.mxu0 0.0
  %502 = vmatprep.subr.mxu0 0.0
  %503 = vmatpush1.xpose.msra.mxu0 0.0
  %504 = vmatprep.subr.mxu0 0.0
  %505 = vmatpush1.xpose.msra.mxu0 0.0
  %506 = vmatprep.subr.mxu0 0.0
  %507 = vmatpush1.xpose.msra.mxu0 0.0
  %508 = vmatprep.subr.mxu0 0.0
  %509 = vmatpush1.xpose.msra.mxu0 0.0
  %510 = vmatprep.subr.mxu0 0.0
  %511 = vmatpush1.xpose.msra.mxu0 0.0
  %512 = vmatprep.subr.mxu0 0.0
  %513 = vmatpush1.xpose.msra.mxu0 0.0
  %514 = vmatprep.subr.mxu0 0.0
  %515 = vmatpush1.xpose.msra.mxu0 0.0
  %516 = vmatprep.subr.mxu0 0.0
  %517 = vmatpush1.xpose.msra.mxu0 0.0
  %518 = vmatprep.subr.mxu0 0.0
  %519 = vmatpush1.xpose.msra.mxu0 0.0
  %520 = vmatprep.subr.mxu0 0.0
  %521 = vmatpush1.xpose.msra.mxu0 0.0
  %522 = vmatprep.subr.mxu0 0.0
  %523 = vmatpush1.xpose.msra.mxu0 0.0
  %524 = vmatprep.subr.mxu0 0.0
  %525 = vmatpush1.xpose.msra.mxu0 0.0
  %526 = vmatprep.subr.mxu0 0.0
  %527 = vmatpush1.xpose.msra.mxu0 0.0
  %528 = vmatprep.subr.mxu0 0.0
  %529 = vmatpush1.xpose.msra.mxu0 0.0
  %530 = vmatprep.subr.mxu0 0.0
  %531 = vmatpush1.xpose.msra.mxu0 0.0
  %532 = vmatprep.mubr.f32.mxu0 %v372
  %533 = vmatmul.mubr.f32.gmra.mrb[0].mxu0 %v370
  %v534 = vpop.f32.mrb[0].mxu0
  %v535 = vadd.f32 %v465, %v534
  %v536 = vpop.f32.mrb[0].mxu0
  %537 = vdwg.mxu0
  %538 = vmatprep.subr.mxu0 %v349
  %539 = vmatpush1.xpose.msra.mxu0 %v348
  %540 = vmatprep.subr.mxu0 0.0
  %541 = vmatpush1.xpose.msra.mxu0 0.0
  %542 = vmatprep.subr.mxu0 0.0
  %543 = vmatpush1.xpose.msra.mxu0 0.0
  %544 = vmatprep.subr.mxu0 0.0
  %545 = vmatpush1.xpose.msra.mxu0 0.0
  %546 = vmatprep.subr.mxu0 0.0
  %547 = vmatpush1.xpose.msra.mxu0 0.0
  %548 = vmatprep.subr.mxu0 0.0
  %549 = vmatpush1.xpose.msra.mxu0 0.0
  %550 = vmatprep.subr.mxu0 0.0
  %551 = vmatpush1.xpose.msra.mxu0 0.0
  %552 = vmatprep.subr.mxu0 0.0
  %553 = vmatpush1.xpose.msra.mxu0 0.0
  %554 = vmatprep.subr.mxu0 0.0
  %555 = vmatpush1.xpose.msra.mxu0 0.0
  %556 = vmatprep.subr.mxu0 0.0
  %557 = vmatpush1.xpose.msra.mxu0 0.0
  %558 = vmatprep.subr.mxu0 0.0
  %559 = vmatpush1.xpose.msra.mxu0 0.0
  %560 = vmatprep.subr.mxu0 0.0
  %561 = vmatpush1.xpose.msra.mxu0 0.0
  %562 = vmatprep.subr.mxu0 0.0
  %563 = vmatpush1.xpose.msra.mxu0 0.0
  %564 = vmatprep.subr.mxu0 0.0
  %565 = vmatpush1.xpose.msra.mxu0 0.0
  %566 = vmatprep.subr.mxu0 0.0
  %567 = vmatpush1.xpose.msra.mxu0 0.0
  %568 = vmatprep.subr.mxu0 0.0
  %569 = vmatpush1.xpose.msra.mxu0 0.0
  %570 = vmatprep.subr.mxu0 0.0
  %571 = vmatpush1.xpose.msra.mxu0 0.0
  %572 = vmatprep.subr.mxu0 0.0
  %573 = vmatpush1.xpose.msra.mxu0 0.0
  %574 = vmatprep.subr.mxu0 0.0
  %575 = vmatpush1.xpose.msra.mxu0 0.0
  %576 = vmatprep.subr.mxu0 0.0
  %577 = vmatpush1.xpose.msra.mxu0 0.0
  %578 = vmatprep.subr.mxu0 0.0
  %579 = vmatpush1.xpose.msra.mxu0 0.0
  %580 = vmatprep.subr.mxu0 0.0
  %581 = vmatpush1.xpose.msra.mxu0 0.0
  %582 = vmatprep.subr.mxu0 0.0
  %583 = vmatpush1.xpose.msra.mxu0 0.0
  %584 = vmatprep.subr.mxu0 0.0
  %585 = vmatpush1.xpose.msra.mxu0 0.0
  %586 = vmatprep.subr.mxu0 0.0
  %587 = vmatpush1.xpose.msra.mxu0 0.0
  %588 = vmatprep.subr.mxu0 0.0
  %589 = vmatpush1.xpose.msra.mxu0 0.0
  %590 = vmatprep.subr.mxu0 0.0
  %591 = vmatpush1.xpose.msra.mxu0 0.0
  %592 = vmatprep.subr.mxu0 0.0
  %593 = vmatpush1.xpose.msra.mxu0 0.0
  %594 = vmatprep.subr.mxu0 0.0
  %595 = vmatpush1.xpose.msra.mxu0 0.0
  %596 = vmatprep.subr.mxu0 0.0
  %597 = vmatpush1.xpose.msra.mxu0 0.0
  %598 = vmatprep.subr.mxu0 0.0
  %599 = vmatpush1.xpose.msra.mxu0 0.0
  %600 = vmatprep.subr.mxu0 0.0
  %601 = vmatpush1.xpose.msra.mxu0 0.0
  %602 = vmatprep.mubr.f32.mxu0 %v388
  %603 = vmatmul.mubr.f32.gmra.mrb[0].mxu0 %v380
  %v604 = vpop.f32.mrb[0].mxu0
  %v605 = vadd.f32 %v535, %v604
  %v606 = vpop.f32.mrb[0].mxu0
  %607 = vdwg.mxu0
  %608 = vmatprep.subr.mxu0 %v351
  %609 = vmatpush1.xpose.msra.mxu0 %v350
  %610 = vmatprep.subr.mxu0 0.0
  %611 = vmatpush1.xpose.msra.mxu0 0.0
  %612 = vmatprep.subr.mxu0 0.0
  %613 = vmatpush1.xpose.msra.mxu0 0.0
  %614 = vmatprep.subr.mxu0 0.0
  %615 = vmatpush1.xpose.msra.mxu0 0.0
  %616 = vmatprep.subr.mxu0 0.0
  %617 = vmatpush1.xpose.msra.mxu0 0.0
  %618 = vmatprep.subr.mxu0 0.0
  %619 = vmatpush1.xpose.msra.mxu0 0.0
  %620 = vmatprep.subr.mxu0 0.0
  %621 = vmatpush1.xpose.msra.mxu0 0.0
  %622 = vmatprep.subr.mxu0 0.0
  %623 = vmatpush1.xpose.msra.mxu0 0.0
  %624 = vmatprep.subr.mxu0 0.0
  %625 = vmatpush1.xpose.msra.mxu0 0.0
  %626 = vmatprep.subr.mxu0 0.0
  %627 = vmatpush1.xpose.msra.mxu0 0.0
  %628 = vmatprep.subr.mxu0 0.0
  %629 = vmatpush1.xpose.msra.mxu0 0.0
  %630 = vmatprep.subr.mxu0 0.0
  %631 = vmatpush1.xpose.msra.mxu0 0.0
  %632 = vmatprep.subr.mxu0 0.0
  %633 = vmatpush1.xpose.msra.mxu0 0.0
  %634 = vmatprep.subr.mxu0 0.0
  %635 = vmatpush1.xpose.msra.mxu0 0.0
  %636 = vmatprep.subr.mxu0 0.0
  %637 = vmatpush1.xpose.msra.mxu0 0.0
  %638 = vmatprep.subr.mxu0 0.0
  %639 = vmatpush1.xpose.msra.mxu0 0.0
  %640 = vmatprep.subr.mxu0 0.0
  %641 = vmatpush1.xpose.msra.mxu0 0.0
  %642 = vmatprep.subr.mxu0 0.0
  %643 = vmatpush1.xpose.msra.mxu0 0.0
  %644 = vmatprep.subr.mxu0 0.0
  %645 = vmatpush1.xpose.msra.mxu0 0.0
  %646 = vmatprep.subr.mxu0 0.0
  %647 = vmatpush1.xpose.msra.mxu0 0.0
  %648 = vmatprep.subr.mxu0 0.0
  %649 = vmatpush1.xpose.msra.mxu0 0.0
  %650 = vmatprep.subr.mxu0 0.0
  %651 = vmatpush1.xpose.msra.mxu0 0.0
  %652 = vmatprep.subr.mxu0 0.0
  %653 = vmatpush1.xpose.msra.mxu0 0.0
  %654 = vmatprep.subr.mxu0 0.0
  %655 = vmatpush1.xpose.msra.mxu0 0.0
  %656 = vmatprep.subr.mxu0 0.0
  %657 = vmatpush1.xpose.msra.mxu0 0.0
  %658 = vmatprep.subr.mxu0 0.0
  %659 = vmatpush1.xpose.msra.mxu0 0.0
  %660 = vmatprep.subr.mxu0 0.0
  %661 = vmatpush1.xpose.msra.mxu0 0.0
  %662 = vmatprep.subr.mxu0 0.0
  %663 = vmatpush1.xpose.msra.mxu0 0.0
  %664 = vmatprep.subr.mxu0 0.0
  %665 = vmatpush1.xpose.msra.mxu0 0.0
  %666 = vmatprep.subr.mxu0 0.0
  %667 = vmatpush1.xpose.msra.mxu0 0.0
  %668 = vmatprep.subr.mxu0 0.0
  %669 = vmatpush1.xpose.msra.mxu0 0.0
  %670 = vmatprep.subr.mxu0 0.0
  %671 = vmatpush1.xpose.msra.mxu0 0.0
  %672 = vmatprep.mubr.f32.mxu0 %v389
  %673 = vmatmul.mubr.f32.gmra.mrb[0].mxu0 %v387
  %v674 = vpop.f32.mrb[0].mxu0
  %v675 = vadd.f32 %v605, %v674
  %v676 = vpop.f32.mrb[0].mxu0
  %677 = vdwg.mxu0
  %s678 = scalar_lea.vmem %s2, 16
  %v679 = vld [vmem:[%s678] sm:$0xff]
  %v680 = vld [vmem:[%s678 + $0x8] sm:$0xff]
  %v683 = vcombine.high %v679, %v679
  %v685 = vunpack.c.l.s4 1983009808
  %v686 = vunpack.c.0.s8 %v685
  %v687 = vlaneseq
  %v688 = vshrl.u32 %v687, 7
  %v689 = vsub.s32 %v686, %v688
  %v690 = vrot.slane %v679, %v689
  %v692 = vunpack.c.l.s4 1983009808
  %v693 = vunpack.c.0.s8 %v692
  %v694 = vlaneseq
  %v695 = vshrl.u32 %v694, 7
  %v696 = vsub.s32 %v693, %v695
  %v697 = vrot.slane %v683, %v696
  %v698 = vcombine.high %v690, %v690
  %v699 = vcombine.high %v697, %v697
  %v700 = vcombine.high %v680, %v680
  %v702 = vunpack.c.l.s4 1983009808
  %v703 = vunpack.c.0.s8 %v702
  %v704 = vlaneseq
  %v705 = vshrl.u32 %v704, 7
  %v706 = vsub.s32 %v703, %v705
  %v707 = vrot.slane %v680, %v706
  %v709 = vunpack.c.l.s4 1983009808
  %v710 = vunpack.c.0.s8 %v709
  %v711 = vlaneseq
  %v712 = vshrl.u32 %v711, 7
  %v713 = vsub.s32 %v710, %v712
  %v714 = vrot.slane %v700, %v713
  %v715 = vcombine.high %v707, %v707
  %v716 = vcombine.high %v714, %v714
  %725 = vmatprep.subr.mxu0 %v345
  %726 = vmatpush1.xpose.msra.mxu0 %v344
  %727 = vmatprep.subr.mxu0 0.0
  %728 = vmatpush1.xpose.msra.mxu0 0.0
  %729 = vmatprep.subr.mxu0 0.0
  %730 = vmatpush1.xpose.msra.mxu0 0.0
  %731 = vmatprep.subr.mxu0 0.0
  %732 = vmatpush1.xpose.msra.mxu0 0.0
  %733 = vmatprep.subr.mxu0 0.0
  %734 = vmatpush1.xpose.msra.mxu0 0.0
  %735 = vmatprep.subr.mxu0 0.0
  %736 = vmatpush1.xpose.msra.mxu0 0.0
  %737 = vmatprep.subr.mxu0 0.0
  %738 = vmatpush1.xpose.msra.mxu0 0.0
  %739 = vmatprep.subr.mxu0 0.0
  %740 = vmatpush1.xpose.msra.mxu0 0.0
  %741 = vmatprep.subr.mxu0 0.0
  %742 = vmatpush1.xpose.msra.mxu0 0.0
  %743 = vmatprep.subr.mxu0 0.0
  %744 = vmatpush1.xpose.msra.mxu0 0.0
  %745 = vmatprep.subr.mxu0 0.0
  %746 = vmatpush1.xpose.msra.mxu0 0.0
  %747 = vmatprep.subr.mxu0 0.0
  %748 = vmatpush1.xpose.msra.mxu0 0.0
  %749 = vmatprep.subr.mxu0 0.0
  %750 = vmatpush1.xpose.msra.mxu0 0.0
  %751 = vmatprep.subr.mxu0 0.0
  %752 = vmatpush1.xpose.msra.mxu0 0.0
  %753 = vmatprep.subr.mxu0 0.0
  %754 = vmatpush1.xpose.msra.mxu0 0.0
  %755 = vmatprep.subr.mxu0 0.0
  %756 = vmatpush1.xpose.msra.mxu0 0.0
  %757 = vmatprep.subr.mxu0 0.0
  %758 = vmatpush1.xpose.msra.mxu0 0.0
  %759 = vmatprep.subr.mxu0 0.0
  %760 = vmatpush1.xpose.msra.mxu0 0.0
  %761 = vmatprep.subr.mxu0 0.0
  %762 = vmatpush1.xpose.msra.mxu0 0.0
  %763 = vmatprep.subr.mxu0 0.0
  %764 = vmatpush1.xpose.msra.mxu0 0.0
  %765 = vmatprep.subr.mxu0 0.0
  %766 = vmatpush1.xpose.msra.mxu0 0.0
  %767 = vmatprep.subr.mxu0 0.0
  %768 = vmatpush1.xpose.msra.mxu0 0.0
  %769 = vmatprep.subr.mxu0 0.0
  %770 = vmatpush1.xpose.msra.mxu0 0.0
  %771 = vmatprep.subr.mxu0 0.0
  %772 = vmatpush1.xpose.msra.mxu0 0.0
  %773 = vmatprep.subr.mxu0 0.0
  %774 = vmatpush1.xpose.msra.mxu0 0.0
  %775 = vmatprep.subr.mxu0 0.0
  %776 = vmatpush1.xpose.msra.mxu0 0.0
  %777 = vmatprep.subr.mxu0 0.0
  %778 = vmatpush1.xpose.msra.mxu0 0.0
  %779 = vmatprep.subr.mxu0 0.0
  %780 = vmatpush1.xpose.msra.mxu0 0.0
  %781 = vmatprep.subr.mxu0 0.0
  %782 = vmatpush1.xpose.msra.mxu0 0.0
  %783 = vmatprep.subr.mxu0 0.0
  %784 = vmatpush1.xpose.msra.mxu0 0.0
  %785 = vmatprep.subr.mxu0 0.0
  %786 = vmatpush1.xpose.msra.mxu0 0.0
  %787 = vmatprep.subr.mxu0 0.0
  %788 = vmatpush1.xpose.msra.mxu0 0.0
  %789 = vmatprep.mubr.f32.mxu0 %v698
  %790 = vmatmul.mubr.f32.gmra.mrb[0].mxu0 %v690
  %v791 = vpop.f32.mrb[0].mxu0
  %v792 = vadd.f32 0.0, %v791
  %v793 = vpop.f32.mrb[0].mxu0
  %794 = vdwg.mxu0
  %795 = vmatprep.subr.mxu0 %v347
  %796 = vmatpush1.xpose.msra.mxu0 %v346
  %797 = vmatprep.subr.mxu0 0.0
  %798 = vmatpush1.xpose.msra.mxu0 0.0
  %799 = vmatprep.subr.mxu0 0.0
  %800 = vmatpush1.xpose.msra.mxu0 0.0
  %801 = vmatprep.subr.mxu0 0.0
  %802 = vmatpush1.xpose.msra.mxu0 0.0
  %803 = vmatprep.subr.mxu0 0.0
  %804 = vmatpush1.xpose.msra.mxu0 0.0
  %805 = vmatprep.subr.mxu0 0.0
  %806 = vmatpush1.xpose.msra.mxu0 0.0
  %807 = vmatprep.subr.mxu0 0.0
  %808 = vmatpush1.xpose.msra.mxu0 0.0
  %809 = vmatprep.subr.mxu0 0.0
  %810 = vmatpush1.xpose.msra.mxu0 0.0
  %811 = vmatprep.subr.mxu0 0.0
  %812 = vmatpush1.xpose.msra.mxu0 0.0
  %813 = vmatprep.subr.mxu0 0.0
  %814 = vmatpush1.xpose.msra.mxu0 0.0
  %815 = vmatprep.subr.mxu0 0.0
  %816 = vmatpush1.xpose.msra.mxu0 0.0
  %817 = vmatprep.subr.mxu0 0.0
  %818 = vmatpush1.xpose.msra.mxu0 0.0
  %819 = vmatprep.subr.mxu0 0.0
  %820 = vmatpush1.xpose.msra.mxu0 0.0
  %821 = vmatprep.subr.mxu0 0.0
  %822 = vmatpush1.xpose.msra.mxu0 0.0
  %823 = vmatprep.subr.mxu0 0.0
  %824 = vmatpush1.xpose.msra.mxu0 0.0
  %825 = vmatprep.subr.mxu0 0.0
  %826 = vmatpush1.xpose.msra.mxu0 0.0
  %827 = vmatprep.subr.mxu0 0.0
  %828 = vmatpush1.xpose.msra.mxu0 0.0
  %829 = vmatprep.subr.mxu0 0.0
  %830 = vmatpush1.xpose.msra.mxu0 0.0
  %831 = vmatprep.subr.mxu0 0.0
  %832 = vmatpush1.xpose.msra.mxu0 0.0
  %833 = vmatprep.subr.mxu0 0.0
  %834 = vmatpush1.xpose.msra.mxu0 0.0
  %835 = vmatprep.subr.mxu0 0.0
  %836 = vmatpush1.xpose.msra.mxu0 0.0
  %837 = vmatprep.subr.mxu0 0.0
  %838 = vmatpush1.xpose.msra.mxu0 0.0
  %839 = vmatprep.subr.mxu0 0.0
  %840 = vmatpush1.xpose.msra.mxu0 0.0
  %841 = vmatprep.subr.mxu0 0.0
  %842 = vmatpush1.xpose.msra.mxu0 0.0
  %843 = vmatprep.subr.mxu0 0.0
  %844 = vmatpush1.xpose.msra.mxu0 0.0
  %845 = vmatprep.subr.mxu0 0.0
  %846 = vmatpush1.xpose.msra.mxu0 0.0
  %847 = vmatprep.subr.mxu0 0.0
  %848 = vmatpush1.xpose.msra.mxu0 0.0
  %849 = vmatprep.subr.mxu0 0.0
  %850 = vmatpush1.xpose.msra.mxu0 0.0
  %851 = vmatprep.subr.mxu0 0.0
  %852 = vmatpush1.xpose.msra.mxu0 0.0
  %853 = vmatprep.subr.mxu0 0.0
  %854 = vmatpush1.xpose.msra.mxu0 0.0
  %855 = vmatprep.subr.mxu0 0.0
  %856 = vmatpush1.xpose.msra.mxu0 0.0
  %857 = vmatprep.subr.mxu0 0.0
  %858 = vmatpush1.xpose.msra.mxu0 0.0
  %859 = vmatprep.mubr.f32.mxu0 %v699
  %860 = vmatmul.mubr.f32.gmra.mrb[0].mxu0 %v697
  %v861 = vpop.f32.mrb[0].mxu0
  %v862 = vadd.f32 %v792, %v861
  %v863 = vpop.f32.mrb[0].mxu0
  %864 = vdwg.mxu0
  %865 = vmatprep.subr.mxu0 %v349
  %866 = vmatpush1.xpose.msra.mxu0 %v348
  %867 = vmatprep.subr.mxu0 0.0
  %868 = vmatpush1.xpose.msra.mxu0 0.0
  %869 = vmatprep.subr.mxu0 0.0
  %870 = vmatpush1.xpose.msra.mxu0 0.0
  %871 = vmatprep.subr.mxu0 0.0
  %872 = vmatpush1.xpose.msra.mxu0 0.0
  %873 = vmatprep.subr.mxu0 0.0
  %874 = vmatpush1.xpose.msra.mxu0 0.0
  %875 = vmatprep.subr.mxu0 0.0
  %876 = vmatpush1.xpose.msra.mxu0 0.0
  %877 = vmatprep.subr.mxu0 0.0
  %878 = vmatpush1.xpose.msra.mxu0 0.0
  %879 = vmatprep.subr.mxu0 0.0
  %880 = vmatpush1.xpose.msra.mxu0 0.0
  %881 = vmatprep.subr.mxu0 0.0
  %882 = vmatpush1.xpose.msra.mxu0 0.0
  %883 = vmatprep.subr.mxu0 0.0
  %884 = vmatpush1.xpose.msra.mxu0 0.0
  %885 = vmatprep.subr.mxu0 0.0
  %886 = vmatpush1.xpose.msra.mxu0 0.0
  %887 = vmatprep.subr.mxu0 0.0
  %888 = vmatpush1.xpose.msra.mxu0 0.0
  %889 = vmatprep.subr.mxu0 0.0
  %890 = vmatpush1.xpose.msra.mxu0 0.0
  %891 = vmatprep.subr.mxu0 0.0
  %892 = vmatpush1.xpose.msra.mxu0 0.0
  %893 = vmatprep.subr.mxu0 0.0
  %894 = vmatpush1.xpose.msra.mxu0 0.0
  %895 = vmatprep.subr.mxu0 0.0
  %896 = vmatpush1.xpose.msra.mxu0 0.0
  %897 = vmatprep.subr.mxu0 0.0
  %898 = vmatpush1.xpose.msra.mxu0 0.0
  %899 = vmatprep.subr.mxu0 0.0
  %900 = vmatpush1.xpose.msra.mxu0 0.0
  %901 = vmatprep.subr.mxu0 0.0
  %902 = vmatpush1.xpose.msra.mxu0 0.0
  %903 = vmatprep.subr.mxu0 0.0
  %904 = vmatpush1.xpose.msra.mxu0 0.0
  %905 = vmatprep.subr.mxu0 0.0
  %906 = vmatpush1.xpose.msra.mxu0 0.0
  %907 = vmatprep.subr.mxu0 0.0
  %908 = vmatpush1.xpose.msra.mxu0 0.0
  %909 = vmatprep.subr.mxu0 0.0
  %910 = vmatpush1.xpose.msra.mxu0 0.0
  %911 = vmatprep.subr.mxu0 0.0
  %912 = vmatpush1.xpose.msra.mxu0 0.0
  %913 = vmatprep.subr.mxu0 0.0
  %914 = vmatpush1.xpose.msra.mxu0 0.0
  %915 = vmatprep.subr.mxu0 0.0
  %916 = vmatpush1.xpose.msra.mxu0 0.0
  %917 = vmatprep.subr.mxu0 0.0
  %918 = vmatpush1.xpose.msra.mxu0 0.0
  %919 = vmatprep.subr.mxu0 0.0
  %920 = vmatpush1.xpose.msra.mxu0 0.0
  %921 = vmatprep.subr.mxu0 0.0
  %922 = vmatpush1.xpose.msra.mxu0 0.0
  %923 = vmatprep.subr.mxu0 0.0
  %924 = vmatpush1.xpose.msra.mxu0 0.0
  %925 = vmatprep.subr.mxu0 0.0
  %926 = vmatpush1.xpose.msra.mxu0 0.0
  %927 = vmatprep.subr.mxu0 0.0
  %928 = vmatpush1.xpose.msra.mxu0 0.0
  %929 = vmatprep.mubr.f32.mxu0 %v715
  %930 = vmatmul.mubr.f32.gmra.mrb[0].mxu0 %v707
  %v931 = vpop.f32.mrb[0].mxu0
  %v932 = vadd.f32 %v862, %v931
  %v933 = vpop.f32.mrb[0].mxu0
  %934 = vdwg.mxu0
  %935 = vmatprep.subr.mxu0 %v351
  %936 = vmatpush1.xpose.msra.mxu0 %v350
  %937 = vmatprep.subr.mxu0 0.0
  %938 = vmatpush1.xpose.msra.mxu0 0.0
  %939 = vmatprep.subr.mxu0 0.0
  %940 = vmatpush1.xpose.msra.mxu0 0.0
  %941 = vmatprep.subr.mxu0 0.0
  %942 = vmatpush1.xpose.msra.mxu0 0.0
  %943 = vmatprep.subr.mxu0 0.0
  %944 = vmatpush1.xpose.msra.mxu0 0.0
  %945 = vmatprep.subr.mxu0 0.0
  %946 = vmatpush1.xpose.msra.mxu0 0.0
  %947 = vmatprep.subr.mxu0 0.0
  %948 = vmatpush1.xpose.msra.mxu0 0.0
  %949 = vmatprep.subr.mxu0 0.0
  %950 = vmatpush1.xpose.msra.mxu0 0.0
  %951 = vmatprep.subr.mxu0 0.0
  %952 = vmatpush1.xpose.msra.mxu0 0.0
  %953 = vmatprep.subr.mxu0 0.0
  %954 = vmatpush1.xpose.msra.mxu0 0.0
  %955 = vmatprep.subr.mxu0 0.0
  %956 = vmatpush1.xpose.msra.mxu0 0.0
  %957 = vmatprep.subr.mxu0 0.0
  %958 = vmatpush1.xpose.msra.mxu0 0.0
  %959 = vmatprep.subr.mxu0 0.0
  %960 = vmatpush1.xpose.msra.mxu0 0.0
  %961 = vmatprep.subr.mxu0 0.0
  %962 = vmatpush1.xpose.msra.mxu0 0.0
  %963 = vmatprep.subr.mxu0 0.0
  %964 = vmatpush1.xpose.msra.mxu0 0.0
  %965 = vmatprep.subr.mxu0 0.0
  %966 = vmatpush1.xpose.msra.mxu0 0.0
  %967 = vmatprep.subr.mxu0 0.0
  %968 = vmatpush1.xpose.msra.mxu0 0.0
  %969 = vmatprep.subr.mxu0 0.0
  %970 = vmatpush1.xpose.msra.mxu0 0.0
  %971 = vmatprep.subr.mxu0 0.0
  %972 = vmatpush1.xpose.msra.mxu0 0.0
  %973 = vmatprep.subr.mxu0 0.0
  %974 = vmatpush1.xpose.msra.mxu0 0.0
  %975 = vmatprep.subr.mxu0 0.0
  %976 = vmatpush1.xpose.msra.mxu0 0.0
  %977 = vmatprep.subr.mxu0 0.0
  %978 = vmatpush1.xpose.msra.mxu0 0.0
  %979 = vmatprep.subr.mxu0 0.0
  %980 = vmatpush1.xpose.msra.mxu0 0.0
  %981 = vmatprep.subr.mxu0 0.0
  %982 = vmatpush1.xpose.msra.mxu0 0.0
  %983 = vmatprep.subr.mxu0 0.0
  %984 = vmatpush1.xpose.msra.mxu0 0.0
  %985 = vmatprep.subr.mxu0 0.0
  %986 = vmatpush1.xpose.msra.mxu0 0.0
  %987 = vmatprep.subr.mxu0 0.0
  %988 = vmatpush1.xpose.msra.mxu0 0.0
  %989 = vmatprep.subr.mxu0 0.0
  %990 = vmatpush1.xpose.msra.mxu0 0.0
  %991 = vmatprep.subr.mxu0 0.0
  %992 = vmatpush1.xpose.msra.mxu0 0.0
  %993 = vmatprep.subr.mxu0 0.0
  %994 = vmatpush1.xpose.msra.mxu0 0.0
  %995 = vmatprep.subr.mxu0 0.0
  %996 = vmatpush1.xpose.msra.mxu0 0.0
  %997 = vmatprep.subr.mxu0 0.0
  %998 = vmatpush1.xpose.msra.mxu0 0.0
  %999 = vmatprep.mubr.f32.mxu0 %v716
  %1000 = vmatmul.mubr.f32.gmra.mrb[0].mxu0 %v714
  %v1001 = vpop.f32.mrb[0].mxu0
  %v1002 = vadd.f32 %v932, %v1001
  %v1003 = vpop.f32.mrb[0].mxu0
  %1004 = vdwg.mxu0
  %v1005 = vld [vmem:[%s3] sm:$0xff]
  %v1006 = vld [vmem:[%s3 + $0x8] sm:$0xff]
  %v1007 = vld [vmem:[%s3 + $0x10] sm:$0xff]
  %v1008 = vld [vmem:[%s3 + $0x18] sm:$0xff]
  %v1009 = vld [vmem:[%s3 + $0x20] sm:$0xff]
  %v1010 = vld [vmem:[%s3 + $0x28] sm:$0xff]
  %v1011 = vld [vmem:[%s5] sm:$0xff]
  %v1012 = vld [vmem:[%s5 + $0x8] sm:$0xff]
  %v1013 = vld [vmem:[%s5 + $0x10] sm:$0xff]
  %vm1014 = vcmask 64512
  %v1016 = vsel %vm1014, %v675, 0
  %1018 = vmatprep.subr.mxu0 %v1006
  %1019 = vmatpush1.msra.mxu0 %v1005
  %1020 = vmatprep.subr.mxu0 0.0
  %1021 = vmatpush1.msra.mxu0 0.0
  %1022 = vmatprep.subr.mxu0 0.0
  %1023 = vmatpush1.msra.mxu0 0.0
  %1024 = vmatprep.subr.mxu0 0.0
  %1025 = vmatpush1.msra.mxu0 0.0
  %1026 = vmatprep.subr.mxu0 0.0
  %1027 = vmatpush1.msra.mxu0 0.0
  %1028 = vmatprep.subr.mxu0 0.0
  %1029 = vmatpush1.msra.mxu0 0.0
  %1030 = vmatprep.subr.mxu0 0.0
  %1031 = vmatpush1.msra.mxu0 0.0
  %1032 = vmatprep.subr.mxu0 0.0
  %1033 = vmatpush1.msra.mxu0 0.0
  %1034 = vmatprep.subr.mxu0 0.0
  %1035 = vmatpush1.msra.mxu0 0.0
  %1036 = vmatprep.subr.mxu0 0.0
  %1037 = vmatpush1.msra.mxu0 0.0
  %1038 = vmatprep.subr.mxu0 0.0
  %1039 = vmatpush1.msra.mxu0 0.0
  %1040 = vmatprep.subr.mxu0 0.0
  %1041 = vmatpush1.msra.mxu0 0.0
  %1042 = vmatprep.subr.mxu0 0.0
  %1043 = vmatpush1.msra.mxu0 0.0
  %1044 = vmatprep.subr.mxu0 0.0
  %1045 = vmatpush1.msra.mxu0 0.0
  %1046 = vmatprep.subr.mxu0 0.0
  %1047 = vmatpush1.msra.mxu0 0.0
  %1048 = vmatprep.subr.mxu0 0.0
  %1049 = vmatpush1.msra.mxu0 0.0
  %1050 = vmatprep.subr.mxu0 0.0
  %1051 = vmatpush1.msra.mxu0 0.0
  %1052 = vmatprep.subr.mxu0 0.0
  %1053 = vmatpush1.msra.mxu0 0.0
  %1054 = vmatprep.subr.mxu0 0.0
  %1055 = vmatpush1.msra.mxu0 0.0
  %1056 = vmatprep.subr.mxu0 0.0
  %1057 = vmatpush1.msra.mxu0 0.0
  %1058 = vmatprep.subr.mxu0 0.0
  %1059 = vmatpush1.msra.mxu0 0.0
  %1060 = vmatprep.subr.mxu0 0.0
  %1061 = vmatpush1.msra.mxu0 0.0
  %1062 = vmatprep.subr.mxu0 0.0
  %1063 = vmatpush1.msra.mxu0 0.0
  %1064 = vmatprep.subr.mxu0 0.0
  %1065 = vmatpush1.msra.mxu0 0.0
  %1066 = vmatprep.subr.mxu0 0.0
  %1067 = vmatpush1.msra.mxu0 0.0
  %1068 = vmatprep.subr.mxu0 0.0
  %1069 = vmatpush1.msra.mxu0 0.0
  %1070 = vmatprep.subr.mxu0 0.0
  %1071 = vmatpush1.msra.mxu0 0.0
  %1072 = vmatprep.subr.mxu0 0.0
  %1073 = vmatpush1.msra.mxu0 0.0
  %1074 = vmatprep.subr.mxu0 0.0
  %1075 = vmatpush1.msra.mxu0 0.0
  %1076 = vmatprep.subr.mxu0 0.0
  %1077 = vmatpush1.msra.mxu0 0.0
  %1078 = vmatprep.subr.mxu0 0.0
  %1079 = vmatpush1.msra.mxu0 0.0
  %1080 = vmatprep.subr.mxu0 0.0
  %1081 = vmatpush1.msra.mxu0 0.0
  %1082 = vmatprep.mubr.f32.mxu0 0.0
  %1083 = vmatmul.mubr.f32.gmra.mrb[0].mxu0 %v1016
  %v1084 = vpop.f32.mrb[0].mxu0
  %v1085 = vadd.f32 0.0, %v1084
  %v1086 = vpop.f32.mrb[0].mxu0
  %v1087 = vadd.f32 0.0, %v1086
  %1088 = vdwg.mxu0
  %1089 = vmatprep.subr.mxu0 0.0
  %1090 = vmatpush1.msra.mxu0 %v1007
  %1091 = vmatprep.subr.mxu0 0.0
  %1092 = vmatpush1.msra.mxu0 0.0
  %1093 = vmatprep.subr.mxu0 0.0
  %1094 = vmatpush1.msra.mxu0 0.0
  %1095 = vmatprep.subr.mxu0 0.0
  %1096 = vmatpush1.msra.mxu0 0.0
  %1097 = vmatprep.subr.mxu0 0.0
  %1098 = vmatpush1.msra.mxu0 0.0
  %1099 = vmatprep.subr.mxu0 0.0
  %1100 = vmatpush1.msra.mxu0 0.0
  %1101 = vmatprep.subr.mxu0 0.0
  %1102 = vmatpush1.msra.mxu0 0.0
  %1103 = vmatprep.subr.mxu0 0.0
  %1104 = vmatpush1.msra.mxu0 0.0
  %1105 = vmatprep.subr.mxu0 0.0
  %1106 = vmatpush1.msra.mxu0 0.0
  %1107 = vmatprep.subr.mxu0 0.0
  %1108 = vmatpush1.msra.mxu0 0.0
  %1109 = vmatprep.subr.mxu0 0.0
  %1110 = vmatpush1.msra.mxu0 0.0
  %1111 = vmatprep.subr.mxu0 0.0
  %1112 = vmatpush1.msra.mxu0 0.0
  %1113 = vmatprep.subr.mxu0 0.0
  %1114 = vmatpush1.msra.mxu0 0.0
  %1115 = vmatprep.subr.mxu0 0.0
  %1116 = vmatpush1.msra.mxu0 0.0
  %1117 = vmatprep.subr.mxu0 0.0
  %1118 = vmatpush1.msra.mxu0 0.0
  %1119 = vmatprep.subr.mxu0 0.0
  %1120 = vmatpush1.msra.mxu0 0.0
  %1121 = vmatprep.subr.mxu0 0.0
  %1122 = vmatpush1.msra.mxu0 0.0
  %1123 = vmatprep.subr.mxu0 0.0
  %1124 = vmatpush1.msra.mxu0 0.0
  %1125 = vmatprep.subr.mxu0 0.0
  %1126 = vmatpush1.msra.mxu0 0.0
  %1127 = vmatprep.subr.mxu0 0.0
  %1128 = vmatpush1.msra.mxu0 0.0
  %1129 = vmatprep.subr.mxu0 0.0
  %1130 = vmatpush1.msra.mxu0 0.0
  %1131 = vmatprep.subr.mxu0 0.0
  %1132 = vmatpush1.msra.mxu0 0.0
  %1133 = vmatprep.subr.mxu0 0.0
  %1134 = vmatpush1.msra.mxu0 0.0
  %1135 = vmatprep.subr.mxu0 0.0
  %1136 = vmatpush1.msra.mxu0 0.0
  %1137 = vmatprep.subr.mxu0 0.0
  %1138 = vmatpush1.msra.mxu0 0.0
  %1139 = vmatprep.subr.mxu0 0.0
  %1140 = vmatpush1.msra.mxu0 0.0
  %1141 = vmatprep.subr.mxu0 0.0
  %1142 = vmatpush1.msra.mxu0 0.0
  %1143 = vmatprep.subr.mxu0 0.0
  %1144 = vmatpush1.msra.mxu0 0.0
  %1145 = vmatprep.subr.mxu0 0.0
  %1146 = vmatpush1.msra.mxu0 0.0
  %1147 = vmatprep.subr.mxu0 0.0
  %1148 = vmatpush1.msra.mxu0 0.0
  %1149 = vmatprep.subr.mxu0 0.0
  %1150 = vmatpush1.msra.mxu0 0.0
  %1151 = vmatprep.subr.mxu0 0.0
  %1152 = vmatpush1.msra.mxu0 0.0
  %1153 = vmatprep.mubr.f32.mxu0 0.0
  %1154 = vmatmul.mubr.f32.gmra.mrb[0].mxu0 %v1016
  %v1155 = vpop.f32.mrb[0].mxu0
  %v1156 = vadd.f32 0.0, %v1155
  %v1157 = vpop.f32.mrb[0].mxu0
  %1158 = vdwg.mxu0
  %v1159 = vlaneseq
  %v1160 = vshrl.u32 %v1159, 7
  %v1161 = vsub.s32 0, %v1160
  %v1162 = vrot.slane %v1011, %v1161
  %v1163 = vlaneseq
  %v1164 = vshrl.u32 %v1163, 7
  %v1165 = vsub.s32 0, %v1164
  %v1166 = vrot.slane %v1012, %v1165
  %v1167 = vlaneseq
  %v1168 = vshrl.u32 %v1167, 7
  %v1169 = vsub.s32 0, %v1168
  %v1170 = vrot.slane %v1013, %v1169
  %v1171 = vadd.f32 %v1162, %v1085
  %v1172 = vadd.f32 %v1166, %v1087
  %v1173 = vadd.f32 %v1170, %v1156
  %v1175 = vsel %vm1014, %v1002, 0
  %1177 = vmatprep.subr.mxu0 %v1009
  %1178 = vmatpush1.msra.mxu0 %v1008
  %1179 = vmatprep.subr.mxu0 0.0
  %1180 = vmatpush1.msra.mxu0 0.0
  %1181 = vmatprep.subr.mxu0 0.0
  %1182 = vmatpush1.msra.mxu0 0.0
  %1183 = vmatprep.subr.mxu0 0.0
  %1184 = vmatpush1.msra.mxu0 0.0
  %1185 = vmatprep.subr.mxu0 0.0
  %1186 = vmatpush1.msra.mxu0 0.0
  %1187 = vmatprep.subr.mxu0 0.0
  %1188 = vmatpush1.msra.mxu0 0.0
  %1189 = vmatprep.subr.mxu0 0.0
  %1190 = vmatpush1.msra.mxu0 0.0
  %1191 = vmatprep.subr.mxu0 0.0
  %1192 = vmatpush1.msra.mxu0 0.0
  %1193 = vmatprep.subr.mxu0 0.0
  %1194 = vmatpush1.msra.mxu0 0.0
  %1195 = vmatprep.subr.mxu0 0.0
  %1196 = vmatpush1.msra.mxu0 0.0
  %1197 = vmatprep.subr.mxu0 0.0
  %1198 = vmatpush1.msra.mxu0 0.0
  %1199 = vmatprep.subr.mxu0 0.0
  %1200 = vmatpush1.msra.mxu0 0.0
  %1201 = vmatprep.subr.mxu0 0.0
  %1202 = vmatpush1.msra.mxu0 0.0
  %1203 = vmatprep.subr.mxu0 0.0
  %1204 = vmatpush1.msra.mxu0 0.0
  %1205 = vmatprep.subr.mxu0 0.0
  %1206 = vmatpush1.msra.mxu0 0.0
  %1207 = vmatprep.subr.mxu0 0.0
  %1208 = vmatpush1.msra.mxu0 0.0
  %1209 = vmatprep.subr.mxu0 0.0
  %1210 = vmatpush1.msra.mxu0 0.0
  %1211 = vmatprep.subr.mxu0 0.0
  %1212 = vmatpush1.msra.mxu0 0.0
  %1213 = vmatprep.subr.mxu0 0.0
  %1214 = vmatpush1.msra.mxu0 0.0
  %1215 = vmatprep.subr.mxu0 0.0
  %1216 = vmatpush1.msra.mxu0 0.0
  %1217 = vmatprep.subr.mxu0 0.0
  %1218 = vmatpush1.msra.mxu0 0.0
  %1219 = vmatprep.subr.mxu0 0.0
  %1220 = vmatpush1.msra.mxu0 0.0
  %1221 = vmatprep.subr.mxu0 0.0
  %1222 = vmatpush1.msra.mxu0 0.0
  %1223 = vmatprep.subr.mxu0 0.0
  %1224 = vmatpush1.msra.mxu0 0.0
  %1225 = vmatprep.subr.mxu0 0.0
  %1226 = vmatpush1.msra.mxu0 0.0
  %1227 = vmatprep.subr.mxu0 0.0
  %1228 = vmatpush1.msra.mxu0 0.0
  %1229 = vmatprep.subr.mxu0 0.0
  %1230 = vmatpush1.msra.mxu0 0.0
  %1231 = vmatprep.subr.mxu0 0.0
  %1232 = vmatpush1.msra.mxu0 0.0
  %1233 = vmatprep.subr.mxu0 0.0
  %1234 = vmatpush1.msra.mxu0 0.0
  %1235 = vmatprep.subr.mxu0 0.0
  %1236 = vmatpush1.msra.mxu0 0.0
  %1237 = vmatprep.subr.mxu0 0.0
  %1238 = vmatpush1.msra.mxu0 0.0
  %1239 = vmatprep.subr.mxu0 0.0
  %1240 = vmatpush1.msra.mxu0 0.0
  %1241 = vmatprep.mubr.f32.mxu0 0.0
  %1242 = vmatmul.mubr.f32.gmra.mrb[0].mxu0 %v1175
  %v1243 = vpop.f32.mrb[0].mxu0
  %v1244 = vadd.f32 0.0, %v1243
  %v1245 = vpop.f32.mrb[0].mxu0
  %v1246 = vadd.f32 0.0, %v1245
  %1247 = vdwg.mxu0
  %1248 = vmatprep.subr.mxu0 0.0
  %1249 = vmatpush1.msra.mxu0 %v1010
  %1250 = vmatprep.subr.mxu0 0.0
  %1251 = vmatpush1.msra.mxu0 0.0
  %1252 = vmatprep.subr.mxu0 0.0
  %1253 = vmatpush1.msra.mxu0 0.0
  %1254 = vmatprep.subr.mxu0 0.0
  %1255 = vmatpush1.msra.mxu0 0.0
  %1256 = vmatprep.subr.mxu0 0.0
  %1257 = vmatpush1.msra.mxu0 0.0
  %1258 = vmatprep.subr.mxu0 0.0
  %1259 = vmatpush1.msra.mxu0 0.0
  %1260 = vmatprep.subr.mxu0 0.0
  %1261 = vmatpush1.msra.mxu0 0.0
  %1262 = vmatprep.subr.mxu0 0.0
  %1263 = vmatpush1.msra.mxu0 0.0
  %1264 = vmatprep.subr.mxu0 0.0
  %1265 = vmatpush1.msra.mxu0 0.0
  %1266 = vmatprep.subr.mxu0 0.0
  %1267 = vmatpush1.msra.mxu0 0.0
  %1268 = vmatprep.subr.mxu0 0.0
  %1269 = vmatpush1.msra.mxu0 0.0
  %1270 = vmatprep.subr.mxu0 0.0
  %1271 = vmatpush1.msra.mxu0 0.0
  %1272 = vmatprep.subr.mxu0 0.0
  %1273 = vmatpush1.msra.mxu0 0.0
  %1274 = vmatprep.subr.mxu0 0.0
  %1275 = vmatpush1.msra.mxu0 0.0
  %1276 = vmatprep.subr.mxu0 0.0
  %1277 = vmatpush1.msra.mxu0 0.0
  %1278 = vmatprep.subr.mxu0 0.0
  %1279 = vmatpush1.msra.mxu0 0.0
  %1280 = vmatprep.subr.mxu0 0.0
  %1281 = vmatpush1.msra.mxu0 0.0
  %1282 = vmatprep.subr.mxu0 0.0
  %1283 = vmatpush1.msra.mxu0 0.0
  %1284 = vmatprep.subr.mxu0 0.0
  %1285 = vmatpush1.msra.mxu0 0.0
  %1286 = vmatprep.subr.mxu0 0.0
  %1287 = vmatpush1.msra.mxu0 0.0
  %1288 = vmatprep.subr.mxu0 0.0
  %1289 = vmatpush1.msra.mxu0 0.0
  %1290 = vmatprep.subr.mxu0 0.0
  %1291 = vmatpush1.msra.mxu0 0.0
  %1292 = vmatprep.subr.mxu0 0.0
  %1293 = vmatpush1.msra.mxu0 0.0
  %1294 = vmatprep.subr.mxu0 0.0
  %1295 = vmatpush1.msra.mxu0 0.0
  %1296 = vmatprep.subr.mxu0 0.0
  %1297 = vmatpush1.msra.mxu0 0.0
  %1298 = vmatprep.subr.mxu0 0.0
  %1299 = vmatpush1.msra.mxu0 0.0
  %1300 = vmatprep.subr.mxu0 0.0
  %1301 = vmatpush1.msra.mxu0 0.0
  %1302 = vmatprep.subr.mxu0 0.0
  %1303 = vmatpush1.msra.mxu0 0.0
  %1304 = vmatprep.subr.mxu0 0.0
  %1305 = vmatpush1.msra.mxu0 0.0
  %1306 = vmatprep.subr.mxu0 0.0
  %1307 = vmatpush1.msra.mxu0 0.0
  %1308 = vmatprep.subr.mxu0 0.0
  %1309 = vmatpush1.msra.mxu0 0.0
  %1310 = vmatprep.subr.mxu0 0.0
  %1311 = vmatpush1.msra.mxu0 0.0
  %1312 = vmatprep.mubr.f32.mxu0 0.0
  %1313 = vmatmul.mubr.f32.gmra.mrb[0].mxu0 %v1175
  %v1314 = vpop.f32.mrb[0].mxu0
  %v1315 = vadd.f32 0.0, %v1314
  %v1316 = vpop.f32.mrb[0].mxu0
  %1317 = vdwg.mxu0
  %v1318 = vadd.f32 %v1171, %v1244
  %v1319 = vadd.f32 %v1172, %v1246
  %v1320 = vadd.f32 %v1173, %v1315
  %v1321 = vld [vmem:[%s4] sm:$0xff]
  %v1322 = vld [vmem:[%s4 + $0x8] sm:$0xff]
  %v1323 = vld [vmem:[%s4 + $0x10] sm:$0xff]
  %v1324 = vld [vmem:[%s4 + $0x18] sm:$0xff]
  %v1325 = vld [vmem:[%s4 + $0x20] sm:$0xff]
  %v1326 = vld [vmem:[%s4 + $0x28] sm:$0xff]
  %v1327 = vld [vmem:[%s4 + $0x30] sm:$0xff]
  %v1328 = vld [vmem:[%s4 + $0x38] sm:$0xff]
  %v1329 = vld [vmem:[%s4 + $0x40] sm:$0xff]
  %v1330 = vld [vmem:[%s4 + $0x48] sm:$0xff]
  %v1331 = vld [vmem:[%s4 + $0x50] sm:$0xff]
  %v1332 = vld [vmem:[%s4 + $0x58] sm:$0xff]
  %v1333 = vld [vmem:[%s4 + $0x60] sm:$0xff]
  %v1334 = vld [vmem:[%s4 + $0x68] sm:$0xff]
  %v1335 = vld [vmem:[%s4 + $0x70] sm:$0xff]
  %v1336 = vld [vmem:[%s4 + $0x78] sm:$0xff]
  %v1337 = vld [vmem:[%s4 + $0x80] sm:$0xff]
  %v1338 = vld [vmem:[%s4 + $0x88] sm:$0xff]
  %v1339 = vld [vmem:[%s4 + $0x90] sm:$0xff]
  %v1340 = vld [vmem:[%s4 + $0x98] sm:$0xff]
  %v1341 = vld [vmem:[%s4 + $0xa0] sm:$0xff]
  %v1342 = vld [vmem:[%s4 + $0xa8] sm:$0xff]
  %v1343 = vld [vmem:[%s4 + $0xb0] sm:$0xff]
  %v1344 = vld [vmem:[%s4 + $0xb8] sm:$0xff]
  %v1345 = vld [vmem:[%s4 + $0xc0] sm:$0xff]
  %v1346 = vld [vmem:[%s4 + $0xc8] sm:$0xff]
  %v1347 = vld [vmem:[%s4 + $0xd0] sm:$0xff]
  %v1348 = vld [vmem:[%s4 + $0xd8] sm:$0xff]
  %v1349 = vld [vmem:[%s4 + $0xe0] sm:$0xff]
  %v1350 = vld [vmem:[%s4 + $0xe8] sm:$0xff]
  %v1351 = vld [vmem:[%s4 + $0xf0] sm:$0xff]
  %v1352 = vld [vmem:[%s4 + $0xf8] sm:$0xff]
  %v1353 = vld [vmem:[%s4 + $0x100] sm:$0xff]
  %v1354 = vld [vmem:[%s4 + $0x108] sm:$0xff]
  %v1355 = vld [vmem:[%s4 + $0x110] sm:$0xff]
  %v1356 = vld [vmem:[%s4 + $0x118] sm:$0xff]
  %v1357 = vld [vmem:[%s4 + $0x120] sm:$0xff]
  %v1358 = vld [vmem:[%s4 + $0x128] sm:$0xff]
  %v1359 = vld [vmem:[%s4 + $0x130] sm:$0xff]
  %v1360 = vld [vmem:[%s4 + $0x138] sm:$0xff]
  %v1361 = vld [vmem:[%s4 + $0x140] sm:$0xff]
  %v1362 = vld [vmem:[%s4 + $0x148] sm:$0xff]
  %v1363 = vld [vmem:[%s4 + $0x150] sm:$0xff]
  %v1364 = vld [vmem:[%s4 + $0x158] sm:$0xff]
  %v1365 = vld [vmem:[%s4 + $0x160] sm:$0xff]
  %v1366 = vld [vmem:[%s4 + $0x168] sm:$0xff]
  %v1367 = vld [vmem:[%s4 + $0x170] sm:$0xff]
  %v1368 = vld [vmem:[%s4 + $0x178] sm:$0xff]
  %s1369 = scalar_lea.vmem %s4, 384
  %v1370 = vld [vmem:[%s1369] sm:$0xff]
  %v1371 = vld [vmem:[%s1369 + $0x8] sm:$0xff]
  %v1372 = vld [vmem:[%s1369 + $0x10] sm:$0xff]
  %v1373 = vld [vmem:[%s1369 + $0x18] sm:$0xff]
  %v1374 = vld [vmem:[%s1369 + $0x20] sm:$0xff]
  %v1375 = vld [vmem:[%s1369 + $0x28] sm:$0xff]
  %v1376 = vld [vmem:[%s1369 + $0x30] sm:$0xff]
  %v1377 = vld [vmem:[%s1369 + $0x38] sm:$0xff]
  %v1378 = vld [vmem:[%s1369 + $0x40] sm:$0xff]
  %v1379 = vld [vmem:[%s1369 + $0x48] sm:$0xff]
  %v1380 = vld [vmem:[%s1369 + $0x50] sm:$0xff]
  %v1381 = vld [vmem:[%s1369 + $0x58] sm:$0xff]
  %v1382 = vld [vmem:[%s1369 + $0x60] sm:$0xff]
  %v1383 = vld [vmem:[%s1369 + $0x68] sm:$0xff]
  %v1384 = vld [vmem:[%s1369 + $0x70] sm:$0xff]
  %v1385 = vld [vmem:[%s1369 + $0x78] sm:$0xff]
  %v1386 = vld [vmem:[%s1369 + $0x80] sm:$0xff]
  %v1387 = vld [vmem:[%s1369 + $0x88] sm:$0xff]
  %v1388 = vld [vmem:[%s1369 + $0x90] sm:$0xff]
  %v1389 = vld [vmem:[%s1369 + $0x98] sm:$0xff]
  %v1390 = vld [vmem:[%s1369 + $0xa0] sm:$0xff]
  %v1391 = vld [vmem:[%s1369 + $0xa8] sm:$0xff]
  %v1392 = vld [vmem:[%s1369 + $0xb0] sm:$0xff]
  %v1393 = vld [vmem:[%s1369 + $0xb8] sm:$0xff]
  %v1394 = vld [vmem:[%s1369 + $0xc0] sm:$0xff]
  %v1395 = vld [vmem:[%s1369 + $0xc8] sm:$0xff]
  %v1396 = vld [vmem:[%s1369 + $0xd0] sm:$0xff]
  %v1397 = vld [vmem:[%s1369 + $0xd8] sm:$0xff]
  %v1398 = vld [vmem:[%s1369 + $0xe0] sm:$0xff]
  %v1399 = vld [vmem:[%s1369 + $0xe8] sm:$0xff]
  %v1400 = vld [vmem:[%s1369 + $0xf0] sm:$0xff]
  %v1401 = vld [vmem:[%s1369 + $0xf8] sm:$0xff]
  %v1402 = vld [vmem:[%s1369 + $0x100] sm:$0xff]
  %v1403 = vld [vmem:[%s1369 + $0x108] sm:$0xff]
  %v1404 = vld [vmem:[%s1369 + $0x110] sm:$0xff]
  %v1405 = vld [vmem:[%s1369 + $0x118] sm:$0xff]
  %v1406 = vld [vmem:[%s1369 + $0x120] sm:$0xff]
  %v1407 = vld [vmem:[%s1369 + $0x128] sm:$0xff]
  %v1408 = vld [vmem:[%s1369 + $0x130] sm:$0xff]
  %v1409 = vld [vmem:[%s1369 + $0x138] sm:$0xff]
  %v1410 = vld [vmem:[%s1369 + $0x140] sm:$0xff]
  %v1411 = vld [vmem:[%s1369 + $0x148] sm:$0xff]
  %v1412 = vld [vmem:[%s1369 + $0x150] sm:$0xff]
  %v1413 = vld [vmem:[%s1369 + $0x158] sm:$0xff]
  %v1414 = vld [vmem:[%s1369 + $0x160] sm:$0xff]
  %v1415 = vld [vmem:[%s1369 + $0x168] sm:$0xff]
  %v1416 = vld [vmem:[%s1369 + $0x170] sm:$0xff]
  %v1417 = vld [vmem:[%s1369 + $0x178] sm:$0xff]
  %s1418 = scalar_lea.vmem %s4, 768
  %v1419 = vld [vmem:[%s1418] sm:$0xff]
  %v1420 = vld [vmem:[%s1418 + $0x8] sm:$0xff]
  %v1421 = vld [vmem:[%s1418 + $0x10] sm:$0xff]
  %v1422 = vld [vmem:[%s1418 + $0x18] sm:$0xff]
  %v1423 = vld [vmem:[%s1418 + $0x20] sm:$0xff]
  %v1424 = vld [vmem:[%s1418 + $0x28] sm:$0xff]
  %v1425 = vld [vmem:[%s1418 + $0x30] sm:$0xff]
  %v1426 = vld [vmem:[%s1418 + $0x38] sm:$0xff]
  %v1427 = vld [vmem:[%s1418 + $0x40] sm:$0xff]
  %v1428 = vld [vmem:[%s1418 + $0x48] sm:$0xff]
  %v1429 = vld [vmem:[%s1418 + $0x50] sm:$0xff]
  %v1430 = vld [vmem:[%s1418 + $0x58] sm:$0xff]
  %v1431 = vld [vmem:[%s1418 + $0x60] sm:$0xff]
  %v1432 = vld [vmem:[%s1418 + $0x68] sm:$0xff]
  %v1433 = vld [vmem:[%s1418 + $0x70] sm:$0xff]
  %v1434 = vld [vmem:[%s1418 + $0x78] sm:$0xff]
  %v1435 = vld [vmem:[%s1418 + $0x80] sm:$0xff]
  %v1436 = vld [vmem:[%s1418 + $0x88] sm:$0xff]
  %v1437 = vld [vmem:[%s1418 + $0x90] sm:$0xff]
  %v1438 = vld [vmem:[%s1418 + $0x98] sm:$0xff]
  %v1439 = vld [vmem:[%s1418 + $0xa0] sm:$0xff]
  %v1440 = vld [vmem:[%s1418 + $0xa8] sm:$0xff]
  %v1441 = vld [vmem:[%s1418 + $0xb0] sm:$0xff]
  %v1442 = vld [vmem:[%s1418 + $0xb8] sm:$0xff]
  %v1443 = vld [vmem:[%s1418 + $0xc0] sm:$0xff]
  %v1444 = vld [vmem:[%s1418 + $0xc8] sm:$0xff]
  %v1445 = vld [vmem:[%s1418 + $0xd0] sm:$0xff]
  %v1446 = vld [vmem:[%s1418 + $0xd8] sm:$0xff]
  %v1447 = vld [vmem:[%s1418 + $0xe0] sm:$0xff]
  %v1448 = vld [vmem:[%s1418 + $0xe8] sm:$0xff]
  %v1449 = vld [vmem:[%s1418 + $0xf0] sm:$0xff]
  %v1450 = vld [vmem:[%s1418 + $0xf8] sm:$0xff]
  %v1451 = vld [vmem:[%s1418 + $0x100] sm:$0xff]
  %v1452 = vld [vmem:[%s1418 + $0x108] sm:$0xff]
  %v1453 = vld [vmem:[%s1418 + $0x110] sm:$0xff]
  %v1454 = vld [vmem:[%s1418 + $0x118] sm:$0xff]
  %v1455 = vld [vmem:[%s1418 + $0x120] sm:$0xff]
  %v1456 = vld [vmem:[%s1418 + $0x128] sm:$0xff]
  %v1457 = vld [vmem:[%s1418 + $0x130] sm:$0xff]
  %v1458 = vld [vmem:[%s1418 + $0x138] sm:$0xff]
  %v1459 = vld [vmem:[%s1418 + $0x140] sm:$0xff]
  %v1460 = vld [vmem:[%s1418 + $0x148] sm:$0xff]
  %v1461 = vld [vmem:[%s1418 + $0x150] sm:$0xff]
  %v1462 = vld [vmem:[%s1418 + $0x158] sm:$0xff]
  %v1463 = vld [vmem:[%s1418 + $0x160] sm:$0xff]
  %v1464 = vld [vmem:[%s1418 + $0x168] sm:$0xff]
  %v1465 = vld [vmem:[%s1418 + $0x170] sm:$0xff]
  %v1466 = vld [vmem:[%s1418 + $0x178] sm:$0xff]
  %s1467 = scalar_lea.vmem %s4, 1152
  %v1468 = vld [vmem:[%s1467] sm:$0xff]
  %v1469 = vld [vmem:[%s1467 + $0x8] sm:$0xff]
  %v1470 = vld [vmem:[%s1467 + $0x10] sm:$0xff]
  %v1471 = vld [vmem:[%s1467 + $0x18] sm:$0xff]
  %v1472 = vld [vmem:[%s1467 + $0x20] sm:$0xff]
  %v1473 = vld [vmem:[%s1467 + $0x28] sm:$0xff]
  %v1474 = vld [vmem:[%s1467 + $0x30] sm:$0xff]
  %v1475 = vld [vmem:[%s1467 + $0x38] sm:$0xff]
  %v1476 = vld [vmem:[%s1467 + $0x40] sm:$0xff]
  %v1477 = vld [vmem:[%s1467 + $0x48] sm:$0xff]
  %v1478 = vld [vmem:[%s1467 + $0x50] sm:$0xff]
  %v1479 = vld [vmem:[%s1467 + $0x58] sm:$0xff]
  %v1480 = vld [vmem:[%s1467 + $0x60] sm:$0xff]
  %v1481 = vld [vmem:[%s1467 + $0x68] sm:$0xff]
  %v1482 = vld [vmem:[%s1467 + $0x70] sm:$0xff]
  %v1483 = vld [vmem:[%s1467 + $0x78] sm:$0xff]
  %v1484 = vld [vmem:[%s1467 + $0x80] sm:$0xff]
  %v1485 = vld [vmem:[%s1467 + $0x88] sm:$0xff]
  %v1486 = vld [vmem:[%s1467 + $0x90] sm:$0xff]
  %v1487 = vld [vmem:[%s1467 + $0x98] sm:$0xff]
  %v1488 = vld [vmem:[%s1467 + $0xa0] sm:$0xff]
  %v1489 = vld [vmem:[%s1467 + $0xa8] sm:$0xff]
  %v1490 = vld [vmem:[%s1467 + $0xb0] sm:$0xff]
  %v1491 = vld [vmem:[%s1467 + $0xb8] sm:$0xff]
  %v1492 = vld [vmem:[%s1467 + $0xc0] sm:$0xff]
  %v1493 = vld [vmem:[%s1467 + $0xc8] sm:$0xff]
  %v1494 = vld [vmem:[%s1467 + $0xd0] sm:$0xff]
  %v1495 = vld [vmem:[%s1467 + $0xd8] sm:$0xff]
  %v1496 = vld [vmem:[%s1467 + $0xe0] sm:$0xff]
  %v1497 = vld [vmem:[%s1467 + $0xe8] sm:$0xff]
  %v1498 = vld [vmem:[%s1467 + $0xf0] sm:$0xff]
  %v1499 = vld [vmem:[%s1467 + $0xf8] sm:$0xff]
  %v1500 = vld [vmem:[%s1467 + $0x100] sm:$0xff]
  %v1501 = vld [vmem:[%s1467 + $0x108] sm:$0xff]
  %v1502 = vld [vmem:[%s1467 + $0x110] sm:$0xff]
  %v1503 = vld [vmem:[%s1467 + $0x118] sm:$0xff]
  %v1504 = vld [vmem:[%s1467 + $0x120] sm:$0xff]
  %v1505 = vld [vmem:[%s1467 + $0x128] sm:$0xff]
  %v1506 = vld [vmem:[%s1467 + $0x130] sm:$0xff]
  %v1507 = vld [vmem:[%s1467 + $0x138] sm:$0xff]
  %v1508 = vld [vmem:[%s1467 + $0x140] sm:$0xff]
  %v1509 = vld [vmem:[%s1467 + $0x148] sm:$0xff]
  %v1510 = vld [vmem:[%s1467 + $0x150] sm:$0xff]
  %v1511 = vld [vmem:[%s1467 + $0x158] sm:$0xff]
  %v1512 = vld [vmem:[%s1467 + $0x160] sm:$0xff]
  %v1513 = vld [vmem:[%s1467 + $0x168] sm:$0xff]
  %v1514 = vld [vmem:[%s1467 + $0x170] sm:$0xff]
  %v1515 = vld [vmem:[%s1467 + $0x178] sm:$0xff]
  %v1516 = vlaneseq
  %v1517 = vshrl.u32 %v1516, 7
  %v1518 = vsub.s32 1, %v1517
  %v1519 = vrot.slane %v1011, %v1518
  %v1520 = vlaneseq
  %v1521 = vshrl.u32 %v1520, 7
  %v1522 = vsub.s32 1, %v1521
  %v1523 = vrot.slane %v1012, %v1522
  %v1524 = vlaneseq
  %v1525 = vshrl.u32 %v1524, 7
  %v1526 = vsub.s32 1, %v1525
  %v1527 = vrot.slane %v1013, %v1526
  %1528 = vmatprep.subr.mxu0 %v1322
  %1529 = vmatpush1.msra.mxu0 %v1321
  %1530 = vmatprep.subr.mxu0 %v1325
  %1531 = vmatpush1.msra.mxu0 %v1324
  %1532 = vmatprep.subr.mxu0 %v1328
  %1533 = vmatpush1.msra.mxu0 %v1327
  %1534 = vmatprep.subr.mxu0 %v1331
  %1535 = vmatpush1.msra.mxu0 %v1330
  %1536 = vmatprep.subr.mxu0 %v1334
  %1537 = vmatpush1.msra.mxu0 %v1333
  %1538 = vmatprep.subr.mxu0 %v1337
  %1539 = vmatpush1.msra.mxu0 %v1336
  %1540 = vmatprep.subr.mxu0 %v1340
  %1541 = vmatpush1.msra.mxu0 %v1339
  %1542 = vmatprep.subr.mxu0 %v1343
  %1543 = vmatpush1.msra.mxu0 %v1342
  %1544 = vmatprep.subr.mxu0 %v1346
  %1545 = vmatpush1.msra.mxu0 %v1345
  %1546 = vmatprep.subr.mxu0 %v1349
  %1547 = vmatpush1.msra.mxu0 %v1348
  %1548 = vmatprep.subr.mxu0 %v1352
  %1549 = vmatpush1.msra.mxu0 %v1351
  %1550 = vmatprep.subr.mxu0 %v1355
  %1551 = vmatpush1.msra.mxu0 %v1354
  %1552 = vmatprep.subr.mxu0 %v1358
  %1553 = vmatpush1.msra.mxu0 %v1357
  %1554 = vmatprep.subr.mxu0 %v1361
  %1555 = vmatpush1.msra.mxu0 %v1360
  %1556 = vmatprep.subr.mxu0 %v1364
  %1557 = vmatpush1.msra.mxu0 %v1363
  %1558 = vmatprep.subr.mxu0 %v1367
  %1559 = vmatpush1.msra.mxu0 %v1366
  %1560 = vmatprep.subr.mxu0 0.0
  %1561 = vmatpush1.msra.mxu0 0.0
  %1562 = vmatprep.subr.mxu0 0.0
  %1563 = vmatpush1.msra.mxu0 0.0
  %1564 = vmatprep.subr.mxu0 0.0
  %1565 = vmatpush1.msra.mxu0 0.0
  %1566 = vmatprep.subr.mxu0 0.0
  %1567 = vmatpush1.msra.mxu0 0.0
  %1568 = vmatprep.subr.mxu0 0.0
  %1569 = vmatpush1.msra.mxu0 0.0
  %1570 = vmatprep.subr.mxu0 0.0
  %1571 = vmatpush1.msra.mxu0 0.0
  %1572 = vmatprep.subr.mxu0 0.0
  %1573 = vmatpush1.msra.mxu0 0.0
  %1574 = vmatprep.subr.mxu0 0.0
  %1575 = vmatpush1.msra.mxu0 0.0
  %1576 = vmatprep.subr.mxu0 0.0
  %1577 = vmatpush1.msra.mxu0 0.0
  %1578 = vmatprep.subr.mxu0 0.0
  %1579 = vmatpush1.msra.mxu0 0.0
  %1580 = vmatprep.subr.mxu0 0.0
  %1581 = vmatpush1.msra.mxu0 0.0
  %1582 = vmatprep.subr.mxu0 0.0
  %1583 = vmatpush1.msra.mxu0 0.0
  %1584 = vmatprep.subr.mxu0 0.0
  %1585 = vmatpush1.msra.mxu0 0.0
  %1586 = vmatprep.subr.mxu0 0.0
  %1587 = vmatpush1.msra.mxu0 0.0
  %1588 = vmatprep.subr.mxu0 0.0
  %1589 = vmatpush1.msra.mxu0 0.0
  %1590 = vmatprep.subr.mxu0 0.0
  %1591 = vmatpush1.msra.mxu0 0.0
  %1592 = vmatprep.mubr.f32.mxu0 0.0
  %1593 = vmatmul.mubr.f32.gmra.mrb[0].mxu0 0.0
  %v1594 = vpop.f32.mrb[0].mxu0
  %v1595 = vadd.f32 %v1519, %v1594
  %v1596 = vpop.f32.mrb[0].mxu0
  %v1597 = vadd.f32 %v1523, %v1596
  %1598 = vdwg.mxu0
  %1599 = vmatprep.subr.mxu0 0.0
  %1600 = vmatpush1.msra.mxu0 %v1323
  %1601 = vmatprep.subr.mxu0 0.0
  %1602 = vmatpush1.msra.mxu0 %v1326
  %1603 = vmatprep.subr.mxu0 0.0
  %1604 = vmatpush1.msra.mxu0 %v1329
  %1605 = vmatprep.subr.mxu0 0.0
  %1606 = vmatpush1.msra.mxu0 %v1332
  %1607 = vmatprep.subr.mxu0 0.0
  %1608 = vmatpush1.msra.mxu0 %v1335
  %1609 = vmatprep.subr.mxu0 0.0
  %1610 = vmatpush1.msra.mxu0 %v1338
  %1611 = vmatprep.subr.mxu0 0.0
  %1612 = vmatpush1.msra.mxu0 %v1341
  %1613 = vmatprep.subr.mxu0 0.0
  %1614 = vmatpush1.msra.mxu0 %v1344
  %1615 = vmatprep.subr.mxu0 0.0
  %1616 = vmatpush1.msra.mxu0 %v1347
  %1617 = vmatprep.subr.mxu0 0.0
  %1618 = vmatpush1.msra.mxu0 %v1350
  %1619 = vmatprep.subr.mxu0 0.0
  %1620 = vmatpush1.msra.mxu0 %v1353
  %1621 = vmatprep.subr.mxu0 0.0
  %1622 = vmatpush1.msra.mxu0 %v1356
  %1623 = vmatprep.subr.mxu0 0.0
  %1624 = vmatpush1.msra.mxu0 %v1359
  %1625 = vmatprep.subr.mxu0 0.0
  %1626 = vmatpush1.msra.mxu0 %v1362
  %1627 = vmatprep.subr.mxu0 0.0
  %1628 = vmatpush1.msra.mxu0 %v1365
  %1629 = vmatprep.subr.mxu0 0.0
  %1630 = vmatpush1.msra.mxu0 %v1368
  %1631 = vmatprep.subr.mxu0 0.0
  %1632 = vmatpush1.msra.mxu0 0.0
  %1633 = vmatprep.subr.mxu0 0.0
  %1634 = vmatpush1.msra.mxu0 0.0
  %1635 = vmatprep.subr.mxu0 0.0
  %1636 = vmatpush1.msra.mxu0 0.0
  %1637 = vmatprep.subr.mxu0 0.0
  %1638 = vmatpush1.msra.mxu0 0.0
  %1639 = vmatprep.subr.mxu0 0.0
  %1640 = vmatpush1.msra.mxu0 0.0
  %1641 = vmatprep.subr.mxu0 0.0
  %1642 = vmatpush1.msra.mxu0 0.0
  %1643 = vmatprep.subr.mxu0 0.0
  %1644 = vmatpush1.msra.mxu0 0.0
  %1645 = vmatprep.subr.mxu0 0.0
  %1646 = vmatpush1.msra.mxu0 0.0
  %1647 = vmatprep.subr.mxu0 0.0
  %1648 = vmatpush1.msra.mxu0 0.0
  %1649 = vmatprep.subr.mxu0 0.0
  %1650 = vmatpush1.msra.mxu0 0.0
  %1651 = vmatprep.subr.mxu0 0.0
  %1652 = vmatpush1.msra.mxu0 0.0
  %1653 = vmatprep.subr.mxu0 0.0
  %1654 = vmatpush1.msra.mxu0 0.0
  %1655 = vmatprep.subr.mxu0 0.0
  %1656 = vmatpush1.msra.mxu0 0.0
  %1657 = vmatprep.subr.mxu0 0.0
  %1658 = vmatpush1.msra.mxu0 0.0
  %1659 = vmatprep.subr.mxu0 0.0
  %1660 = vmatpush1.msra.mxu0 0.0
  %1661 = vmatprep.subr.mxu0 0.0
  %1662 = vmatpush1.msra.mxu0 0.0
  %1663 = vmatprep.mubr.f32.mxu0 0.0
  %1664 = vmatmul.mubr.f32.gmra.mrb[0].mxu0 0.0
  %v1665 = vpop.f32.mrb[0].mxu0
  %v1666 = vadd.f32 %v1527, %v1665
  %v1667 = vpop.f32.mrb[0].mxu0
  %1668 = vdwg.mxu0
  %v1669 = vadd.f32 %v1318, %v1595
  %v1670 = vadd.f32 %v1319, %v1597
  %v1671 = vxor.u32 %v1669, 2147483648
  %v1672 = vxor.u32 %v1670, 2147483648
  %v1673 = vmul.f32 %v1671, 1.442695
  %v1674 = vpow.pop %v1673
  %v1675 = vmul.f32 %v1672, 1.442695
  %v1676 = vpow.pop %v1675
  %v1677 = vadd.f32 %v1674, 1.0
  %v1678 = vadd.f32 %v1676, 1.0
  %v1679 = vrcp.pop %v1677
  %v1680 = vmul.f32 1.0, %v1679
  %v1681 = vrcp.pop %v1678
  %v1682 = vmul.f32 1.0, %v1681
  %v1683 = vmul.f32 %v1680, %v1666
  %v1684 = vadd.f32 %v1320, %v1683
  %v1685 = vtanh.pop %v1684
  %v1686 = vsub.f32 1.0, %v1682
  %v1687 = vmul.f32 %v1686, %v1685
  %v1688 = vmul.f32 %v1682, 0.0
  %v1689 = vadd.f32 %v1687, %v1688
  %v1690 = vlaneseq
  %v1691 = vshrl.u32 %v1690, 7
  %v1692 = vsub.s32 2, %v1691
  %v1693 = vrot.slane %v1011, %v1692
  %v1694 = vlaneseq
  %v1695 = vshrl.u32 %v1694, 7
  %v1696 = vsub.s32 2, %v1695
  %v1697 = vrot.slane %v1012, %v1696
  %v1698 = vlaneseq
  %v1699 = vshrl.u32 %v1698, 7
  %v1700 = vsub.s32 2, %v1699
  %v1701 = vrot.slane %v1013, %v1700
  %1702 = vmatprep.subr.mxu0 %v1371
  %1703 = vmatpush1.msra.mxu0 %v1370
  %1704 = vmatprep.subr.mxu0 %v1374
  %1705 = vmatpush1.msra.mxu0 %v1373
  %1706 = vmatprep.subr.mxu0 %v1377
  %1707 = vmatpush1.msra.mxu0 %v1376
  %1708 = vmatprep.subr.mxu0 %v1380
  %1709 = vmatpush1.msra.mxu0 %v1379
  %1710 = vmatprep.subr.mxu0 %v1383
  %1711 = vmatpush1.msra.mxu0 %v1382
  %1712 = vmatprep.subr.mxu0 %v1386
  %1713 = vmatpush1.msra.mxu0 %v1385
  %1714 = vmatprep.subr.mxu0 %v1389
  %1715 = vmatpush1.msra.mxu0 %v1388
  %1716 = vmatprep.subr.mxu0 %v1392
  %1717 = vmatpush1.msra.mxu0 %v1391
  %1718 = vmatprep.subr.mxu0 %v1395
  %1719 = vmatpush1.msra.mxu0 %v1394
  %1720 = vmatprep.subr.mxu0 %v1398
  %1721 = vmatpush1.msra.mxu0 %v1397
  %1722 = vmatprep.subr.mxu0 %v1401
  %1723 = vmatpush1.msra.mxu0 %v1400
  %1724 = vmatprep.subr.mxu0 %v1404
  %1725 = vmatpush1.msra.mxu0 %v1403
  %1726 = vmatprep.subr.mxu0 %v1407
  %1727 = vmatpush1.msra.mxu0 %v1406
  %1728 = vmatprep.subr.mxu0 %v1410
  %1729 = vmatpush1.msra.mxu0 %v1409
  %1730 = vmatprep.subr.mxu0 %v1413
  %1731 = vmatpush1.msra.mxu0 %v1412
  %1732 = vmatprep.subr.mxu0 %v1416
  %1733 = vmatpush1.msra.mxu0 %v1415
  %1734 = vmatprep.subr.mxu0 0.0
  %1735 = vmatpush1.msra.mxu0 0.0
  %1736 = vmatprep.subr.mxu0 0.0
  %1737 = vmatpush1.msra.mxu0 0.0
  %1738 = vmatprep.subr.mxu0 0.0
  %1739 = vmatpush1.msra.mxu0 0.0
  %1740 = vmatprep.subr.mxu0 0.0
  %1741 = vmatpush1.msra.mxu0 0.0
  %1742 = vmatprep.subr.mxu0 0.0
  %1743 = vmatpush1.msra.mxu0 0.0
  %1744 = vmatprep.subr.mxu0 0.0
  %1745 = vmatpush1.msra.mxu0 0.0
  %1746 = vmatprep.subr.mxu0 0.0
  %1747 = vmatpush1.msra.mxu0 0.0
  %1748 = vmatprep.subr.mxu0 0.0
  %1749 = vmatpush1.msra.mxu0 0.0
  %1750 = vmatprep.subr.mxu0 0.0
  %1751 = vmatpush1.msra.mxu0 0.0
  %1752 = vmatprep.subr.mxu0 0.0
  %1753 = vmatpush1.msra.mxu0 0.0
  %1754 = vmatprep.subr.mxu0 0.0
  %1755 = vmatpush1.msra.mxu0 0.0
  %1756 = vmatprep.subr.mxu0 0.0
  %1757 = vmatpush1.msra.mxu0 0.0
  %1758 = vmatprep.subr.mxu0 0.0
  %1759 = vmatpush1.msra.mxu0 0.0
  %1760 = vmatprep.subr.mxu0 0.0
  %1761 = vmatpush1.msra.mxu0 0.0
  %1762 = vmatprep.subr.mxu0 0.0
  %1763 = vmatpush1.msra.mxu0 0.0
  %1764 = vmatprep.subr.mxu0 0.0
  %1765 = vmatpush1.msra.mxu0 0.0
  %1766 = vmatprep.mubr.f32.mxu0 0.0
  %1767 = vmatmul.mubr.f32.gmra.mrb[0].mxu0 %v1689
  %v1768 = vpop.f32.mrb[0].mxu0
  %v1769 = vadd.f32 %v1693, %v1768
  %v1770 = vpop.f32.mrb[0].mxu0
  %v1771 = vadd.f32 %v1697, %v1770
  %1772 = vdwg.mxu0
  %1773 = vmatprep.subr.mxu0 0.0
  %1774 = vmatpush1.msra.mxu0 %v1372
  %1775 = vmatprep.subr.mxu0 0.0
  %1776 = vmatpush1.msra.mxu0 %v1375
  %1777 = vmatprep.subr.mxu0 0.0
  %1778 = vmatpush1.msra.mxu0 %v1378
  %1779 = vmatprep.subr.mxu0 0.0
  %1780 = vmatpush1.msra.mxu0 %v1381
  %1781 = vmatprep.subr.mxu0 0.0
  %1782 = vmatpush1.msra.mxu0 %v1384
  %1783 = vmatprep.subr.mxu0 0.0
  %1784 = vmatpush1.msra.mxu0 %v1387
  %1785 = vmatprep.subr.mxu0 0.0
  %1786 = vmatpush1.msra.mxu0 %v1390
  %1787 = vmatprep.subr.mxu0 0.0
  %1788 = vmatpush1.msra.mxu0 %v1393
  %1789 = vmatprep.subr.mxu0 0.0
  %1790 = vmatpush1.msra.mxu0 %v1396
  %1791 = vmatprep.subr.mxu0 0.0
  %1792 = vmatpush1.msra.mxu0 %v1399
  %1793 = vmatprep.subr.mxu0 0.0
  %1794 = vmatpush1.msra.mxu0 %v1402
  %1795 = vmatprep.subr.mxu0 0.0
  %1796 = vmatpush1.msra.mxu0 %v1405
  %1797 = vmatprep.subr.mxu0 0.0
  %1798 = vmatpush1.msra.mxu0 %v1408
  %1799 = vmatprep.subr.mxu0 0.0
  %1800 = vmatpush1.msra.mxu0 %v1411
  %1801 = vmatprep.subr.mxu0 0.0
  %1802 = vmatpush1.msra.mxu0 %v1414
  %1803 = vmatprep.subr.mxu0 0.0
  %1804 = vmatpush1.msra.mxu0 %v1417
  %1805 = vmatprep.subr.mxu0 0.0
  %1806 = vmatpush1.msra.mxu0 0.0
  %1807 = vmatprep.subr.mxu0 0.0
  %1808 = vmatpush1.msra.mxu0 0.0
  %1809 = vmatprep.subr.mxu0 0.0
  %1810 = vmatpush1.msra.mxu0 0.0
  %1811 = vmatprep.subr.mxu0 0.0
  %1812 = vmatpush1.msra.mxu0 0.0
  %1813 = vmatprep.subr.mxu0 0.0
  %1814 = vmatpush1.msra.mxu0 0.0
  %1815 = vmatprep.subr.mxu0 0.0
  %1816 = vmatpush1.msra.mxu0 0.0
  %1817 = vmatprep.subr.mxu0 0.0
  %1818 = vmatpush1.msra.mxu0 0.0
  %1819 = vmatprep.subr.mxu0 0.0
  %1820 = vmatpush1.msra.mxu0 0.0
  %1821 = vmatprep.subr.mxu0 0.0
  %1822 = vmatpush1.msra.mxu0 0.0
  %1823 = vmatprep.subr.mxu0 0.0
  %1824 = vmatpush1.msra.mxu0 0.0
  %1825 = vmatprep.subr.mxu0 0.0
  %1826 = vmatpush1.msra.mxu0 0.0
  %1827 = vmatprep.subr.mxu0 0.0
  %1828 = vmatpush1.msra.mxu0 0.0
  %1829 = vmatprep.subr.mxu0 0.0
  %1830 = vmatpush1.msra.mxu0 0.0
  %1831 = vmatprep.subr.mxu0 0.0
  %1832 = vmatpush1.msra.mxu0 0.0
  %1833 = vmatprep.subr.mxu0 0.0
  %1834 = vmatpush1.msra.mxu0 0.0
  %1835 = vmatprep.subr.mxu0 0.0
  %1836 = vmatpush1.msra.mxu0 0.0
  %1837 = vmatprep.mubr.f32.mxu0 0.0
  %1838 = vmatmul.mubr.f32.gmra.mrb[0].mxu0 %v1689
  %v1839 = vpop.f32.mrb[0].mxu0
  %v1840 = vadd.f32 %v1701, %v1839
  %v1841 = vpop.f32.mrb[0].mxu0
  %1842 = vdwg.mxu0
  %v1843 = vlaneseq
  %v1844 = vshrl.u32 %v1843, 7
  %v1845 = vsub.s32 3, %v1844
  %v1846 = vrot.slane %v1011, %v1845
  %v1847 = vlaneseq
  %v1848 = vshrl.u32 %v1847, 7
  %v1849 = vsub.s32 3, %v1848
  %v1850 = vrot.slane %v1012, %v1849
  %v1851 = vlaneseq
  %v1852 = vshrl.u32 %v1851, 7
  %v1853 = vsub.s32 3, %v1852
  %v1854 = vrot.slane %v1013, %v1853
  %1855 = vmatprep.subr.mxu0 %v1420
  %1856 = vmatpush1.msra.mxu0 %v1419
  %1857 = vmatprep.subr.mxu0 %v1423
  %1858 = vmatpush1.msra.mxu0 %v1422
  %1859 = vmatprep.subr.mxu0 %v1426
  %1860 = vmatpush1.msra.mxu0 %v1425
  %1861 = vmatprep.subr.mxu0 %v1429
  %1862 = vmatpush1.msra.mxu0 %v1428
  %1863 = vmatprep.subr.mxu0 %v1432
  %1864 = vmatpush1.msra.mxu0 %v1431
  %1865 = vmatprep.subr.mxu0 %v1435
  %1866 = vmatpush1.msra.mxu0 %v1434
  %1867 = vmatprep.subr.mxu0 %v1438
  %1868 = vmatpush1.msra.mxu0 %v1437
  %1869 = vmatprep.subr.mxu0 %v1441
  %1870 = vmatpush1.msra.mxu0 %v1440
  %1871 = vmatprep.subr.mxu0 %v1444
  %1872 = vmatpush1.msra.mxu0 %v1443
  %1873 = vmatprep.subr.mxu0 %v1447
  %1874 = vmatpush1.msra.mxu0 %v1446
  %1875 = vmatprep.subr.mxu0 %v1450
  %1876 = vmatpush1.msra.mxu0 %v1449
  %1877 = vmatprep.subr.mxu0 %v1453
  %1878 = vmatpush1.msra.mxu0 %v1452
  %1879 = vmatprep.subr.mxu0 %v1456
  %1880 = vmatpush1.msra.mxu0 %v1455
  %1881 = vmatprep.subr.mxu0 %v1459
  %1882 = vmatpush1.msra.mxu0 %v1458
  %1883 = vmatprep.subr.mxu0 %v1462
  %1884 = vmatpush1.msra.mxu0 %v1461
  %1885 = vmatprep.subr.mxu0 %v1465
  %1886 = vmatpush1.msra.mxu0 %v1464
  %1887 = vmatprep.subr.mxu0 0.0
  %1888 = vmatpush1.msra.mxu0 0.0
  %1889 = vmatprep.subr.mxu0 0.0
  %1890 = vmatpush1.msra.mxu0 0.0
  %1891 = vmatprep.subr.mxu0 0.0
  %1892 = vmatpush1.msra.mxu0 0.0
  %1893 = vmatprep.subr.mxu0 0.0
  %1894 = vmatpush1.msra.mxu0 0.0
  %1895 = vmatprep.subr.mxu0 0.0
  %1896 = vmatpush1.msra.mxu0 0.0
  %1897 = vmatprep.subr.mxu0 0.0
  %1898 = vmatpush1.msra.mxu0 0.0
  %1899 = vmatprep.subr.mxu0 0.0
  %1900 = vmatpush1.msra.mxu0 0.0
  %1901 = vmatprep.subr.mxu0 0.0
  %1902 = vmatpush1.msra.mxu0 0.0
  %1903 = vmatprep.subr.mxu0 0.0
  %1904 = vmatpush1.msra.mxu0 0.0
  %1905 = vmatprep.subr.mxu0 0.0
  %1906 = vmatpush1.msra.mxu0 0.0
  %1907 = vmatprep.subr.mxu0 0.0
  %1908 = vmatpush1.msra.mxu0 0.0
  %1909 = vmatprep.subr.mxu0 0.0
  %1910 = vmatpush1.msra.mxu0 0.0
  %1911 = vmatprep.subr.mxu0 0.0
  %1912 = vmatpush1.msra.mxu0 0.0
  %1913 = vmatprep.subr.mxu0 0.0
  %1914 = vmatpush1.msra.mxu0 0.0
  %1915 = vmatprep.subr.mxu0 0.0
  %1916 = vmatpush1.msra.mxu0 0.0
  %1917 = vmatprep.subr.mxu0 0.0
  %1918 = vmatpush1.msra.mxu0 0.0
  %1919 = vmatprep.mubr.f32.mxu0 0.0
  %1920 = vmatmul.mubr.f32.gmra.mrb[0].mxu0 0.0
  %v1921 = vpop.f32.mrb[0].mxu0
  %v1922 = vadd.f32 %v1846, %v1921
  %v1923 = vpop.f32.mrb[0].mxu0
  %v1924 = vadd.f32 %v1850, %v1923
  %1925 = vdwg.mxu0
  %1926 = vmatprep.subr.mxu0 0.0
  %1927 = vmatpush1.msra.mxu0 %v1421
  %1928 = vmatprep.subr.mxu0 0.0
  %1929 = vmatpush1.msra.mxu0 %v1424
  %1930 = vmatprep.subr.mxu0 0.0
  %1931 = vmatpush1.msra.mxu0 %v1427
  %1932 = vmatprep.subr.mxu0 0.0
  %1933 = vmatpush1.msra.mxu0 %v1430
  %1934 = vmatprep.subr.mxu0 0.0
  %1935 = vmatpush1.msra.mxu0 %v1433
  %1936 = vmatprep.subr.mxu0 0.0
  %1937 = vmatpush1.msra.mxu0 %v1436
  %1938 = vmatprep.subr.mxu0 0.0
  %1939 = vmatpush1.msra.mxu0 %v1439
  %1940 = vmatprep.subr.mxu0 0.0
  %1941 = vmatpush1.msra.mxu0 %v1442
  %1942 = vmatprep.subr.mxu0 0.0
  %1943 = vmatpush1.msra.mxu0 %v1445
  %1944 = vmatprep.subr.mxu0 0.0
  %1945 = vmatpush1.msra.mxu0 %v1448
  %1946 = vmatprep.subr.mxu0 0.0
  %1947 = vmatpush1.msra.mxu0 %v1451
  %1948 = vmatprep.subr.mxu0 0.0
  %1949 = vmatpush1.msra.mxu0 %v1454
  %1950 = vmatprep.subr.mxu0 0.0
  %1951 = vmatpush1.msra.mxu0 %v1457
  %1952 = vmatprep.subr.mxu0 0.0
  %1953 = vmatpush1.msra.mxu0 %v1460
  %1954 = vmatprep.subr.mxu0 0.0
  %1955 = vmatpush1.msra.mxu0 %v1463
  %1956 = vmatprep.subr.mxu0 0.0
  %1957 = vmatpush1.msra.mxu0 %v1466
  %1958 = vmatprep.subr.mxu0 0.0
  %1959 = vmatpush1.msra.mxu0 0.0
  %1960 = vmatprep.subr.mxu0 0.0
  %1961 = vmatpush1.msra.mxu0 0.0
  %1962 = vmatprep.subr.mxu0 0.0
  %1963 = vmatpush1.msra.mxu0 0.0
  %1964 = vmatprep.subr.mxu0 0.0
  %1965 = vmatpush1.msra.mxu0 0.0
  %1966 = vmatprep.subr.mxu0 0.0
  %1967 = vmatpush1.msra.mxu0 0.0
  %1968 = vmatprep.subr.mxu0 0.0
  %1969 = vmatpush1.msra.mxu0 0.0
  %1970 = vmatprep.subr.mxu0 0.0
  %1971 = vmatpush1.msra.mxu0 0.0
  %1972 = vmatprep.subr.mxu0 0.0
  %1973 = vmatpush1.msra.mxu0 0.0
  %1974 = vmatprep.subr.mxu0 0.0
  %1975 = vmatpush1.msra.mxu0 0.0
  %1976 = vmatprep.subr.mxu0 0.0
  %1977 = vmatpush1.msra.mxu0 0.0
  %1978 = vmatprep.subr.mxu0 0.0
  %1979 = vmatpush1.msra.mxu0 0.0
  %1980 = vmatprep.subr.mxu0 0.0
  %1981 = vmatpush1.msra.mxu0 0.0
  %1982 = vmatprep.subr.mxu0 0.0
  %1983 = vmatpush1.msra.mxu0 0.0
  %1984 = vmatprep.subr.mxu0 0.0
  %1985 = vmatpush1.msra.mxu0 0.0
  %1986 = vmatprep.subr.mxu0 0.0
  %1987 = vmatpush1.msra.mxu0 0.0
  %1988 = vmatprep.subr.mxu0 0.0
  %1989 = vmatpush1.msra.mxu0 0.0
  %1990 = vmatprep.mubr.f32.mxu0 0.0
  %1991 = vmatmul.mubr.f32.gmra.mrb[0].mxu0 0.0
  %v1992 = vpop.f32.mrb[0].mxu0
  %v1993 = vadd.f32 %v1854, %v1992
  %v1994 = vpop.f32.mrb[0].mxu0
  %1995 = vdwg.mxu0
  %v1996 = vadd.f32 %v1769, %v1922
  %v1997 = vadd.f32 %v1771, %v1924
  %v1998 = vxor.u32 %v1996, 2147483648
  %v1999 = vxor.u32 %v1997, 2147483648
  %v2000 = vmul.f32 %v1998, 1.442695
  %v2001 = vpow.pop %v2000
  %v2002 = vmul.f32 %v1999, 1.442695
  %v2003 = vpow.pop %v2002
  %v2004 = vadd.f32 %v2001, 1.0
  %v2005 = vadd.f32 %v2003, 1.0
  %v2006 = vrcp.pop %v2004
  %v2007 = vmul.f32 1.0, %v2006
  %v2008 = vrcp.pop %v2005
  %v2009 = vmul.f32 1.0, %v2008
  %v2010 = vmul.f32 %v2007, %v1993
  %v2011 = vadd.f32 %v1840, %v2010
  %v2012 = vtanh.pop %v2011
  %v2013 = vsub.f32 1.0, %v2009
  %v2014 = vmul.f32 %v2013, %v2012
  %v2015 = vmul.f32 %v2009, 0.0
  %v2016 = vadd.f32 %v2014, %v2015
  %2017 = vmatprep.subr.mxu0 %v1322
  %2018 = vmatpush1.msra.mxu0 %v1321
  %2019 = vmatprep.subr.mxu0 %v1325
  %2020 = vmatpush1.msra.mxu0 %v1324
  %2021 = vmatprep.subr.mxu0 %v1328
  %2022 = vmatpush1.msra.mxu0 %v1327
  %2023 = vmatprep.subr.mxu0 %v1331
  %2024 = vmatpush1.msra.mxu0 %v1330
  %2025 = vmatprep.subr.mxu0 %v1334
  %2026 = vmatpush1.msra.mxu0 %v1333
  %2027 = vmatprep.subr.mxu0 %v1337
  %2028 = vmatpush1.msra.mxu0 %v1336
  %2029 = vmatprep.subr.mxu0 %v1340
  %2030 = vmatpush1.msra.mxu0 %v1339
  %2031 = vmatprep.subr.mxu0 %v1343
  %2032 = vmatpush1.msra.mxu0 %v1342
  %2033 = vmatprep.subr.mxu0 %v1346
  %2034 = vmatpush1.msra.mxu0 %v1345
  %2035 = vmatprep.subr.mxu0 %v1349
  %2036 = vmatpush1.msra.mxu0 %v1348
  %2037 = vmatprep.subr.mxu0 %v1352
  %2038 = vmatpush1.msra.mxu0 %v1351
  %2039 = vmatprep.subr.mxu0 %v1355
  %2040 = vmatpush1.msra.mxu0 %v1354
  %2041 = vmatprep.subr.mxu0 %v1358
  %2042 = vmatpush1.msra.mxu0 %v1357
  %2043 = vmatprep.subr.mxu0 %v1361
  %2044 = vmatpush1.msra.mxu0 %v1360
  %2045 = vmatprep.subr.mxu0 %v1364
  %2046 = vmatpush1.msra.mxu0 %v1363
  %2047 = vmatprep.subr.mxu0 %v1367
  %2048 = vmatpush1.msra.mxu0 %v1366
  %2049 = vmatprep.subr.mxu0 0.0
  %2050 = vmatpush1.msra.mxu0 0.0
  %2051 = vmatprep.subr.mxu0 0.0
  %2052 = vmatpush1.msra.mxu0 0.0
  %2053 = vmatprep.subr.mxu0 0.0
  %2054 = vmatpush1.msra.mxu0 0.0
  %2055 = vmatprep.subr.mxu0 0.0
  %2056 = vmatpush1.msra.mxu0 0.0
  %2057 = vmatprep.subr.mxu0 0.0
  %2058 = vmatpush1.msra.mxu0 0.0
  %2059 = vmatprep.subr.mxu0 0.0
  %2060 = vmatpush1.msra.mxu0 0.0
  %2061 = vmatprep.subr.mxu0 0.0
  %2062 = vmatpush1.msra.mxu0 0.0
  %2063 = vmatprep.subr.mxu0 0.0
  %2064 = vmatpush1.msra.mxu0 0.0
  %2065 = vmatprep.subr.mxu0 0.0
  %2066 = vmatpush1.msra.mxu0 0.0
  %2067 = vmatprep.subr.mxu0 0.0
  %2068 = vmatpush1.msra.mxu0 0.0
  %2069 = vmatprep.subr.mxu0 0.0
  %2070 = vmatpush1.msra.mxu0 0.0
  %2071 = vmatprep.subr.mxu0 0.0
  %2072 = vmatpush1.msra.mxu0 0.0
  %2073 = vmatprep.subr.mxu0 0.0
  %2074 = vmatpush1.msra.mxu0 0.0
  %2075 = vmatprep.subr.mxu0 0.0
  %2076 = vmatpush1.msra.mxu0 0.0
  %2077 = vmatprep.subr.mxu0 0.0
  %2078 = vmatpush1.msra.mxu0 0.0
  %2079 = vmatprep.subr.mxu0 0.0
  %2080 = vmatpush1.msra.mxu0 0.0
  %2081 = vmatprep.mubr.f32.mxu0 0.0
  %2082 = vmatmul.mubr.f32.gmra.mrb[0].mxu0 %v1689
  %v2083 = vpop.f32.mrb[0].mxu0
  %v2084 = vadd.f32 %v1519, %v2083
  %v2085 = vpop.f32.mrb[0].mxu0
  %v2086 = vadd.f32 %v1523, %v2085
  %2087 = vdwg.mxu0
  %2088 = vmatprep.subr.mxu0 0.0
  %2089 = vmatpush1.msra.mxu0 %v1323
  %2090 = vmatprep.subr.mxu0 0.0
  %2091 = vmatpush1.msra.mxu0 %v1326
  %2092 = vmatprep.subr.mxu0 0.0
  %2093 = vmatpush1.msra.mxu0 %v1329
  %2094 = vmatprep.subr.mxu0 0.0
  %2095 = vmatpush1.msra.mxu0 %v1332
  %2096 = vmatprep.subr.mxu0 0.0
  %2097 = vmatpush1.msra.mxu0 %v1335
  %2098 = vmatprep.subr.mxu0 0.0
  %2099 = vmatpush1.msra.mxu0 %v1338
  %2100 = vmatprep.subr.mxu0 0.0
  %2101 = vmatpush1.msra.mxu0 %v1341
  %2102 = vmatprep.subr.mxu0 0.0
  %2103 = vmatpush1.msra.mxu0 %v1344
  %2104 = vmatprep.subr.mxu0 0.0
  %2105 = vmatpush1.msra.mxu0 %v1347
  %2106 = vmatprep.subr.mxu0 0.0
  %2107 = vmatpush1.msra.mxu0 %v1350
  %2108 = vmatprep.subr.mxu0 0.0
  %2109 = vmatpush1.msra.mxu0 %v1353
  %2110 = vmatprep.subr.mxu0 0.0
  %2111 = vmatpush1.msra.mxu0 %v1356
  %2112 = vmatprep.subr.mxu0 0.0
  %2113 = vmatpush1.msra.mxu0 %v1359
  %2114 = vmatprep.subr.mxu0 0.0
  %2115 = vmatpush1.msra.mxu0 %v1362
  %2116 = vmatprep.subr.mxu0 0.0
  %2117 = vmatpush1.msra.mxu0 %v1365
  %2118 = vmatprep.subr.mxu0 0.0
  %2119 = vmatpush1.msra.mxu0 %v1368
  %2120 = vmatprep.subr.mxu0 0.0
  %2121 = vmatpush1.msra.mxu0 0.0
  %2122 = vmatprep.subr.mxu0 0.0
  %2123 = vmatpush1.msra.mxu0 0.0
  %2124 = vmatprep.subr.mxu0 0.0
  %2125 = vmatpush1.msra.mxu0 0.0
  %2126 = vmatprep.subr.mxu0 0.0
  %2127 = vmatpush1.msra.mxu0 0.0
  %2128 = vmatprep.subr.mxu0 0.0
  %2129 = vmatpush1.msra.mxu0 0.0
  %2130 = vmatprep.subr.mxu0 0.0
  %2131 = vmatpush1.msra.mxu0 0.0
  %2132 = vmatprep.subr.mxu0 0.0
  %2133 = vmatpush1.msra.mxu0 0.0
  %2134 = vmatprep.subr.mxu0 0.0
  %2135 = vmatpush1.msra.mxu0 0.0
  %2136 = vmatprep.subr.mxu0 0.0
  %2137 = vmatpush1.msra.mxu0 0.0
  %2138 = vmatprep.subr.mxu0 0.0
  %2139 = vmatpush1.msra.mxu0 0.0
  %2140 = vmatprep.subr.mxu0 0.0
  %2141 = vmatpush1.msra.mxu0 0.0
  %2142 = vmatprep.subr.mxu0 0.0
  %2143 = vmatpush1.msra.mxu0 0.0
  %2144 = vmatprep.subr.mxu0 0.0
  %2145 = vmatpush1.msra.mxu0 0.0
  %2146 = vmatprep.subr.mxu0 0.0
  %2147 = vmatpush1.msra.mxu0 0.0
  %2148 = vmatprep.subr.mxu0 0.0
  %2149 = vmatpush1.msra.mxu0 0.0
  %2150 = vmatprep.subr.mxu0 0.0
  %2151 = vmatpush1.msra.mxu0 0.0
  %2152 = vmatprep.mubr.f32.mxu0 0.0
  %2153 = vmatmul.mubr.f32.gmra.mrb[0].mxu0 %v1689
  %v2154 = vpop.f32.mrb[0].mxu0
  %v2155 = vadd.f32 %v1527, %v2154
  %v2156 = vpop.f32.mrb[0].mxu0
  %2157 = vdwg.mxu0
  %v2158 = vadd.f32 %v1318, %v2084
  %v2159 = vadd.f32 %v1319, %v2086
  %v2160 = vxor.u32 %v2158, 2147483648
  %v2161 = vxor.u32 %v2159, 2147483648
  %v2162 = vmul.f32 %v2160, 1.442695
  %v2163 = vpow.pop %v2162
  %v2164 = vmul.f32 %v2161, 1.442695
  %v2165 = vpow.pop %v2164
  %v2166 = vadd.f32 %v2163, 1.0
  %v2167 = vadd.f32 %v2165, 1.0
  %v2168 = vrcp.pop %v2166
  %v2169 = vmul.f32 1.0, %v2168
  %v2170 = vrcp.pop %v2167
  %v2171 = vmul.f32 1.0, %v2170
  %v2172 = vmul.f32 %v2169, %v2155
  %v2173 = vadd.f32 %v1320, %v2172
  %v2174 = vtanh.pop %v2173
  %v2175 = vsub.f32 1.0, %v2171
  %v2176 = vmul.f32 %v2175, %v2174
  %v2177 = vmul.f32 %v2171, %v1689
  %v2178 = vadd.f32 %v2176, %v2177
  %2179 = vmatprep.subr.mxu0 %v1371
  %2180 = vmatpush1.msra.mxu0 %v1370
  %2181 = vmatprep.subr.mxu0 %v1374
  %2182 = vmatpush1.msra.mxu0 %v1373
  %2183 = vmatprep.subr.mxu0 %v1377
  %2184 = vmatpush1.msra.mxu0 %v1376
  %2185 = vmatprep.subr.mxu0 %v1380
  %2186 = vmatpush1.msra.mxu0 %v1379
  %2187 = vmatprep.subr.mxu0 %v1383
  %2188 = vmatpush1.msra.mxu0 %v1382
  %2189 = vmatprep.subr.mxu0 %v1386
  %2190 = vmatpush1.msra.mxu0 %v1385
  %2191 = vmatprep.subr.mxu0 %v1389
  %2192 = vmatpush1.msra.mxu0 %v1388
  %2193 = vmatprep.subr.mxu0 %v1392
  %2194 = vmatpush1.msra.mxu0 %v1391
  %2195 = vmatprep.subr.mxu0 %v1395
  %2196 = vmatpush1.msra.mxu0 %v1394
  %2197 = vmatprep.subr.mxu0 %v1398
  %2198 = vmatpush1.msra.mxu0 %v1397
  %2199 = vmatprep.subr.mxu0 %v1401
  %2200 = vmatpush1.msra.mxu0 %v1400
  %2201 = vmatprep.subr.mxu0 %v1404
  %2202 = vmatpush1.msra.mxu0 %v1403
  %2203 = vmatprep.subr.mxu0 %v1407
  %2204 = vmatpush1.msra.mxu0 %v1406
  %2205 = vmatprep.subr.mxu0 %v1410
  %2206 = vmatpush1.msra.mxu0 %v1409
  %2207 = vmatprep.subr.mxu0 %v1413
  %2208 = vmatpush1.msra.mxu0 %v1412
  %2209 = vmatprep.subr.mxu0 %v1416
  %2210 = vmatpush1.msra.mxu0 %v1415
  %2211 = vmatprep.subr.mxu0 0.0
  %2212 = vmatpush1.msra.mxu0 0.0
  %2213 = vmatprep.subr.mxu0 0.0
  %2214 = vmatpush1.msra.mxu0 0.0
  %2215 = vmatprep.subr.mxu0 0.0
  %2216 = vmatpush1.msra.mxu0 0.0
  %2217 = vmatprep.subr.mxu0 0.0
  %2218 = vmatpush1.msra.mxu0 0.0
  %2219 = vmatprep.subr.mxu0 0.0
  %2220 = vmatpush1.msra.mxu0 0.0
  %2221 = vmatprep.subr.mxu0 0.0
  %2222 = vmatpush1.msra.mxu0 0.0
  %2223 = vmatprep.subr.mxu0 0.0
  %2224 = vmatpush1.msra.mxu0 0.0
  %2225 = vmatprep.subr.mxu0 0.0
  %2226 = vmatpush1.msra.mxu0 0.0
  %2227 = vmatprep.subr.mxu0 0.0
  %2228 = vmatpush1.msra.mxu0 0.0
  %2229 = vmatprep.subr.mxu0 0.0
  %2230 = vmatpush1.msra.mxu0 0.0
  %2231 = vmatprep.subr.mxu0 0.0
  %2232 = vmatpush1.msra.mxu0 0.0
  %2233 = vmatprep.subr.mxu0 0.0
  %2234 = vmatpush1.msra.mxu0 0.0
  %2235 = vmatprep.subr.mxu0 0.0
  %2236 = vmatpush1.msra.mxu0 0.0
  %2237 = vmatprep.subr.mxu0 0.0
  %2238 = vmatpush1.msra.mxu0 0.0
  %2239 = vmatprep.subr.mxu0 0.0
  %2240 = vmatpush1.msra.mxu0 0.0
  %2241 = vmatprep.subr.mxu0 0.0
  %2242 = vmatpush1.msra.mxu0 0.0
  %2243 = vmatprep.mubr.f32.mxu0 0.0
  %2244 = vmatmul.mubr.f32.gmra.mrb[0].mxu0 %v2178
  %v2245 = vpop.f32.mrb[0].mxu0
  %v2246 = vadd.f32 %v1693, %v2245
  %v2247 = vpop.f32.mrb[0].mxu0
  %v2248 = vadd.f32 %v1697, %v2247
  %2249 = vdwg.mxu0
  %2250 = vmatprep.subr.mxu0 0.0
  %2251 = vmatpush1.msra.mxu0 %v1372
  %2252 = vmatprep.subr.mxu0 0.0
  %2253 = vmatpush1.msra.mxu0 %v1375
  %2254 = vmatprep.subr.mxu0 0.0
  %2255 = vmatpush1.msra.mxu0 %v1378
  %2256 = vmatprep.subr.mxu0 0.0
  %2257 = vmatpush1.msra.mxu0 %v1381
  %2258 = vmatprep.subr.mxu0 0.0
  %2259 = vmatpush1.msra.mxu0 %v1384
  %2260 = vmatprep.subr.mxu0 0.0
  %2261 = vmatpush1.msra.mxu0 %v1387
  %2262 = vmatprep.subr.mxu0 0.0
  %2263 = vmatpush1.msra.mxu0 %v1390
  %2264 = vmatprep.subr.mxu0 0.0
  %2265 = vmatpush1.msra.mxu0 %v1393
  %2266 = vmatprep.subr.mxu0 0.0
  %2267 = vmatpush1.msra.mxu0 %v1396
  %2268 = vmatprep.subr.mxu0 0.0
  %2269 = vmatpush1.msra.mxu0 %v1399
  %2270 = vmatprep.subr.mxu0 0.0
  %2271 = vmatpush1.msra.mxu0 %v1402
  %2272 = vmatprep.subr.mxu0 0.0
  %2273 = vmatpush1.msra.mxu0 %v1405
  %2274 = vmatprep.subr.mxu0 0.0
  %2275 = vmatpush1.msra.mxu0 %v1408
  %2276 = vmatprep.subr.mxu0 0.0
  %2277 = vmatpush1.msra.mxu0 %v1411
  %2278 = vmatprep.subr.mxu0 0.0
  %2279 = vmatpush1.msra.mxu0 %v1414
  %2280 = vmatprep.subr.mxu0 0.0
  %2281 = vmatpush1.msra.mxu0 %v1417
  %2282 = vmatprep.subr.mxu0 0.0
  %2283 = vmatpush1.msra.mxu0 0.0
  %2284 = vmatprep.subr.mxu0 0.0
  %2285 = vmatpush1.msra.mxu0 0.0
  %2286 = vmatprep.subr.mxu0 0.0
  %2287 = vmatpush1.msra.mxu0 0.0
  %2288 = vmatprep.subr.mxu0 0.0
  %2289 = vmatpush1.msra.mxu0 0.0
  %2290 = vmatprep.subr.mxu0 0.0
  %2291 = vmatpush1.msra.mxu0 0.0
  %2292 = vmatprep.subr.mxu0 0.0
  %2293 = vmatpush1.msra.mxu0 0.0
  %2294 = vmatprep.subr.mxu0 0.0
  %2295 = vmatpush1.msra.mxu0 0.0
  %2296 = vmatprep.subr.mxu0 0.0
  %2297 = vmatpush1.msra.mxu0 0.0
  %2298 = vmatprep.subr.mxu0 0.0
  %2299 = vmatpush1.msra.mxu0 0.0
  %2300 = vmatprep.subr.mxu0 0.0
  %2301 = vmatpush1.msra.mxu0 0.0
  %2302 = vmatprep.subr.mxu0 0.0
  %2303 = vmatpush1.msra.mxu0 0.0
  %2304 = vmatprep.subr.mxu0 0.0
  %2305 = vmatpush1.msra.mxu0 0.0
  %2306 = vmatprep.subr.mxu0 0.0
  %2307 = vmatpush1.msra.mxu0 0.0
  %2308 = vmatprep.subr.mxu0 0.0
  %2309 = vmatpush1.msra.mxu0 0.0
  %2310 = vmatprep.subr.mxu0 0.0
  %2311 = vmatpush1.msra.mxu0 0.0
  %2312 = vmatprep.subr.mxu0 0.0
  %2313 = vmatpush1.msra.mxu0 0.0
  %2314 = vmatprep.mubr.f32.mxu0 0.0
  %2315 = vmatmul.mubr.f32.gmra.mrb[0].mxu0 %v2178
  %v2316 = vpop.f32.mrb[0].mxu0
  %v2317 = vadd.f32 %v1701, %v2316
  %v2318 = vpop.f32.mrb[0].mxu0
  %2319 = vdwg.mxu0
  %2320 = vmatprep.subr.mxu0 %v1420
  %2321 = vmatpush1.msra.mxu0 %v1419
  %2322 = vmatprep.subr.mxu0 %v1423
  %2323 = vmatpush1.msra.mxu0 %v1422
  %2324 = vmatprep.subr.mxu0 %v1426
  %2325 = vmatpush1.msra.mxu0 %v1425
  %2326 = vmatprep.subr.mxu0 %v1429
  %2327 = vmatpush1.msra.mxu0 %v1428
  %2328 = vmatprep.subr.mxu0 %v1432
  %2329 = vmatpush1.msra.mxu0 %v1431
  %2330 = vmatprep.subr.mxu0 %v1435
  %2331 = vmatpush1.msra.mxu0 %v1434
  %2332 = vmatprep.subr.mxu0 %v1438
  %2333 = vmatpush1.msra.mxu0 %v1437
  %2334 = vmatprep.subr.mxu0 %v1441
  %2335 = vmatpush1.msra.mxu0 %v1440
  %2336 = vmatprep.subr.mxu0 %v1444
  %2337 = vmatpush1.msra.mxu0 %v1443
  %2338 = vmatprep.subr.mxu0 %v1447
  %2339 = vmatpush1.msra.mxu0 %v1446
  %2340 = vmatprep.subr.mxu0 %v1450
  %2341 = vmatpush1.msra.mxu0 %v1449
  %2342 = vmatprep.subr.mxu0 %v1453
  %2343 = vmatpush1.msra.mxu0 %v1452
  %2344 = vmatprep.subr.mxu0 %v1456
  %2345 = vmatpush1.msra.mxu0 %v1455
  %2346 = vmatprep.subr.mxu0 %v1459
  %2347 = vmatpush1.msra.mxu0 %v1458
  %2348 = vmatprep.subr.mxu0 %v1462
  %2349 = vmatpush1.msra.mxu0 %v1461
  %2350 = vmatprep.subr.mxu0 %v1465
  %2351 = vmatpush1.msra.mxu0 %v1464
  %2352 = vmatprep.subr.mxu0 0.0
  %2353 = vmatpush1.msra.mxu0 0.0
  %2354 = vmatprep.subr.mxu0 0.0
  %2355 = vmatpush1.msra.mxu0 0.0
  %2356 = vmatprep.subr.mxu0 0.0
  %2357 = vmatpush1.msra.mxu0 0.0
  %2358 = vmatprep.subr.mxu0 0.0
  %2359 = vmatpush1.msra.mxu0 0.0
  %2360 = vmatprep.subr.mxu0 0.0
  %2361 = vmatpush1.msra.mxu0 0.0
  %2362 = vmatprep.subr.mxu0 0.0
  %2363 = vmatpush1.msra.mxu0 0.0
  %2364 = vmatprep.subr.mxu0 0.0
  %2365 = vmatpush1.msra.mxu0 0.0
  %2366 = vmatprep.subr.mxu0 0.0
  %2367 = vmatpush1.msra.mxu0 0.0
  %2368 = vmatprep.subr.mxu0 0.0
  %2369 = vmatpush1.msra.mxu0 0.0
  %2370 = vmatprep.subr.mxu0 0.0
  %2371 = vmatpush1.msra.mxu0 0.0
  %2372 = vmatprep.subr.mxu0 0.0
  %2373 = vmatpush1.msra.mxu0 0.0
  %2374 = vmatprep.subr.mxu0 0.0
  %2375 = vmatpush1.msra.mxu0 0.0
  %2376 = vmatprep.subr.mxu0 0.0
  %2377 = vmatpush1.msra.mxu0 0.0
  %2378 = vmatprep.subr.mxu0 0.0
  %2379 = vmatpush1.msra.mxu0 0.0
  %2380 = vmatprep.subr.mxu0 0.0
  %2381 = vmatpush1.msra.mxu0 0.0
  %2382 = vmatprep.subr.mxu0 0.0
  %2383 = vmatpush1.msra.mxu0 0.0
  %2384 = vmatprep.mubr.f32.mxu0 0.0
  %2385 = vmatmul.mubr.f32.gmra.mrb[0].mxu0 %v2016
  %v2386 = vpop.f32.mrb[0].mxu0
  %v2387 = vadd.f32 %v1846, %v2386
  %v2388 = vpop.f32.mrb[0].mxu0
  %v2389 = vadd.f32 %v1850, %v2388
  %2390 = vdwg.mxu0
  %2391 = vmatprep.subr.mxu0 0.0
  %2392 = vmatpush1.msra.mxu0 %v1421
  %2393 = vmatprep.subr.mxu0 0.0
  %2394 = vmatpush1.msra.mxu0 %v1424
  %2395 = vmatprep.subr.mxu0 0.0
  %2396 = vmatpush1.msra.mxu0 %v1427
  %2397 = vmatprep.subr.mxu0 0.0
  %2398 = vmatpush1.msra.mxu0 %v1430
  %2399 = vmatprep.subr.mxu0 0.0
  %2400 = vmatpush1.msra.mxu0 %v1433
  %2401 = vmatprep.subr.mxu0 0.0
  %2402 = vmatpush1.msra.mxu0 %v1436
  %2403 = vmatprep.subr.mxu0 0.0
  %2404 = vmatpush1.msra.mxu0 %v1439
  %2405 = vmatprep.subr.mxu0 0.0
  %2406 = vmatpush1.msra.mxu0 %v1442
  %2407 = vmatprep.subr.mxu0 0.0
  %2408 = vmatpush1.msra.mxu0 %v1445
  %2409 = vmatprep.subr.mxu0 0.0
  %2410 = vmatpush1.msra.mxu0 %v1448
  %2411 = vmatprep.subr.mxu0 0.0
  %2412 = vmatpush1.msra.mxu0 %v1451
  %2413 = vmatprep.subr.mxu0 0.0
  %2414 = vmatpush1.msra.mxu0 %v1454
  %2415 = vmatprep.subr.mxu0 0.0
  %2416 = vmatpush1.msra.mxu0 %v1457
  %2417 = vmatprep.subr.mxu0 0.0
  %2418 = vmatpush1.msra.mxu0 %v1460
  %2419 = vmatprep.subr.mxu0 0.0
  %2420 = vmatpush1.msra.mxu0 %v1463
  %2421 = vmatprep.subr.mxu0 0.0
  %2422 = vmatpush1.msra.mxu0 %v1466
  %2423 = vmatprep.subr.mxu0 0.0
  %2424 = vmatpush1.msra.mxu0 0.0
  %2425 = vmatprep.subr.mxu0 0.0
  %2426 = vmatpush1.msra.mxu0 0.0
  %2427 = vmatprep.subr.mxu0 0.0
  %2428 = vmatpush1.msra.mxu0 0.0
  %2429 = vmatprep.subr.mxu0 0.0
  %2430 = vmatpush1.msra.mxu0 0.0
  %2431 = vmatprep.subr.mxu0 0.0
  %2432 = vmatpush1.msra.mxu0 0.0
  %2433 = vmatprep.subr.mxu0 0.0
  %2434 = vmatpush1.msra.mxu0 0.0
  %2435 = vmatprep.subr.mxu0 0.0
  %2436 = vmatpush1.msra.mxu0 0.0
  %2437 = vmatprep.subr.mxu0 0.0
  %2438 = vmatpush1.msra.mxu0 0.0
  %2439 = vmatprep.subr.mxu0 0.0
  %2440 = vmatpush1.msra.mxu0 0.0
  %2441 = vmatprep.subr.mxu0 0.0
  %2442 = vmatpush1.msra.mxu0 0.0
  %2443 = vmatprep.subr.mxu0 0.0
  %2444 = vmatpush1.msra.mxu0 0.0
  %2445 = vmatprep.subr.mxu0 0.0
  %2446 = vmatpush1.msra.mxu0 0.0
  %2447 = vmatprep.subr.mxu0 0.0
  %2448 = vmatpush1.msra.mxu0 0.0
  %2449 = vmatprep.subr.mxu0 0.0
  %2450 = vmatpush1.msra.mxu0 0.0
  %2451 = vmatprep.subr.mxu0 0.0
  %2452 = vmatpush1.msra.mxu0 0.0
  %2453 = vmatprep.subr.mxu0 0.0
  %2454 = vmatpush1.msra.mxu0 0.0
  %2455 = vmatprep.mubr.f32.mxu0 0.0
  %2456 = vmatmul.mubr.f32.gmra.mrb[0].mxu0 %v2016
  %v2457 = vpop.f32.mrb[0].mxu0
  %v2458 = vadd.f32 %v1854, %v2457
  %v2459 = vpop.f32.mrb[0].mxu0
  %2460 = vdwg.mxu0
  %v2461 = vadd.f32 %v2246, %v2387
  %v2462 = vadd.f32 %v2248, %v2389
  %v2463 = vxor.u32 %v2461, 2147483648
  %v2464 = vxor.u32 %v2462, 2147483648
  %v2465 = vmul.f32 %v2463, 1.442695
  %v2466 = vpow.pop %v2465
  %v2467 = vmul.f32 %v2464, 1.442695
  %v2468 = vpow.pop %v2467
  %v2469 = vadd.f32 %v2466, 1.0
  %v2470 = vadd.f32 %v2468, 1.0
  %v2471 = vrcp.pop %v2469
  %v2472 = vmul.f32 1.0, %v2471
  %v2473 = vrcp.pop %v2470
  %v2474 = vmul.f32 1.0, %v2473
  %v2475 = vmul.f32 %v2472, %v2458
  %v2476 = vadd.f32 %v2317, %v2475
  %v2477 = vtanh.pop %v2476
  %v2478 = vsub.f32 1.0, %v2474
  %v2479 = vmul.f32 %v2478, %v2477
  %v2480 = vmul.f32 %v2474, %v2016
  %v2481 = vadd.f32 %v2479, %v2480
  %2482 = vmatprep.subr.mxu0 %v1322
  %2483 = vmatpush1.msra.mxu0 %v1321
  %2484 = vmatprep.subr.mxu0 %v1325
  %2485 = vmatpush1.msra.mxu0 %v1324
  %2486 = vmatprep.subr.mxu0 %v1328
  %2487 = vmatpush1.msra.mxu0 %v1327
  %2488 = vmatprep.subr.mxu0 %v1331
  %2489 = vmatpush1.msra.mxu0 %v1330
  %2490 = vmatprep.subr.mxu0 %v1334
  %2491 = vmatpush1.msra.mxu0 %v1333
  %2492 = vmatprep.subr.mxu0 %v1337
  %2493 = vmatpush1.msra.mxu0 %v1336
  %2494 = vmatprep.subr.mxu0 %v1340
  %2495 = vmatpush1.msra.mxu0 %v1339
  %2496 = vmatprep.subr.mxu0 %v1343
  %2497 = vmatpush1.msra.mxu0 %v1342
  %2498 = vmatprep.subr.mxu0 %v1346
  %2499 = vmatpush1.msra.mxu0 %v1345
  %2500 = vmatprep.subr.mxu0 %v1349
  %2501 = vmatpush1.msra.mxu0 %v1348
  %2502 = vmatprep.subr.mxu0 %v1352
  %2503 = vmatpush1.msra.mxu0 %v1351
  %2504 = vmatprep.subr.mxu0 %v1355
  %2505 = vmatpush1.msra.mxu0 %v1354
  %2506 = vmatprep.subr.mxu0 %v1358
  %2507 = vmatpush1.msra.mxu0 %v1357
  %2508 = vmatprep.subr.mxu0 %v1361
  %2509 = vmatpush1.msra.mxu0 %v1360
  %2510 = vmatprep.subr.mxu0 %v1364
  %2511 = vmatpush1.msra.mxu0 %v1363
  %2512 = vmatprep.subr.mxu0 %v1367
  %2513 = vmatpush1.msra.mxu0 %v1366
  %2514 = vmatprep.subr.mxu0 0.0
  %2515 = vmatpush1.msra.mxu0 0.0
  %2516 = vmatprep.subr.mxu0 0.0
  %2517 = vmatpush1.msra.mxu0 0.0
  %2518 = vmatprep.subr.mxu0 0.0
  %2519 = vmatpush1.msra.mxu0 0.0
  %2520 = vmatprep.subr.mxu0 0.0
  %2521 = vmatpush1.msra.mxu0 0.0
  %2522 = vmatprep.subr.mxu0 0.0
  %2523 = vmatpush1.msra.mxu0 0.0
  %2524 = vmatprep.subr.mxu0 0.0
  %2525 = vmatpush1.msra.mxu0 0.0
  %2526 = vmatprep.subr.mxu0 0.0
  %2527 = vmatpush1.msra.mxu0 0.0
  %2528 = vmatprep.subr.mxu0 0.0
  %2529 = vmatpush1.msra.mxu0 0.0
  %2530 = vmatprep.subr.mxu0 0.0
  %2531 = vmatpush1.msra.mxu0 0.0
  %2532 = vmatprep.subr.mxu0 0.0
  %2533 = vmatpush1.msra.mxu0 0.0
  %2534 = vmatprep.subr.mxu0 0.0
  %2535 = vmatpush1.msra.mxu0 0.0
  %2536 = vmatprep.subr.mxu0 0.0
  %2537 = vmatpush1.msra.mxu0 0.0
  %2538 = vmatprep.subr.mxu0 0.0
  %2539 = vmatpush1.msra.mxu0 0.0
  %2540 = vmatprep.subr.mxu0 0.0
  %2541 = vmatpush1.msra.mxu0 0.0
  %2542 = vmatprep.subr.mxu0 0.0
  %2543 = vmatpush1.msra.mxu0 0.0
  %2544 = vmatprep.subr.mxu0 0.0
  %2545 = vmatpush1.msra.mxu0 0.0
  %2546 = vmatprep.mubr.f32.mxu0 0.0
  %2547 = vmatmul.mubr.f32.gmra.mrb[0].mxu0 %v2178
  %v2548 = vpop.f32.mrb[0].mxu0
  %v2549 = vadd.f32 %v1519, %v2548
  %v2550 = vpop.f32.mrb[0].mxu0
  %v2551 = vadd.f32 %v1523, %v2550
  %2552 = vdwg.mxu0
  %2553 = vmatprep.subr.mxu0 0.0
  %2554 = vmatpush1.msra.mxu0 %v1323
  %2555 = vmatprep.subr.mxu0 0.0
  %2556 = vmatpush1.msra.mxu0 %v1326
  %2557 = vmatprep.subr.mxu0 0.0
  %2558 = vmatpush1.msra.mxu0 %v1329
  %2559 = vmatprep.subr.mxu0 0.0
  %2560 = vmatpush1.msra.mxu0 %v1332
  %2561 = vmatprep.subr.mxu0 0.0
  %2562 = vmatpush1.msra.mxu0 %v1335
  %2563 = vmatprep.subr.mxu0 0.0
  %2564 = vmatpush1.msra.mxu0 %v1338
  %2565 = vmatprep.subr.mxu0 0.0
  %2566 = vmatpush1.msra.mxu0 %v1341
  %2567 = vmatprep.subr.mxu0 0.0
  %2568 = vmatpush1.msra.mxu0 %v1344
  %2569 = vmatprep.subr.mxu0 0.0
  %2570 = vmatpush1.msra.mxu0 %v1347
  %2571 = vmatprep.subr.mxu0 0.0
  %2572 = vmatpush1.msra.mxu0 %v1350
  %2573 = vmatprep.subr.mxu0 0.0
  %2574 = vmatpush1.msra.mxu0 %v1353
  %2575 = vmatprep.subr.mxu0 0.0
  %2576 = vmatpush1.msra.mxu0 %v1356
  %2577 = vmatprep.subr.mxu0 0.0
  %2578 = vmatpush1.msra.mxu0 %v1359
  %2579 = vmatprep.subr.mxu0 0.0
  %2580 = vmatpush1.msra.mxu0 %v1362
  %2581 = vmatprep.subr.mxu0 0.0
  %2582 = vmatpush1.msra.mxu0 %v1365
  %2583 = vmatprep.subr.mxu0 0.0
  %2584 = vmatpush1.msra.mxu0 %v1368
  %2585 = vmatprep.subr.mxu0 0.0
  %2586 = vmatpush1.msra.mxu0 0.0
  %2587 = vmatprep.subr.mxu0 0.0
  %2588 = vmatpush1.msra.mxu0 0.0
  %2589 = vmatprep.subr.mxu0 0.0
  %2590 = vmatpush1.msra.mxu0 0.0
  %2591 = vmatprep.subr.mxu0 0.0
  %2592 = vmatpush1.msra.mxu0 0.0
  %2593 = vmatprep.subr.mxu0 0.0
  %2594 = vmatpush1.msra.mxu0 0.0
  %2595 = vmatprep.subr.mxu0 0.0
  %2596 = vmatpush1.msra.mxu0 0.0
  %2597 = vmatprep.subr.mxu0 0.0
  %2598 = vmatpush1.msra.mxu0 0.0
  %2599 = vmatprep.subr.mxu0 0.0
  %2600 = vmatpush1.msra.mxu0 0.0
  %2601 = vmatprep.subr.mxu0 0.0
  %2602 = vmatpush1.msra.mxu0 0.0
  %2603 = vmatprep.subr.mxu0 0.0
  %2604 = vmatpush1.msra.mxu0 0.0
  %2605 = vmatprep.subr.mxu0 0.0
  %2606 = vmatpush1.msra.mxu0 0.0
  %2607 = vmatprep.subr.mxu0 0.0
  %2608 = vmatpush1.msra.mxu0 0.0
  %2609 = vmatprep.subr.mxu0 0.0
  %2610 = vmatpush1.msra.mxu0 0.0
  %2611 = vmatprep.subr.mxu0 0.0
  %2612 = vmatpush1.msra.mxu0 0.0
  %2613 = vmatprep.subr.mxu0 0.0
  %2614 = vmatpush1.msra.mxu0 0.0
  %2615 = vmatprep.subr.mxu0 0.0
  %2616 = vmatpush1.msra.mxu0 0.0
  %2617 = vmatprep.mubr.f32.mxu0 0.0
  %2618 = vmatmul.mubr.f32.gmra.mrb[0].mxu0 %v2178
  %v2619 = vpop.f32.mrb[0].mxu0
  %v2620 = vadd.f32 %v1527, %v2619
  %v2621 = vpop.f32.mrb[0].mxu0
  %2622 = vdwg.mxu0
  %v2623 = vadd.f32 %v1318, %v2549
  %v2624 = vadd.f32 %v1319, %v2551
  %v2625 = vxor.u32 %v2623, 2147483648
  %v2626 = vxor.u32 %v2624, 2147483648
  %v2627 = vmul.f32 %v2625, 1.442695
  %v2628 = vpow.pop %v2627
  %v2629 = vmul.f32 %v2626, 1.442695
  %v2630 = vpow.pop %v2629
  %v2631 = vadd.f32 %v2628, 1.0
  %v2632 = vadd.f32 %v2630, 1.0
  %v2633 = vrcp.pop %v2631
  %v2634 = vmul.f32 1.0, %v2633
  %v2635 = vrcp.pop %v2632
  %v2636 = vmul.f32 1.0, %v2635
  %v2637 = vmul.f32 %v2634, %v2620
  %v2638 = vadd.f32 %v1320, %v2637
  %v2639 = vtanh.pop %v2638
  %v2640 = vsub.f32 1.0, %v2636
  %v2641 = vmul.f32 %v2640, %v2639
  %v2642 = vmul.f32 %v2636, %v2178
  %v2643 = vadd.f32 %v2641, %v2642
  %2644 = vmatprep.subr.mxu0 %v1371
  %2645 = vmatpush1.msra.mxu0 %v1370
  %2646 = vmatprep.subr.mxu0 %v1374
  %2647 = vmatpush1.msra.mxu0 %v1373
  %2648 = vmatprep.subr.mxu0 %v1377
  %2649 = vmatpush1.msra.mxu0 %v1376
  %2650 = vmatprep.subr.mxu0 %v1380
  %2651 = vmatpush1.msra.mxu0 %v1379
  %2652 = vmatprep.subr.mxu0 %v1383
  %2653 = vmatpush1.msra.mxu0 %v1382
  %2654 = vmatprep.subr.mxu0 %v1386
  %2655 = vmatpush1.msra.mxu0 %v1385
  %2656 = vmatprep.subr.mxu0 %v1389
  %2657 = vmatpush1.msra.mxu0 %v1388
  %2658 = vmatprep.subr.mxu0 %v1392
  %2659 = vmatpush1.msra.mxu0 %v1391
  %2660 = vmatprep.subr.mxu0 %v1395
  %2661 = vmatpush1.msra.mxu0 %v1394
  %2662 = vmatprep.subr.mxu0 %v1398
  %2663 = vmatpush1.msra.mxu0 %v1397
  %2664 = vmatprep.subr.mxu0 %v1401
  %2665 = vmatpush1.msra.mxu0 %v1400
  %2666 = vmatprep.subr.mxu0 %v1404
  %2667 = vmatpush1.msra.mxu0 %v1403
  %2668 = vmatprep.subr.mxu0 %v1407
  %2669 = vmatpush1.msra.mxu0 %v1406
  %2670 = vmatprep.subr.mxu0 %v1410
  %2671 = vmatpush1.msra.mxu0 %v1409
  %2672 = vmatprep.subr.mxu0 %v1413
  %2673 = vmatpush1.msra.mxu0 %v1412
  %2674 = vmatprep.subr.mxu0 %v1416
  %2675 = vmatpush1.msra.mxu0 %v1415
  %2676 = vmatprep.subr.mxu0 0.0
  %2677 = vmatpush1.msra.mxu0 0.0
  %2678 = vmatprep.subr.mxu0 0.0
  %2679 = vmatpush1.msra.mxu0 0.0
  %2680 = vmatprep.subr.mxu0 0.0
  %2681 = vmatpush1.msra.mxu0 0.0
  %2682 = vmatprep.subr.mxu0 0.0
  %2683 = vmatpush1.msra.mxu0 0.0
  %2684 = vmatprep.subr.mxu0 0.0
  %2685 = vmatpush1.msra.mxu0 0.0
  %2686 = vmatprep.subr.mxu0 0.0
  %2687 = vmatpush1.msra.mxu0 0.0
  %2688 = vmatprep.subr.mxu0 0.0
  %2689 = vmatpush1.msra.mxu0 0.0
  %2690 = vmatprep.subr.mxu0 0.0
  %2691 = vmatpush1.msra.mxu0 0.0
  %2692 = vmatprep.subr.mxu0 0.0
  %2693 = vmatpush1.msra.mxu0 0.0
  %2694 = vmatprep.subr.mxu0 0.0
  %2695 = vmatpush1.msra.mxu0 0.0
  %2696 = vmatprep.subr.mxu0 0.0
  %2697 = vmatpush1.msra.mxu0 0.0
  %2698 = vmatprep.subr.mxu0 0.0
  %2699 = vmatpush1.msra.mxu0 0.0
  %2700 = vmatprep.subr.mxu0 0.0
  %2701 = vmatpush1.msra.mxu0 0.0
  %2702 = vmatprep.subr.mxu0 0.0
  %2703 = vmatpush1.msra.mxu0 0.0
  %2704 = vmatprep.subr.mxu0 0.0
  %2705 = vmatpush1.msra.mxu0 0.0
  %2706 = vmatprep.subr.mxu0 0.0
  %2707 = vmatpush1.msra.mxu0 0.0
  %2708 = vmatprep.mubr.f32.mxu0 0.0
  %2709 = vmatmul.mubr.f32.gmra.mrb[0].mxu0 %v2643
  %v2710 = vpop.f32.mrb[0].mxu0
  %v2711 = vadd.f32 %v1693, %v2710
  %v2712 = vpop.f32.mrb[0].mxu0
  %v2713 = vadd.f32 %v1697, %v2712
  %2714 = vdwg.mxu0
  %2715 = vmatprep.subr.mxu0 0.0
  %2716 = vmatpush1.msra.mxu0 %v1372
  %2717 = vmatprep.subr.mxu0 0.0
  %2718 = vmatpush1.msra.mxu0 %v1375
  %2719 = vmatprep.subr.mxu0 0.0
  %2720 = vmatpush1.msra.mxu0 %v1378
  %2721 = vmatprep.subr.mxu0 0.0
  %2722 = vmatpush1.msra.mxu0 %v1381
  %2723 = vmatprep.subr.mxu0 0.0
  %2724 = vmatpush1.msra.mxu0 %v1384
  %2725 = vmatprep.subr.mxu0 0.0
  %2726 = vmatpush1.msra.mxu0 %v1387
  %2727 = vmatprep.subr.mxu0 0.0
  %2728 = vmatpush1.msra.mxu0 %v1390
  %2729 = vmatprep.subr.mxu0 0.0
  %2730 = vmatpush1.msra.mxu0 %v1393
  %2731 = vmatprep.subr.mxu0 0.0
  %2732 = vmatpush1.msra.mxu0 %v1396
  %2733 = vmatprep.subr.mxu0 0.0
  %2734 = vmatpush1.msra.mxu0 %v1399
  %2735 = vmatprep.subr.mxu0 0.0
  %2736 = vmatpush1.msra.mxu0 %v1402
  %2737 = vmatprep.subr.mxu0 0.0
  %2738 = vmatpush1.msra.mxu0 %v1405
  %2739 = vmatprep.subr.mxu0 0.0
  %2740 = vmatpush1.msra.mxu0 %v1408
  %2741 = vmatprep.subr.mxu0 0.0
  %2742 = vmatpush1.msra.mxu0 %v1411
  %2743 = vmatprep.subr.mxu0 0.0
  %2744 = vmatpush1.msra.mxu0 %v1414
  %2745 = vmatprep.subr.mxu0 0.0
  %2746 = vmatpush1.msra.mxu0 %v1417
  %2747 = vmatprep.subr.mxu0 0.0
  %2748 = vmatpush1.msra.mxu0 0.0
  %2749 = vmatprep.subr.mxu0 0.0
  %2750 = vmatpush1.msra.mxu0 0.0
  %2751 = vmatprep.subr.mxu0 0.0
  %2752 = vmatpush1.msra.mxu0 0.0
  %2753 = vmatprep.subr.mxu0 0.0
  %2754 = vmatpush1.msra.mxu0 0.0
  %2755 = vmatprep.subr.mxu0 0.0
  %2756 = vmatpush1.msra.mxu0 0.0
  %2757 = vmatprep.subr.mxu0 0.0
  %2758 = vmatpush1.msra.mxu0 0.0
  %2759 = vmatprep.subr.mxu0 0.0
  %2760 = vmatpush1.msra.mxu0 0.0
  %2761 = vmatprep.subr.mxu0 0.0
  %2762 = vmatpush1.msra.mxu0 0.0
  %2763 = vmatprep.subr.mxu0 0.0
  %2764 = vmatpush1.msra.mxu0 0.0
  %2765 = vmatprep.subr.mxu0 0.0
  %2766 = vmatpush1.msra.mxu0 0.0
  %2767 = vmatprep.subr.mxu0 0.0
  %2768 = vmatpush1.msra.mxu0 0.0
  %2769 = vmatprep.subr.mxu0 0.0
  %2770 = vmatpush1.msra.mxu0 0.0
  %2771 = vmatprep.subr.mxu0 0.0
  %2772 = vmatpush1.msra.mxu0 0.0
  %2773 = vmatprep.subr.mxu0 0.0
  %2774 = vmatpush1.msra.mxu0 0.0
  %2775 = vmatprep.subr.mxu0 0.0
  %2776 = vmatpush1.msra.mxu0 0.0
  %2777 = vmatprep.subr.mxu0 0.0
  %2778 = vmatpush1.msra.mxu0 0.0
  %2779 = vmatprep.mubr.f32.mxu0 0.0
  %2780 = vmatmul.mubr.f32.gmra.mrb[0].mxu0 %v2643
  %v2781 = vpop.f32.mrb[0].mxu0
  %v2782 = vadd.f32 %v1701, %v2781
  %v2783 = vpop.f32.mrb[0].mxu0
  %2784 = vdwg.mxu0
  %2785 = vmatprep.subr.mxu0 %v1420
  %2786 = vmatpush1.msra.mxu0 %v1419
  %2787 = vmatprep.subr.mxu0 %v1423
  %2788 = vmatpush1.msra.mxu0 %v1422
  %2789 = vmatprep.subr.mxu0 %v1426
  %2790 = vmatpush1.msra.mxu0 %v1425
  %2791 = vmatprep.subr.mxu0 %v1429
  %2792 = vmatpush1.msra.mxu0 %v1428
  %2793 = vmatprep.subr.mxu0 %v1432
  %2794 = vmatpush1.msra.mxu0 %v1431
  %2795 = vmatprep.subr.mxu0 %v1435
  %2796 = vmatpush1.msra.mxu0 %v1434
  %2797 = vmatprep.subr.mxu0 %v1438
  %2798 = vmatpush1.msra.mxu0 %v1437
  %2799 = vmatprep.subr.mxu0 %v1441
  %2800 = vmatpush1.msra.mxu0 %v1440
  %2801 = vmatprep.subr.mxu0 %v1444
  %2802 = vmatpush1.msra.mxu0 %v1443
  %2803 = vmatprep.subr.mxu0 %v1447
  %2804 = vmatpush1.msra.mxu0 %v1446
  %2805 = vmatprep.subr.mxu0 %v1450
  %2806 = vmatpush1.msra.mxu0 %v1449
  %2807 = vmatprep.subr.mxu0 %v1453
  %2808 = vmatpush1.msra.mxu0 %v1452
  %2809 = vmatprep.subr.mxu0 %v1456
  %2810 = vmatpush1.msra.mxu0 %v1455
  %2811 = vmatprep.subr.mxu0 %v1459
  %2812 = vmatpush1.msra.mxu0 %v1458
  %2813 = vmatprep.subr.mxu0 %v1462
  %2814 = vmatpush1.msra.mxu0 %v1461
  %2815 = vmatprep.subr.mxu0 %v1465
  %2816 = vmatpush1.msra.mxu0 %v1464
  %2817 = vmatprep.subr.mxu0 0.0
  %2818 = vmatpush1.msra.mxu0 0.0
  %2819 = vmatprep.subr.mxu0 0.0
  %2820 = vmatpush1.msra.mxu0 0.0
  %2821 = vmatprep.subr.mxu0 0.0
  %2822 = vmatpush1.msra.mxu0 0.0
  %2823 = vmatprep.subr.mxu0 0.0
  %2824 = vmatpush1.msra.mxu0 0.0
  %2825 = vmatprep.subr.mxu0 0.0
  %2826 = vmatpush1.msra.mxu0 0.0
  %2827 = vmatprep.subr.mxu0 0.0
  %2828 = vmatpush1.msra.mxu0 0.0
  %2829 = vmatprep.subr.mxu0 0.0
  %2830 = vmatpush1.msra.mxu0 0.0
  %2831 = vmatprep.subr.mxu0 0.0
  %2832 = vmatpush1.msra.mxu0 0.0
  %2833 = vmatprep.subr.mxu0 0.0
  %2834 = vmatpush1.msra.mxu0 0.0
  %2835 = vmatprep.subr.mxu0 0.0
  %2836 = vmatpush1.msra.mxu0 0.0
  %2837 = vmatprep.subr.mxu0 0.0
  %2838 = vmatpush1.msra.mxu0 0.0
  %2839 = vmatprep.subr.mxu0 0.0
  %2840 = vmatpush1.msra.mxu0 0.0
  %2841 = vmatprep.subr.mxu0 0.0
  %2842 = vmatpush1.msra.mxu0 0.0
  %2843 = vmatprep.subr.mxu0 0.0
  %2844 = vmatpush1.msra.mxu0 0.0
  %2845 = vmatprep.subr.mxu0 0.0
  %2846 = vmatpush1.msra.mxu0 0.0
  %2847 = vmatprep.subr.mxu0 0.0
  %2848 = vmatpush1.msra.mxu0 0.0
  %2849 = vmatprep.mubr.f32.mxu0 0.0
  %2850 = vmatmul.mubr.f32.gmra.mrb[0].mxu0 %v2481
  %v2851 = vpop.f32.mrb[0].mxu0
  %v2852 = vadd.f32 %v1846, %v2851
  %v2853 = vpop.f32.mrb[0].mxu0
  %v2854 = vadd.f32 %v1850, %v2853
  %2855 = vdwg.mxu0
  %2856 = vmatprep.subr.mxu0 0.0
  %2857 = vmatpush1.msra.mxu0 %v1421
  %2858 = vmatprep.subr.mxu0 0.0
  %2859 = vmatpush1.msra.mxu0 %v1424
  %2860 = vmatprep.subr.mxu0 0.0
  %2861 = vmatpush1.msra.mxu0 %v1427
  %2862 = vmatprep.subr.mxu0 0.0
  %2863 = vmatpush1.msra.mxu0 %v1430
  %2864 = vmatprep.subr.mxu0 0.0
  %2865 = vmatpush1.msra.mxu0 %v1433
  %2866 = vmatprep.subr.mxu0 0.0
  %2867 = vmatpush1.msra.mxu0 %v1436
  %2868 = vmatprep.subr.mxu0 0.0
  %2869 = vmatpush1.msra.mxu0 %v1439
  %2870 = vmatprep.subr.mxu0 0.0
  %2871 = vmatpush1.msra.mxu0 %v1442
  %2872 = vmatprep.subr.mxu0 0.0
  %2873 = vmatpush1.msra.mxu0 %v1445
  %2874 = vmatprep.subr.mxu0 0.0
  %2875 = vmatpush1.msra.mxu0 %v1448
  %2876 = vmatprep.subr.mxu0 0.0
  %2877 = vmatpush1.msra.mxu0 %v1451
  %2878 = vmatprep.subr.mxu0 0.0
  %2879 = vmatpush1.msra.mxu0 %v1454
  %2880 = vmatprep.subr.mxu0 0.0
  %2881 = vmatpush1.msra.mxu0 %v1457
  %2882 = vmatprep.subr.mxu0 0.0
  %2883 = vmatpush1.msra.mxu0 %v1460
  %2884 = vmatprep.subr.mxu0 0.0
  %2885 = vmatpush1.msra.mxu0 %v1463
  %2886 = vmatprep.subr.mxu0 0.0
  %2887 = vmatpush1.msra.mxu0 %v1466
  %2888 = vmatprep.subr.mxu0 0.0
  %2889 = vmatpush1.msra.mxu0 0.0
  %2890 = vmatprep.subr.mxu0 0.0
  %2891 = vmatpush1.msra.mxu0 0.0
  %2892 = vmatprep.subr.mxu0 0.0
  %2893 = vmatpush1.msra.mxu0 0.0
  %2894 = vmatprep.subr.mxu0 0.0
  %2895 = vmatpush1.msra.mxu0 0.0
  %2896 = vmatprep.subr.mxu0 0.0
  %2897 = vmatpush1.msra.mxu0 0.0
  %2898 = vmatprep.subr.mxu0 0.0
  %2899 = vmatpush1.msra.mxu0 0.0
  %2900 = vmatprep.subr.mxu0 0.0
  %2901 = vmatpush1.msra.mxu0 0.0
  %2902 = vmatprep.subr.mxu0 0.0
  %2903 = vmatpush1.msra.mxu0 0.0
  %2904 = vmatprep.subr.mxu0 0.0
  %2905 = vmatpush1.msra.mxu0 0.0
  %2906 = vmatprep.subr.mxu0 0.0
  %2907 = vmatpush1.msra.mxu0 0.0
  %2908 = vmatprep.subr.mxu0 0.0
  %2909 = vmatpush1.msra.mxu0 0.0
  %2910 = vmatprep.subr.mxu0 0.0
  %2911 = vmatpush1.msra.mxu0 0.0
  %2912 = vmatprep.subr.mxu0 0.0
  %2913 = vmatpush1.msra.mxu0 0.0
  %2914 = vmatprep.subr.mxu0 0.0
  %2915 = vmatpush1.msra.mxu0 0.0
  %2916 = vmatprep.subr.mxu0 0.0
  %2917 = vmatpush1.msra.mxu0 0.0
  %2918 = vmatprep.subr.mxu0 0.0
  %2919 = vmatpush1.msra.mxu0 0.0
  %2920 = vmatprep.mubr.f32.mxu0 0.0
  %2921 = vmatmul.mubr.f32.gmra.mrb[0].mxu0 %v2481
  %v2922 = vpop.f32.mrb[0].mxu0
  %v2923 = vadd.f32 %v1854, %v2922
  %v2924 = vpop.f32.mrb[0].mxu0
  %2925 = vdwg.mxu0
  %v2926 = vadd.f32 %v2711, %v2852
  %v2927 = vadd.f32 %v2713, %v2854
  %v2928 = vxor.u32 %v2926, 2147483648
  %v2929 = vxor.u32 %v2927, 2147483648
  %v2930 = vmul.f32 %v2928, 1.442695
  %v2931 = vpow.pop %v2930
  %v2932 = vmul.f32 %v2929, 1.442695
  %v2933 = vpow.pop %v2932
  %v2934 = vadd.f32 %v2931, 1.0
  %v2935 = vadd.f32 %v2933, 1.0
  %v2936 = vrcp.pop %v2934
  %v2937 = vmul.f32 1.0, %v2936
  %v2938 = vrcp.pop %v2935
  %v2939 = vmul.f32 1.0, %v2938
  %v2940 = vmul.f32 %v2937, %v2923
  %v2941 = vadd.f32 %v2782, %v2940
  %v2942 = vtanh.pop %v2941
  %v2943 = vsub.f32 1.0, %v2939
  %v2944 = vmul.f32 %v2943, %v2942
  %v2945 = vmul.f32 %v2939, %v2481
  %v2946 = vadd.f32 %v2944, %v2945
  %2947 = vmatprep.subr.mxu0 %v1322
  %2948 = vmatpush1.msra.mxu0 %v1321
  %2949 = vmatprep.subr.mxu0 %v1325
  %2950 = vmatpush1.msra.mxu0 %v1324
  %2951 = vmatprep.subr.mxu0 %v1328
  %2952 = vmatpush1.msra.mxu0 %v1327
  %2953 = vmatprep.subr.mxu0 %v1331
  %2954 = vmatpush1.msra.mxu0 %v1330
  %2955 = vmatprep.subr.mxu0 %v1334
  %2956 = vmatpush1.msra.mxu0 %v1333
  %2957 = vmatprep.subr.mxu0 %v1337
  %2958 = vmatpush1.msra.mxu0 %v1336
  %2959 = vmatprep.subr.mxu0 %v1340
  %2960 = vmatpush1.msra.mxu0 %v1339
  %2961 = vmatprep.subr.mxu0 %v1343
  %2962 = vmatpush1.msra.mxu0 %v1342
  %2963 = vmatprep.subr.mxu0 %v1346
  %2964 = vmatpush1.msra.mxu0 %v1345
  %2965 = vmatprep.subr.mxu0 %v1349
  %2966 = vmatpush1.msra.mxu0 %v1348
  %2967 = vmatprep.subr.mxu0 %v1352
  %2968 = vmatpush1.msra.mxu0 %v1351
  %2969 = vmatprep.subr.mxu0 %v1355
  %2970 = vmatpush1.msra.mxu0 %v1354
  %2971 = vmatprep.subr.mxu0 %v1358
  %2972 = vmatpush1.msra.mxu0 %v1357
  %2973 = vmatprep.subr.mxu0 %v1361
  %2974 = vmatpush1.msra.mxu0 %v1360
  %2975 = vmatprep.subr.mxu0 %v1364
  %2976 = vmatpush1.msra.mxu0 %v1363
  %2977 = vmatprep.subr.mxu0 %v1367
  %2978 = vmatpush1.msra.mxu0 %v1366
  %2979 = vmatprep.subr.mxu0 0.0
  %2980 = vmatpush1.msra.mxu0 0.0
  %2981 = vmatprep.subr.mxu0 0.0
  %2982 = vmatpush1.msra.mxu0 0.0
  %2983 = vmatprep.subr.mxu0 0.0
  %2984 = vmatpush1.msra.mxu0 0.0
  %2985 = vmatprep.subr.mxu0 0.0
  %2986 = vmatpush1.msra.mxu0 0.0
  %2987 = vmatprep.subr.mxu0 0.0
  %2988 = vmatpush1.msra.mxu0 0.0
  %2989 = vmatprep.subr.mxu0 0.0
  %2990 = vmatpush1.msra.mxu0 0.0
  %2991 = vmatprep.subr.mxu0 0.0
  %2992 = vmatpush1.msra.mxu0 0.0
  %2993 = vmatprep.subr.mxu0 0.0
  %2994 = vmatpush1.msra.mxu0 0.0
  %2995 = vmatprep.subr.mxu0 0.0
  %2996 = vmatpush1.msra.mxu0 0.0
  %2997 = vmatprep.subr.mxu0 0.0
  %2998 = vmatpush1.msra.mxu0 0.0
  %2999 = vmatprep.subr.mxu0 0.0
  %3000 = vmatpush1.msra.mxu0 0.0
  %3001 = vmatprep.subr.mxu0 0.0
  %3002 = vmatpush1.msra.mxu0 0.0
  %3003 = vmatprep.subr.mxu0 0.0
  %3004 = vmatpush1.msra.mxu0 0.0
  %3005 = vmatprep.subr.mxu0 0.0
  %3006 = vmatpush1.msra.mxu0 0.0
  %3007 = vmatprep.subr.mxu0 0.0
  %3008 = vmatpush1.msra.mxu0 0.0
  %3009 = vmatprep.subr.mxu0 0.0
  %3010 = vmatpush1.msra.mxu0 0.0
  %3011 = vmatprep.mubr.f32.mxu0 0.0
  %3012 = vmatmul.mubr.f32.gmra.mrb[0].mxu0 %v2643
  %v3013 = vpop.f32.mrb[0].mxu0
  %v3014 = vadd.f32 %v1519, %v3013
  %v3015 = vpop.f32.mrb[0].mxu0
  %v3016 = vadd.f32 %v1523, %v3015
  %3017 = vdwg.mxu0
  %3018 = vmatprep.subr.mxu0 0.0
  %3019 = vmatpush1.msra.mxu0 %v1323
  %3020 = vmatprep.subr.mxu0 0.0
  %3021 = vmatpush1.msra.mxu0 %v1326
  %3022 = vmatprep.subr.mxu0 0.0
  %3023 = vmatpush1.msra.mxu0 %v1329
  %3024 = vmatprep.subr.mxu0 0.0
  %3025 = vmatpush1.msra.mxu0 %v1332
  %3026 = vmatprep.subr.mxu0 0.0
  %3027 = vmatpush1.msra.mxu0 %v1335
  %3028 = vmatprep.subr.mxu0 0.0
  %3029 = vmatpush1.msra.mxu0 %v1338
  %3030 = vmatprep.subr.mxu0 0.0
  %3031 = vmatpush1.msra.mxu0 %v1341
  %3032 = vmatprep.subr.mxu0 0.0
  %3033 = vmatpush1.msra.mxu0 %v1344
  %3034 = vmatprep.subr.mxu0 0.0
  %3035 = vmatpush1.msra.mxu0 %v1347
  %3036 = vmatprep.subr.mxu0 0.0
  %3037 = vmatpush1.msra.mxu0 %v1350
  %3038 = vmatprep.subr.mxu0 0.0
  %3039 = vmatpush1.msra.mxu0 %v1353
  %3040 = vmatprep.subr.mxu0 0.0
  %3041 = vmatpush1.msra.mxu0 %v1356
  %3042 = vmatprep.subr.mxu0 0.0
  %3043 = vmatpush1.msra.mxu0 %v1359
  %3044 = vmatprep.subr.mxu0 0.0
  %3045 = vmatpush1.msra.mxu0 %v1362
  %3046 = vmatprep.subr.mxu0 0.0
  %3047 = vmatpush1.msra.mxu0 %v1365
  %3048 = vmatprep.subr.mxu0 0.0
  %3049 = vmatpush1.msra.mxu0 %v1368
  %3050 = vmatprep.subr.mxu0 0.0
  %3051 = vmatpush1.msra.mxu0 0.0
  %3052 = vmatprep.subr.mxu0 0.0
  %3053 = vmatpush1.msra.mxu0 0.0
  %3054 = vmatprep.subr.mxu0 0.0
  %3055 = vmatpush1.msra.mxu0 0.0
  %3056 = vmatprep.subr.mxu0 0.0
  %3057 = vmatpush1.msra.mxu0 0.0
  %3058 = vmatprep.subr.mxu0 0.0
  %3059 = vmatpush1.msra.mxu0 0.0
  %3060 = vmatprep.subr.mxu0 0.0
  %3061 = vmatpush1.msra.mxu0 0.0
  %3062 = vmatprep.subr.mxu0 0.0
  %3063 = vmatpush1.msra.mxu0 0.0
  %3064 = vmatprep.subr.mxu0 0.0
  %3065 = vmatpush1.msra.mxu0 0.0
  %3066 = vmatprep.subr.mxu0 0.0
  %3067 = vmatpush1.msra.mxu0 0.0
  %3068 = vmatprep.subr.mxu0 0.0
  %3069 = vmatpush1.msra.mxu0 0.0
  %3070 = vmatprep.subr.mxu0 0.0
  %3071 = vmatpush1.msra.mxu0 0.0
  %3072 = vmatprep.subr.mxu0 0.0
  %3073 = vmatpush1.msra.mxu0 0.0
  %3074 = vmatprep.subr.mxu0 0.0
  %3075 = vmatpush1.msra.mxu0 0.0
  %3076 = vmatprep.subr.mxu0 0.0
  %3077 = vmatpush1.msra.mxu0 0.0
  %3078 = vmatprep.subr.mxu0 0.0
  %3079 = vmatpush1.msra.mxu0 0.0
  %3080 = vmatprep.subr.mxu0 0.0
  %3081 = vmatpush1.msra.mxu0 0.0
  %3082 = vmatprep.mubr.f32.mxu0 0.0
  %3083 = vmatmul.mubr.f32.gmra.mrb[0].mxu0 %v2643
  %v3084 = vpop.f32.mrb[0].mxu0
  %v3085 = vadd.f32 %v1527, %v3084
  %v3086 = vpop.f32.mrb[0].mxu0
  %3087 = vdwg.mxu0
  %v3088 = vadd.f32 %v1318, %v3014
  %v3089 = vadd.f32 %v1319, %v3016
  %v3090 = vxor.u32 %v3088, 2147483648
  %v3091 = vxor.u32 %v3089, 2147483648
  %v3092 = vmul.f32 %v3090, 1.442695
  %v3093 = vpow.pop %v3092
  %v3094 = vmul.f32 %v3091, 1.442695
  %v3095 = vpow.pop %v3094
  %v3096 = vadd.f32 %v3093, 1.0
  %v3097 = vadd.f32 %v3095, 1.0
  %v3098 = vrcp.pop %v3096
  %v3099 = vmul.f32 1.0, %v3098
  %v3100 = vrcp.pop %v3097
  %v3101 = vmul.f32 1.0, %v3100
  %v3102 = vmul.f32 %v3099, %v3085
  %v3103 = vadd.f32 %v1320, %v3102
  %v3104 = vtanh.pop %v3103
  %v3105 = vsub.f32 1.0, %v3101
  %v3106 = vmul.f32 %v3105, %v3104
  %v3107 = vmul.f32 %v3101, %v2643
  %v3108 = vadd.f32 %v3106, %v3107
  %3109 = vmatprep.subr.mxu0 %v1371
  %3110 = vmatpush1.msra.mxu0 %v1370
  %3111 = vmatprep.subr.mxu0 %v1374
  %3112 = vmatpush1.msra.mxu0 %v1373
  %3113 = vmatprep.subr.mxu0 %v1377
  %3114 = vmatpush1.msra.mxu0 %v1376
  %3115 = vmatprep.subr.mxu0 %v1380
  %3116 = vmatpush1.msra.mxu0 %v1379
  %3117 = vmatprep.subr.mxu0 %v1383
  %3118 = vmatpush1.msra.mxu0 %v1382
  %3119 = vmatprep.subr.mxu0 %v1386
  %3120 = vmatpush1.msra.mxu0 %v1385
  %3121 = vmatprep.subr.mxu0 %v1389
  %3122 = vmatpush1.msra.mxu0 %v1388
  %3123 = vmatprep.subr.mxu0 %v1392
  %3124 = vmatpush1.msra.mxu0 %v1391
  %3125 = vmatprep.subr.mxu0 %v1395
  %3126 = vmatpush1.msra.mxu0 %v1394
  %3127 = vmatprep.subr.mxu0 %v1398
  %3128 = vmatpush1.msra.mxu0 %v1397
  %3129 = vmatprep.subr.mxu0 %v1401
  %3130 = vmatpush1.msra.mxu0 %v1400
  %3131 = vmatprep.subr.mxu0 %v1404
  %3132 = vmatpush1.msra.mxu0 %v1403
  %3133 = vmatprep.subr.mxu0 %v1407
  %3134 = vmatpush1.msra.mxu0 %v1406
  %3135 = vmatprep.subr.mxu0 %v1410
  %3136 = vmatpush1.msra.mxu0 %v1409
  %3137 = vmatprep.subr.mxu0 %v1413
  %3138 = vmatpush1.msra.mxu0 %v1412
  %3139 = vmatprep.subr.mxu0 %v1416
  %3140 = vmatpush1.msra.mxu0 %v1415
  %3141 = vmatprep.subr.mxu0 0.0
  %3142 = vmatpush1.msra.mxu0 0.0
  %3143 = vmatprep.subr.mxu0 0.0
  %3144 = vmatpush1.msra.mxu0 0.0
  %3145 = vmatprep.subr.mxu0 0.0
  %3146 = vmatpush1.msra.mxu0 0.0
  %3147 = vmatprep.subr.mxu0 0.0
  %3148 = vmatpush1.msra.mxu0 0.0
  %3149 = vmatprep.subr.mxu0 0.0
  %3150 = vmatpush1.msra.mxu0 0.0
  %3151 = vmatprep.subr.mxu0 0.0
  %3152 = vmatpush1.msra.mxu0 0.0
  %3153 = vmatprep.subr.mxu0 0.0
  %3154 = vmatpush1.msra.mxu0 0.0
  %3155 = vmatprep.subr.mxu0 0.0
  %3156 = vmatpush1.msra.mxu0 0.0
  %3157 = vmatprep.subr.mxu0 0.0
  %3158 = vmatpush1.msra.mxu0 0.0
  %3159 = vmatprep.subr.mxu0 0.0
  %3160 = vmatpush1.msra.mxu0 0.0
  %3161 = vmatprep.subr.mxu0 0.0
  %3162 = vmatpush1.msra.mxu0 0.0
  %3163 = vmatprep.subr.mxu0 0.0
  %3164 = vmatpush1.msra.mxu0 0.0
  %3165 = vmatprep.subr.mxu0 0.0
  %3166 = vmatpush1.msra.mxu0 0.0
  %3167 = vmatprep.subr.mxu0 0.0
  %3168 = vmatpush1.msra.mxu0 0.0
  %3169 = vmatprep.subr.mxu0 0.0
  %3170 = vmatpush1.msra.mxu0 0.0
  %3171 = vmatprep.subr.mxu0 0.0
  %3172 = vmatpush1.msra.mxu0 0.0
  %3173 = vmatprep.mubr.f32.mxu0 0.0
  %3174 = vmatmul.mubr.f32.gmra.mrb[0].mxu0 %v3108
  %v3175 = vpop.f32.mrb[0].mxu0
  %v3176 = vadd.f32 %v1693, %v3175
  %v3177 = vpop.f32.mrb[0].mxu0
  %v3178 = vadd.f32 %v1697, %v3177
  %3179 = vdwg.mxu0
  %3180 = vmatprep.subr.mxu0 0.0
  %3181 = vmatpush1.msra.mxu0 %v1372
  %3182 = vmatprep.subr.mxu0 0.0
  %3183 = vmatpush1.msra.mxu0 %v1375
  %3184 = vmatprep.subr.mxu0 0.0
  %3185 = vmatpush1.msra.mxu0 %v1378
  %3186 = vmatprep.subr.mxu0 0.0
  %3187 = vmatpush1.msra.mxu0 %v1381
  %3188 = vmatprep.subr.mxu0 0.0
  %3189 = vmatpush1.msra.mxu0 %v1384
  %3190 = vmatprep.subr.mxu0 0.0
  %3191 = vmatpush1.msra.mxu0 %v1387
  %3192 = vmatprep.subr.mxu0 0.0
  %3193 = vmatpush1.msra.mxu0 %v1390
  %3194 = vmatprep.subr.mxu0 0.0
  %3195 = vmatpush1.msra.mxu0 %v1393
  %3196 = vmatprep.subr.mxu0 0.0
  %3197 = vmatpush1.msra.mxu0 %v1396
  %3198 = vmatprep.subr.mxu0 0.0
  %3199 = vmatpush1.msra.mxu0 %v1399
  %3200 = vmatprep.subr.mxu0 0.0
  %3201 = vmatpush1.msra.mxu0 %v1402
  %3202 = vmatprep.subr.mxu0 0.0
  %3203 = vmatpush1.msra.mxu0 %v1405
  %3204 = vmatprep.subr.mxu0 0.0
  %3205 = vmatpush1.msra.mxu0 %v1408
  %3206 = vmatprep.subr.mxu0 0.0
  %3207 = vmatpush1.msra.mxu0 %v1411
  %3208 = vmatprep.subr.mxu0 0.0
  %3209 = vmatpush1.msra.mxu0 %v1414
  %3210 = vmatprep.subr.mxu0 0.0
  %3211 = vmatpush1.msra.mxu0 %v1417
  %3212 = vmatprep.subr.mxu0 0.0
  %3213 = vmatpush1.msra.mxu0 0.0
  %3214 = vmatprep.subr.mxu0 0.0
  %3215 = vmatpush1.msra.mxu0 0.0
  %3216 = vmatprep.subr.mxu0 0.0
  %3217 = vmatpush1.msra.mxu0 0.0
  %3218 = vmatprep.subr.mxu0 0.0
  %3219 = vmatpush1.msra.mxu0 0.0
  %3220 = vmatprep.subr.mxu0 0.0
  %3221 = vmatpush1.msra.mxu0 0.0
  %3222 = vmatprep.subr.mxu0 0.0
  %3223 = vmatpush1.msra.mxu0 0.0
  %3224 = vmatprep.subr.mxu0 0.0
  %3225 = vmatpush1.msra.mxu0 0.0
  %3226 = vmatprep.subr.mxu0 0.0
  %3227 = vmatpush1.msra.mxu0 0.0
  %3228 = vmatprep.subr.mxu0 0.0
  %3229 = vmatpush1.msra.mxu0 0.0
  %3230 = vmatprep.subr.mxu0 0.0
  %3231 = vmatpush1.msra.mxu0 0.0
  %3232 = vmatprep.subr.mxu0 0.0
  %3233 = vmatpush1.msra.mxu0 0.0
  %3234 = vmatprep.subr.mxu0 0.0
  %3235 = vmatpush1.msra.mxu0 0.0
  %3236 = vmatprep.subr.mxu0 0.0
  %3237 = vmatpush1.msra.mxu0 0.0
  %3238 = vmatprep.subr.mxu0 0.0
  %3239 = vmatpush1.msra.mxu0 0.0
  %3240 = vmatprep.subr.mxu0 0.0
  %3241 = vmatpush1.msra.mxu0 0.0
  %3242 = vmatprep.subr.mxu0 0.0
  %3243 = vmatpush1.msra.mxu0 0.0
  %3244 = vmatprep.mubr.f32.mxu0 0.0
  %3245 = vmatmul.mubr.f32.gmra.mrb[0].mxu0 %v3108
  %v3246 = vpop.f32.mrb[0].mxu0
  %v3247 = vadd.f32 %v1701, %v3246
  %v3248 = vpop.f32.mrb[0].mxu0
  %3249 = vdwg.mxu0
  %3250 = vmatprep.subr.mxu0 %v1420
  %3251 = vmatpush1.msra.mxu0 %v1419
  %3252 = vmatprep.subr.mxu0 %v1423
  %3253 = vmatpush1.msra.mxu0 %v1422
  %3254 = vmatprep.subr.mxu0 %v1426
  %3255 = vmatpush1.msra.mxu0 %v1425
  %3256 = vmatprep.subr.mxu0 %v1429
  %3257 = vmatpush1.msra.mxu0 %v1428
  %3258 = vmatprep.subr.mxu0 %v1432
  %3259 = vmatpush1.msra.mxu0 %v1431
  %3260 = vmatprep.subr.mxu0 %v1435
  %3261 = vmatpush1.msra.mxu0 %v1434
  %3262 = vmatprep.subr.mxu0 %v1438
  %3263 = vmatpush1.msra.mxu0 %v1437
  %3264 = vmatprep.subr.mxu0 %v1441
  %3265 = vmatpush1.msra.mxu0 %v1440
  %3266 = vmatprep.subr.mxu0 %v1444
  %3267 = vmatpush1.msra.mxu0 %v1443
  %3268 = vmatprep.subr.mxu0 %v1447
  %3269 = vmatpush1.msra.mxu0 %v1446
  %3270 = vmatprep.subr.mxu0 %v1450
  %3271 = vmatpush1.msra.mxu0 %v1449
  %3272 = vmatprep.subr.mxu0 %v1453
  %3273 = vmatpush1.msra.mxu0 %v1452
  %3274 = vmatprep.subr.mxu0 %v1456
  %3275 = vmatpush1.msra.mxu0 %v1455
  %3276 = vmatprep.subr.mxu0 %v1459
  %3277 = vmatpush1.msra.mxu0 %v1458
  %3278 = vmatprep.subr.mxu0 %v1462
  %3279 = vmatpush1.msra.mxu0 %v1461
  %3280 = vmatprep.subr.mxu0 %v1465
  %3281 = vmatpush1.msra.mxu0 %v1464
  %3282 = vmatprep.subr.mxu0 0.0
  %3283 = vmatpush1.msra.mxu0 0.0
  %3284 = vmatprep.subr.mxu0 0.0
  %3285 = vmatpush1.msra.mxu0 0.0
  %3286 = vmatprep.subr.mxu0 0.0
  %3287 = vmatpush1.msra.mxu0 0.0
  %3288 = vmatprep.subr.mxu0 0.0
  %3289 = vmatpush1.msra.mxu0 0.0
  %3290 = vmatprep.subr.mxu0 0.0
  %3291 = vmatpush1.msra.mxu0 0.0
  %3292 = vmatprep.subr.mxu0 0.0
  %3293 = vmatpush1.msra.mxu0 0.0
  %3294 = vmatprep.subr.mxu0 0.0
  %3295 = vmatpush1.msra.mxu0 0.0
  %3296 = vmatprep.subr.mxu0 0.0
  %3297 = vmatpush1.msra.mxu0 0.0
  %3298 = vmatprep.subr.mxu0 0.0
  %3299 = vmatpush1.msra.mxu0 0.0
  %3300 = vmatprep.subr.mxu0 0.0
  %3301 = vmatpush1.msra.mxu0 0.0
  %3302 = vmatprep.subr.mxu0 0.0
  %3303 = vmatpush1.msra.mxu0 0.0
  %3304 = vmatprep.subr.mxu0 0.0
  %3305 = vmatpush1.msra.mxu0 0.0
  %3306 = vmatprep.subr.mxu0 0.0
  %3307 = vmatpush1.msra.mxu0 0.0
  %3308 = vmatprep.subr.mxu0 0.0
  %3309 = vmatpush1.msra.mxu0 0.0
  %3310 = vmatprep.subr.mxu0 0.0
  %3311 = vmatpush1.msra.mxu0 0.0
  %3312 = vmatprep.subr.mxu0 0.0
  %3313 = vmatpush1.msra.mxu0 0.0
  %3314 = vmatprep.mubr.f32.mxu0 0.0
  %3315 = vmatmul.mubr.f32.gmra.mrb[0].mxu0 %v2946
  %v3316 = vpop.f32.mrb[0].mxu0
  %v3317 = vadd.f32 %v1846, %v3316
  %v3318 = vpop.f32.mrb[0].mxu0
  %v3319 = vadd.f32 %v1850, %v3318
  %3320 = vdwg.mxu0
  %3321 = vmatprep.subr.mxu0 0.0
  %3322 = vmatpush1.msra.mxu0 %v1421
  %3323 = vmatprep.subr.mxu0 0.0
  %3324 = vmatpush1.msra.mxu0 %v1424
  %3325 = vmatprep.subr.mxu0 0.0
  %3326 = vmatpush1.msra.mxu0 %v1427
  %3327 = vmatprep.subr.mxu0 0.0
  %3328 = vmatpush1.msra.mxu0 %v1430
  %3329 = vmatprep.subr.mxu0 0.0
  %3330 = vmatpush1.msra.mxu0 %v1433
  %3331 = vmatprep.subr.mxu0 0.0
  %3332 = vmatpush1.msra.mxu0 %v1436
  %3333 = vmatprep.subr.mxu0 0.0
  %3334 = vmatpush1.msra.mxu0 %v1439
  %3335 = vmatprep.subr.mxu0 0.0
  %3336 = vmatpush1.msra.mxu0 %v1442
  %3337 = vmatprep.subr.mxu0 0.0
  %3338 = vmatpush1.msra.mxu0 %v1445
  %3339 = vmatprep.subr.mxu0 0.0
  %3340 = vmatpush1.msra.mxu0 %v1448
  %3341 = vmatprep.subr.mxu0 0.0
  %3342 = vmatpush1.msra.mxu0 %v1451
  %3343 = vmatprep.subr.mxu0 0.0
  %3344 = vmatpush1.msra.mxu0 %v1454
  %3345 = vmatprep.subr.mxu0 0.0
  %3346 = vmatpush1.msra.mxu0 %v1457
  %3347 = vmatprep.subr.mxu0 0.0
  %3348 = vmatpush1.msra.mxu0 %v1460
  %3349 = vmatprep.subr.mxu0 0.0
  %3350 = vmatpush1.msra.mxu0 %v1463
  %3351 = vmatprep.subr.mxu0 0.0
  %3352 = vmatpush1.msra.mxu0 %v1466
  %3353 = vmatprep.subr.mxu0 0.0
  %3354 = vmatpush1.msra.mxu0 0.0
  %3355 = vmatprep.subr.mxu0 0.0
  %3356 = vmatpush1.msra.mxu0 0.0
  %3357 = vmatprep.subr.mxu0 0.0
  %3358 = vmatpush1.msra.mxu0 0.0
  %3359 = vmatprep.subr.mxu0 0.0
  %3360 = vmatpush1.msra.mxu0 0.0
  %3361 = vmatprep.subr.mxu0 0.0
  %3362 = vmatpush1.msra.mxu0 0.0
  %3363 = vmatprep.subr.mxu0 0.0
  %3364 = vmatpush1.msra.mxu0 0.0
  %3365 = vmatprep.subr.mxu0 0.0
  %3366 = vmatpush1.msra.mxu0 0.0
  %3367 = vmatprep.subr.mxu0 0.0
  %3368 = vmatpush1.msra.mxu0 0.0
  %3369 = vmatprep.subr.mxu0 0.0
  %3370 = vmatpush1.msra.mxu0 0.0
  %3371 = vmatprep.subr.mxu0 0.0
  %3372 = vmatpush1.msra.mxu0 0.0
  %3373 = vmatprep.subr.mxu0 0.0
  %3374 = vmatpush1.msra.mxu0 0.0
  %3375 = vmatprep.subr.mxu0 0.0
  %3376 = vmatpush1.msra.mxu0 0.0
  %3377 = vmatprep.subr.mxu0 0.0
  %3378 = vmatpush1.msra.mxu0 0.0
  %3379 = vmatprep.subr.mxu0 0.0
  %3380 = vmatpush1.msra.mxu0 0.0
  %3381 = vmatprep.subr.mxu0 0.0
  %3382 = vmatpush1.msra.mxu0 0.0
  %3383 = vmatprep.subr.mxu0 0.0
  %3384 = vmatpush1.msra.mxu0 0.0
  %3385 = vmatprep.mubr.f32.mxu0 0.0
  %3386 = vmatmul.mubr.f32.gmra.mrb[0].mxu0 %v2946
  %v3387 = vpop.f32.mrb[0].mxu0
  %v3388 = vadd.f32 %v1854, %v3387
  %v3389 = vpop.f32.mrb[0].mxu0
  %3390 = vdwg.mxu0
  %v3391 = vadd.f32 %v3176, %v3317
  %v3392 = vadd.f32 %v3178, %v3319
  %v3393 = vxor.u32 %v3391, 2147483648
  %v3394 = vxor.u32 %v3392, 2147483648
  %v3395 = vmul.f32 %v3393, 1.442695
  %v3396 = vpow.pop %v3395
  %v3397 = vmul.f32 %v3394, 1.442695
  %v3398 = vpow.pop %v3397
  %v3399 = vadd.f32 %v3396, 1.0
  %v3400 = vadd.f32 %v3398, 1.0
  %v3401 = vrcp.pop %v3399
  %v3402 = vmul.f32 1.0, %v3401
  %v3403 = vrcp.pop %v3400
  %v3404 = vmul.f32 1.0, %v3403
  %v3405 = vmul.f32 %v3402, %v3388
  %v3406 = vadd.f32 %v3247, %v3405
  %v3407 = vtanh.pop %v3406
  %v3408 = vsub.f32 1.0, %v3404
  %v3409 = vmul.f32 %v3408, %v3407
  %v3410 = vmul.f32 %v3404, %v2946
  %v3411 = vadd.f32 %v3409, %v3410
  %3412 = vmatprep.subr.mxu0 %v1322
  %3413 = vmatpush1.msra.mxu0 %v1321
  %3414 = vmatprep.subr.mxu0 %v1325
  %3415 = vmatpush1.msra.mxu0 %v1324
  %3416 = vmatprep.subr.mxu0 %v1328
  %3417 = vmatpush1.msra.mxu0 %v1327
  %3418 = vmatprep.subr.mxu0 %v1331
  %3419 = vmatpush1.msra.mxu0 %v1330
  %3420 = vmatprep.subr.mxu0 %v1334
  %3421 = vmatpush1.msra.mxu0 %v1333
  %3422 = vmatprep.subr.mxu0 %v1337
  %3423 = vmatpush1.msra.mxu0 %v1336
  %3424 = vmatprep.subr.mxu0 %v1340
  %3425 = vmatpush1.msra.mxu0 %v1339
  %3426 = vmatprep.subr.mxu0 %v1343
  %3427 = vmatpush1.msra.mxu0 %v1342
  %3428 = vmatprep.subr.mxu0 %v1346
  %3429 = vmatpush1.msra.mxu0 %v1345
  %3430 = vmatprep.subr.mxu0 %v1349
  %3431 = vmatpush1.msra.mxu0 %v1348
  %3432 = vmatprep.subr.mxu0 %v1352
  %3433 = vmatpush1.msra.mxu0 %v1351
  %3434 = vmatprep.subr.mxu0 %v1355
  %3435 = vmatpush1.msra.mxu0 %v1354
  %3436 = vmatprep.subr.mxu0 %v1358
  %3437 = vmatpush1.msra.mxu0 %v1357
  %3438 = vmatprep.subr.mxu0 %v1361
  %3439 = vmatpush1.msra.mxu0 %v1360
  %3440 = vmatprep.subr.mxu0 %v1364
  %3441 = vmatpush1.msra.mxu0 %v1363
  %3442 = vmatprep.subr.mxu0 %v1367
  %3443 = vmatpush1.msra.mxu0 %v1366
  %3444 = vmatprep.subr.mxu0 0.0
  %3445 = vmatpush1.msra.mxu0 0.0
  %3446 = vmatprep.subr.mxu0 0.0
  %3447 = vmatpush1.msra.mxu0 0.0
  %3448 = vmatprep.subr.mxu0 0.0
  %3449 = vmatpush1.msra.mxu0 0.0
  %3450 = vmatprep.subr.mxu0 0.0
  %3451 = vmatpush1.msra.mxu0 0.0
  %3452 = vmatprep.subr.mxu0 0.0
  %3453 = vmatpush1.msra.mxu0 0.0
  %3454 = vmatprep.subr.mxu0 0.0
  %3455 = vmatpush1.msra.mxu0 0.0
  %3456 = vmatprep.subr.mxu0 0.0
  %3457 = vmatpush1.msra.mxu0 0.0
  %3458 = vmatprep.subr.mxu0 0.0
  %3459 = vmatpush1.msra.mxu0 0.0
  %3460 = vmatprep.subr.mxu0 0.0
  %3461 = vmatpush1.msra.mxu0 0.0
  %3462 = vmatprep.subr.mxu0 0.0
  %3463 = vmatpush1.msra.mxu0 0.0
  %3464 = vmatprep.subr.mxu0 0.0
  %3465 = vmatpush1.msra.mxu0 0.0
  %3466 = vmatprep.subr.mxu0 0.0
  %3467 = vmatpush1.msra.mxu0 0.0
  %3468 = vmatprep.subr.mxu0 0.0
  %3469 = vmatpush1.msra.mxu0 0.0
  %3470 = vmatprep.subr.mxu0 0.0
  %3471 = vmatpush1.msra.mxu0 0.0
  %3472 = vmatprep.subr.mxu0 0.0
  %3473 = vmatpush1.msra.mxu0 0.0
  %3474 = vmatprep.subr.mxu0 0.0
  %3475 = vmatpush1.msra.mxu0 0.0
  %3476 = vmatprep.mubr.f32.mxu0 0.0
  %3477 = vmatmul.mubr.f32.gmra.mrb[0].mxu0 %v3108
  %v3478 = vpop.f32.mrb[0].mxu0
  %v3479 = vadd.f32 %v1519, %v3478
  %v3480 = vpop.f32.mrb[0].mxu0
  %v3481 = vadd.f32 %v1523, %v3480
  %3482 = vdwg.mxu0
  %3483 = vmatprep.subr.mxu0 0.0
  %3484 = vmatpush1.msra.mxu0 %v1323
  %3485 = vmatprep.subr.mxu0 0.0
  %3486 = vmatpush1.msra.mxu0 %v1326
  %3487 = vmatprep.subr.mxu0 0.0
  %3488 = vmatpush1.msra.mxu0 %v1329
  %3489 = vmatprep.subr.mxu0 0.0
  %3490 = vmatpush1.msra.mxu0 %v1332
  %3491 = vmatprep.subr.mxu0 0.0
  %3492 = vmatpush1.msra.mxu0 %v1335
  %3493 = vmatprep.subr.mxu0 0.0
  %3494 = vmatpush1.msra.mxu0 %v1338
  %3495 = vmatprep.subr.mxu0 0.0
  %3496 = vmatpush1.msra.mxu0 %v1341
  %3497 = vmatprep.subr.mxu0 0.0
  %3498 = vmatpush1.msra.mxu0 %v1344
  %3499 = vmatprep.subr.mxu0 0.0
  %3500 = vmatpush1.msra.mxu0 %v1347
  %3501 = vmatprep.subr.mxu0 0.0
  %3502 = vmatpush1.msra.mxu0 %v1350
  %3503 = vmatprep.subr.mxu0 0.0
  %3504 = vmatpush1.msra.mxu0 %v1353
  %3505 = vmatprep.subr.mxu0 0.0
  %3506 = vmatpush1.msra.mxu0 %v1356
  %3507 = vmatprep.subr.mxu0 0.0
  %3508 = vmatpush1.msra.mxu0 %v1359
  %3509 = vmatprep.subr.mxu0 0.0
  %3510 = vmatpush1.msra.mxu0 %v1362
  %3511 = vmatprep.subr.mxu0 0.0
  %3512 = vmatpush1.msra.mxu0 %v1365
  %3513 = vmatprep.subr.mxu0 0.0
  %3514 = vmatpush1.msra.mxu0 %v1368
  %3515 = vmatprep.subr.mxu0 0.0
  %3516 = vmatpush1.msra.mxu0 0.0
  %3517 = vmatprep.subr.mxu0 0.0
  %3518 = vmatpush1.msra.mxu0 0.0
  %3519 = vmatprep.subr.mxu0 0.0
  %3520 = vmatpush1.msra.mxu0 0.0
  %3521 = vmatprep.subr.mxu0 0.0
  %3522 = vmatpush1.msra.mxu0 0.0
  %3523 = vmatprep.subr.mxu0 0.0
  %3524 = vmatpush1.msra.mxu0 0.0
  %3525 = vmatprep.subr.mxu0 0.0
  %3526 = vmatpush1.msra.mxu0 0.0
  %3527 = vmatprep.subr.mxu0 0.0
  %3528 = vmatpush1.msra.mxu0 0.0
  %3529 = vmatprep.subr.mxu0 0.0
  %3530 = vmatpush1.msra.mxu0 0.0
  %3531 = vmatprep.subr.mxu0 0.0
  %3532 = vmatpush1.msra.mxu0 0.0
  %3533 = vmatprep.subr.mxu0 0.0
  %3534 = vmatpush1.msra.mxu0 0.0
  %3535 = vmatprep.subr.mxu0 0.0
  %3536 = vmatpush1.msra.mxu0 0.0
  %3537 = vmatprep.subr.mxu0 0.0
  %3538 = vmatpush1.msra.mxu0 0.0
  %3539 = vmatprep.subr.mxu0 0.0
  %3540 = vmatpush1.msra.mxu0 0.0
  %3541 = vmatprep.subr.mxu0 0.0
  %3542 = vmatpush1.msra.mxu0 0.0
  %3543 = vmatprep.subr.mxu0 0.0
  %3544 = vmatpush1.msra.mxu0 0.0
  %3545 = vmatprep.subr.mxu0 0.0
  %3546 = vmatpush1.msra.mxu0 0.0
  %3547 = vmatprep.mubr.f32.mxu0 0.0
  %3548 = vmatmul.mubr.f32.gmra.mrb[0].mxu0 %v3108
  %v3549 = vpop.f32.mrb[0].mxu0
  %v3550 = vadd.f32 %v1527, %v3549
  %v3551 = vpop.f32.mrb[0].mxu0
  %3552 = vdwg.mxu0
  %v3553 = vadd.f32 %v1318, %v3479
  %v3554 = vadd.f32 %v1319, %v3481
  %v3555 = vxor.u32 %v3553, 2147483648
  %v3556 = vxor.u32 %v3554, 2147483648
  %v3557 = vmul.f32 %v3555, 1.442695
  %v3558 = vpow.pop %v3557
  %v3559 = vmul.f32 %v3556, 1.442695
  %v3560 = vpow.pop %v3559
  %v3561 = vadd.f32 %v3558, 1.0
  %v3562 = vadd.f32 %v3560, 1.0
  %v3563 = vrcp.pop %v3561
  %v3564 = vmul.f32 1.0, %v3563
  %v3565 = vrcp.pop %v3562
  %v3566 = vmul.f32 1.0, %v3565
  %v3567 = vmul.f32 %v3564, %v3550
  %v3568 = vadd.f32 %v1320, %v3567
  %v3569 = vtanh.pop %v3568
  %v3570 = vsub.f32 1.0, %v3566
  %v3571 = vmul.f32 %v3570, %v3569
  %v3572 = vmul.f32 %v3566, %v3108
  %v3573 = vadd.f32 %v3571, %v3572
  %3574 = vmatprep.subr.mxu0 %v1371
  %3575 = vmatpush1.msra.mxu0 %v1370
  %3576 = vmatprep.subr.mxu0 %v1374
  %3577 = vmatpush1.msra.mxu0 %v1373
  %3578 = vmatprep.subr.mxu0 %v1377
  %3579 = vmatpush1.msra.mxu0 %v1376
  %3580 = vmatprep.subr.mxu0 %v1380
  %3581 = vmatpush1.msra.mxu0 %v1379
  %3582 = vmatprep.subr.mxu0 %v1383
  %3583 = vmatpush1.msra.mxu0 %v1382
  %3584 = vmatprep.subr.mxu0 %v1386
  %3585 = vmatpush1.msra.mxu0 %v1385
  %3586 = vmatprep.subr.mxu0 %v1389
  %3587 = vmatpush1.msra.mxu0 %v1388
  %3588 = vmatprep.subr.mxu0 %v1392
  %3589 = vmatpush1.msra.mxu0 %v1391
  %3590 = vmatprep.subr.mxu0 %v1395
  %3591 = vmatpush1.msra.mxu0 %v1394
  %3592 = vmatprep.subr.mxu0 %v1398
  %3593 = vmatpush1.msra.mxu0 %v1397
  %3594 = vmatprep.subr.mxu0 %v1401
  %3595 = vmatpush1.msra.mxu0 %v1400
  %3596 = vmatprep.subr.mxu0 %v1404
  %3597 = vmatpush1.msra.mxu0 %v1403
  %3598 = vmatprep.subr.mxu0 %v1407
  %3599 = vmatpush1.msra.mxu0 %v1406
  %3600 = vmatprep.subr.mxu0 %v1410
  %3601 = vmatpush1.msra.mxu0 %v1409
  %3602 = vmatprep.subr.mxu0 %v1413
  %3603 = vmatpush1.msra.mxu0 %v1412
  %3604 = vmatprep.subr.mxu0 %v1416
  %3605 = vmatpush1.msra.mxu0 %v1415
  %3606 = vmatprep.subr.mxu0 0.0
  %3607 = vmatpush1.msra.mxu0 0.0
  %3608 = vmatprep.subr.mxu0 0.0
  %3609 = vmatpush1.msra.mxu0 0.0
  %3610 = vmatprep.subr.mxu0 0.0
  %3611 = vmatpush1.msra.mxu0 0.0
  %3612 = vmatprep.subr.mxu0 0.0
  %3613 = vmatpush1.msra.mxu0 0.0
  %3614 = vmatprep.subr.mxu0 0.0
  %3615 = vmatpush1.msra.mxu0 0.0
  %3616 = vmatprep.subr.mxu0 0.0
  %3617 = vmatpush1.msra.mxu0 0.0
  %3618 = vmatprep.subr.mxu0 0.0
  %3619 = vmatpush1.msra.mxu0 0.0
  %3620 = vmatprep.subr.mxu0 0.0
  %3621 = vmatpush1.msra.mxu0 0.0
  %3622 = vmatprep.subr.mxu0 0.0
  %3623 = vmatpush1.msra.mxu0 0.0
  %3624 = vmatprep.subr.mxu0 0.0
  %3625 = vmatpush1.msra.mxu0 0.0
  %3626 = vmatprep.subr.mxu0 0.0
  %3627 = vmatpush1.msra.mxu0 0.0
  %3628 = vmatprep.subr.mxu0 0.0
  %3629 = vmatpush1.msra.mxu0 0.0
  %3630 = vmatprep.subr.mxu0 0.0
  %3631 = vmatpush1.msra.mxu0 0.0
  %3632 = vmatprep.subr.mxu0 0.0
  %3633 = vmatpush1.msra.mxu0 0.0
  %3634 = vmatprep.subr.mxu0 0.0
  %3635 = vmatpush1.msra.mxu0 0.0
  %3636 = vmatprep.subr.mxu0 0.0
  %3637 = vmatpush1.msra.mxu0 0.0
  %3638 = vmatprep.mubr.f32.mxu0 0.0
  %3639 = vmatmul.mubr.f32.gmra.mrb[0].mxu0 %v3573
  %v3640 = vpop.f32.mrb[0].mxu0
  %v3641 = vadd.f32 %v1693, %v3640
  %v3642 = vpop.f32.mrb[0].mxu0
  %v3643 = vadd.f32 %v1697, %v3642
  %3644 = vdwg.mxu0
  %3645 = vmatprep.subr.mxu0 0.0
  %3646 = vmatpush1.msra.mxu0 %v1372
  %3647 = vmatprep.subr.mxu0 0.0
  %3648 = vmatpush1.msra.mxu0 %v1375
  %3649 = vmatprep.subr.mxu0 0.0
  %3650 = vmatpush1.msra.mxu0 %v1378
  %3651 = vmatprep.subr.mxu0 0.0
  %3652 = vmatpush1.msra.mxu0 %v1381
  %3653 = vmatprep.subr.mxu0 0.0
  %3654 = vmatpush1.msra.mxu0 %v1384
  %3655 = vmatprep.subr.mxu0 0.0
  %3656 = vmatpush1.msra.mxu0 %v1387
  %3657 = vmatprep.subr.mxu0 0.0
  %3658 = vmatpush1.msra.mxu0 %v1390
  %3659 = vmatprep.subr.mxu0 0.0
  %3660 = vmatpush1.msra.mxu0 %v1393
  %3661 = vmatprep.subr.mxu0 0.0
  %3662 = vmatpush1.msra.mxu0 %v1396
  %3663 = vmatprep.subr.mxu0 0.0
  %3664 = vmatpush1.msra.mxu0 %v1399
  %3665 = vmatprep.subr.mxu0 0.0
  %3666 = vmatpush1.msra.mxu0 %v1402
  %3667 = vmatprep.subr.mxu0 0.0
  %3668 = vmatpush1.msra.mxu0 %v1405
  %3669 = vmatprep.subr.mxu0 0.0
  %3670 = vmatpush1.msra.mxu0 %v1408
  %3671 = vmatprep.subr.mxu0 0.0
  %3672 = vmatpush1.msra.mxu0 %v1411
  %3673 = vmatprep.subr.mxu0 0.0
  %3674 = vmatpush1.msra.mxu0 %v1414
  %3675 = vmatprep.subr.mxu0 0.0
  %3676 = vmatpush1.msra.mxu0 %v1417
  %3677 = vmatprep.subr.mxu0 0.0
  %3678 = vmatpush1.msra.mxu0 0.0
  %3679 = vmatprep.subr.mxu0 0.0
  %3680 = vmatpush1.msra.mxu0 0.0
  %3681 = vmatprep.subr.mxu0 0.0
  %3682 = vmatpush1.msra.mxu0 0.0
  %3683 = vmatprep.subr.mxu0 0.0
  %3684 = vmatpush1.msra.mxu0 0.0
  %3685 = vmatprep.subr.mxu0 0.0
  %3686 = vmatpush1.msra.mxu0 0.0
  %3687 = vmatprep.subr.mxu0 0.0
  %3688 = vmatpush1.msra.mxu0 0.0
  %3689 = vmatprep.subr.mxu0 0.0
  %3690 = vmatpush1.msra.mxu0 0.0
  %3691 = vmatprep.subr.mxu0 0.0
  %3692 = vmatpush1.msra.mxu0 0.0
  %3693 = vmatprep.subr.mxu0 0.0
  %3694 = vmatpush1.msra.mxu0 0.0
  %3695 = vmatprep.subr.mxu0 0.0
  %3696 = vmatpush1.msra.mxu0 0.0
  %3697 = vmatprep.subr.mxu0 0.0
  %3698 = vmatpush1.msra.mxu0 0.0
  %3699 = vmatprep.subr.mxu0 0.0
  %3700 = vmatpush1.msra.mxu0 0.0
  %3701 = vmatprep.subr.mxu0 0.0
  %3702 = vmatpush1.msra.mxu0 0.0
  %3703 = vmatprep.subr.mxu0 0.0
  %3704 = vmatpush1.msra.mxu0 0.0
  %3705 = vmatprep.subr.mxu0 0.0
  %3706 = vmatpush1.msra.mxu0 0.0
  %3707 = vmatprep.subr.mxu0 0.0
  %3708 = vmatpush1.msra.mxu0 0.0
  %3709 = vmatprep.mubr.f32.mxu0 0.0
  %3710 = vmatmul.mubr.f32.gmra.mrb[0].mxu0 %v3573
  %v3711 = vpop.f32.mrb[0].mxu0
  %v3712 = vadd.f32 %v1701, %v3711
  %v3713 = vpop.f32.mrb[0].mxu0
  %3714 = vdwg.mxu0
  %3715 = vmatprep.subr.mxu0 %v1420
  %3716 = vmatpush1.msra.mxu0 %v1419
  %3717 = vmatprep.subr.mxu0 %v1423
  %3718 = vmatpush1.msra.mxu0 %v1422
  %3719 = vmatprep.subr.mxu0 %v1426
  %3720 = vmatpush1.msra.mxu0 %v1425
  %3721 = vmatprep.subr.mxu0 %v1429
  %3722 = vmatpush1.msra.mxu0 %v1428
  %3723 = vmatprep.subr.mxu0 %v1432
  %3724 = vmatpush1.msra.mxu0 %v1431
  %3725 = vmatprep.subr.mxu0 %v1435
  %3726 = vmatpush1.msra.mxu0 %v1434
  %3727 = vmatprep.subr.mxu0 %v1438
  %3728 = vmatpush1.msra.mxu0 %v1437
  %3729 = vmatprep.subr.mxu0 %v1441
  %3730 = vmatpush1.msra.mxu0 %v1440
  %3731 = vmatprep.subr.mxu0 %v1444
  %3732 = vmatpush1.msra.mxu0 %v1443
  %3733 = vmatprep.subr.mxu0 %v1447
  %3734 = vmatpush1.msra.mxu0 %v1446
  %3735 = vmatprep.subr.mxu0 %v1450
  %3736 = vmatpush1.msra.mxu0 %v1449
  %3737 = vmatprep.subr.mxu0 %v1453
  %3738 = vmatpush1.msra.mxu0 %v1452
  %3739 = vmatprep.subr.mxu0 %v1456
  %3740 = vmatpush1.msra.mxu0 %v1455
  %3741 = vmatprep.subr.mxu0 %v1459
  %3742 = vmatpush1.msra.mxu0 %v1458
  %3743 = vmatprep.subr.mxu0 %v1462
  %3744 = vmatpush1.msra.mxu0 %v1461
  %3745 = vmatprep.subr.mxu0 %v1465
  %3746 = vmatpush1.msra.mxu0 %v1464
  %3747 = vmatprep.subr.mxu0 0.0
  %3748 = vmatpush1.msra.mxu0 0.0
  %3749 = vmatprep.subr.mxu0 0.0
  %3750 = vmatpush1.msra.mxu0 0.0
  %3751 = vmatprep.subr.mxu0 0.0
  %3752 = vmatpush1.msra.mxu0 0.0
  %3753 = vmatprep.subr.mxu0 0.0
  %3754 = vmatpush1.msra.mxu0 0.0
  %3755 = vmatprep.subr.mxu0 0.0
  %3756 = vmatpush1.msra.mxu0 0.0
  %3757 = vmatprep.subr.mxu0 0.0
  %3758 = vmatpush1.msra.mxu0 0.0
  %3759 = vmatprep.subr.mxu0 0.0
  %3760 = vmatpush1.msra.mxu0 0.0
  %3761 = vmatprep.subr.mxu0 0.0
  %3762 = vmatpush1.msra.mxu0 0.0
  %3763 = vmatprep.subr.mxu0 0.0
  %3764 = vmatpush1.msra.mxu0 0.0
  %3765 = vmatprep.subr.mxu0 0.0
  %3766 = vmatpush1.msra.mxu0 0.0
  %3767 = vmatprep.subr.mxu0 0.0
  %3768 = vmatpush1.msra.mxu0 0.0
  %3769 = vmatprep.subr.mxu0 0.0
  %3770 = vmatpush1.msra.mxu0 0.0
  %3771 = vmatprep.subr.mxu0 0.0
  %3772 = vmatpush1.msra.mxu0 0.0
  %3773 = vmatprep.subr.mxu0 0.0
  %3774 = vmatpush1.msra.mxu0 0.0
  %3775 = vmatprep.subr.mxu0 0.0
  %3776 = vmatpush1.msra.mxu0 0.0
  %3777 = vmatprep.subr.mxu0 0.0
  %3778 = vmatpush1.msra.mxu0 0.0
  %3779 = vmatprep.mubr.f32.mxu0 0.0
  %3780 = vmatmul.mubr.f32.gmra.mrb[0].mxu0 %v3411
  %v3781 = vpop.f32.mrb[0].mxu0
  %v3782 = vadd.f32 %v1846, %v3781
  %v3783 = vpop.f32.mrb[0].mxu0
  %v3784 = vadd.f32 %v1850, %v3783
  %3785 = vdwg.mxu0
  %3786 = vmatprep.subr.mxu0 0.0
  %3787 = vmatpush1.msra.mxu0 %v1421
  %3788 = vmatprep.subr.mxu0 0.0
  %3789 = vmatpush1.msra.mxu0 %v1424
  %3790 = vmatprep.subr.mxu0 0.0
  %3791 = vmatpush1.msra.mxu0 %v1427
  %3792 = vmatprep.subr.mxu0 0.0
  %3793 = vmatpush1.msra.mxu0 %v1430
  %3794 = vmatprep.subr.mxu0 0.0
  %3795 = vmatpush1.msra.mxu0 %v1433
  %3796 = vmatprep.subr.mxu0 0.0
  %3797 = vmatpush1.msra.mxu0 %v1436
  %3798 = vmatprep.subr.mxu0 0.0
  %3799 = vmatpush1.msra.mxu0 %v1439
  %3800 = vmatprep.subr.mxu0 0.0
  %3801 = vmatpush1.msra.mxu0 %v1442
  %3802 = vmatprep.subr.mxu0 0.0
  %3803 = vmatpush1.msra.mxu0 %v1445
  %3804 = vmatprep.subr.mxu0 0.0
  %3805 = vmatpush1.msra.mxu0 %v1448
  %3806 = vmatprep.subr.mxu0 0.0
  %3807 = vmatpush1.msra.mxu0 %v1451
  %3808 = vmatprep.subr.mxu0 0.0
  %3809 = vmatpush1.msra.mxu0 %v1454
  %3810 = vmatprep.subr.mxu0 0.0
  %3811 = vmatpush1.msra.mxu0 %v1457
  %3812 = vmatprep.subr.mxu0 0.0
  %3813 = vmatpush1.msra.mxu0 %v1460
  %3814 = vmatprep.subr.mxu0 0.0
  %3815 = vmatpush1.msra.mxu0 %v1463
  %3816 = vmatprep.subr.mxu0 0.0
  %3817 = vmatpush1.msra.mxu0 %v1466
  %3818 = vmatprep.subr.mxu0 0.0
  %3819 = vmatpush1.msra.mxu0 0.0
  %3820 = vmatprep.subr.mxu0 0.0
  %3821 = vmatpush1.msra.mxu0 0.0
  %3822 = vmatprep.subr.mxu0 0.0
  %3823 = vmatpush1.msra.mxu0 0.0
  %3824 = vmatprep.subr.mxu0 0.0
  %3825 = vmatpush1.msra.mxu0 0.0
  %3826 = vmatprep.subr.mxu0 0.0
  %3827 = vmatpush1.msra.mxu0 0.0
  %3828 = vmatprep.subr.mxu0 0.0
  %3829 = vmatpush1.msra.mxu0 0.0
  %3830 = vmatprep.subr.mxu0 0.0
  %3831 = vmatpush1.msra.mxu0 0.0
  %3832 = vmatprep.subr.mxu0 0.0
  %3833 = vmatpush1.msra.mxu0 0.0
  %3834 = vmatprep.subr.mxu0 0.0
  %3835 = vmatpush1.msra.mxu0 0.0
  %3836 = vmatprep.subr.mxu0 0.0
  %3837 = vmatpush1.msra.mxu0 0.0
  %3838 = vmatprep.subr.mxu0 0.0
  %3839 = vmatpush1.msra.mxu0 0.0
  %3840 = vmatprep.subr.mxu0 0.0
  %3841 = vmatpush1.msra.mxu0 0.0
  %3842 = vmatprep.subr.mxu0 0.0
  %3843 = vmatpush1.msra.mxu0 0.0
  %3844 = vmatprep.subr.mxu0 0.0
  %3845 = vmatpush1.msra.mxu0 0.0
  %3846 = vmatprep.subr.mxu0 0.0
  %3847 = vmatpush1.msra.mxu0 0.0
  %3848 = vmatprep.subr.mxu0 0.0
  %3849 = vmatpush1.msra.mxu0 0.0
  %3850 = vmatprep.mubr.f32.mxu0 0.0
  %3851 = vmatmul.mubr.f32.gmra.mrb[0].mxu0 %v3411
  %v3852 = vpop.f32.mrb[0].mxu0
  %v3853 = vadd.f32 %v1854, %v3852
  %v3854 = vpop.f32.mrb[0].mxu0
  %3855 = vdwg.mxu0
  %v3856 = vadd.f32 %v3641, %v3782
  %v3857 = vadd.f32 %v3643, %v3784
  %v3858 = vxor.u32 %v3856, 2147483648
  %v3859 = vxor.u32 %v3857, 2147483648
  %v3860 = vmul.f32 %v3858, 1.442695
  %v3861 = vpow.pop %v3860
  %v3862 = vmul.f32 %v3859, 1.442695
  %v3863 = vpow.pop %v3862
  %v3864 = vadd.f32 %v3861, 1.0
  %v3865 = vadd.f32 %v3863, 1.0
  %v3866 = vrcp.pop %v3864
  %v3867 = vmul.f32 1.0, %v3866
  %v3868 = vrcp.pop %v3865
  %v3869 = vmul.f32 1.0, %v3868
  %v3870 = vmul.f32 %v3867, %v3853
  %v3871 = vadd.f32 %v3712, %v3870
  %v3872 = vtanh.pop %v3871
  %v3873 = vsub.f32 1.0, %v3869
  %v3874 = vmul.f32 %v3873, %v3872
  %v3875 = vmul.f32 %v3869, %v3411
  %v3876 = vadd.f32 %v3874, %v3875
  %3877 = vmatprep.subr.mxu0 %v1322
  %3878 = vmatpush1.msra.mxu0 %v1321
  %3879 = vmatprep.subr.mxu0 %v1325
  %3880 = vmatpush1.msra.mxu0 %v1324
  %3881 = vmatprep.subr.mxu0 %v1328
  %3882 = vmatpush1.msra.mxu0 %v1327
  %3883 = vmatprep.subr.mxu0 %v1331
  %3884 = vmatpush1.msra.mxu0 %v1330
  %3885 = vmatprep.subr.mxu0 %v1334
  %3886 = vmatpush1.msra.mxu0 %v1333
  %3887 = vmatprep.subr.mxu0 %v1337
  %3888 = vmatpush1.msra.mxu0 %v1336
  %3889 = vmatprep.subr.mxu0 %v1340
  %3890 = vmatpush1.msra.mxu0 %v1339
  %3891 = vmatprep.subr.mxu0 %v1343
  %3892 = vmatpush1.msra.mxu0 %v1342
  %3893 = vmatprep.subr.mxu0 %v1346
  %3894 = vmatpush1.msra.mxu0 %v1345
  %3895 = vmatprep.subr.mxu0 %v1349
  %3896 = vmatpush1.msra.mxu0 %v1348
  %3897 = vmatprep.subr.mxu0 %v1352
  %3898 = vmatpush1.msra.mxu0 %v1351
  %3899 = vmatprep.subr.mxu0 %v1355
  %3900 = vmatpush1.msra.mxu0 %v1354
  %3901 = vmatprep.subr.mxu0 %v1358
  %3902 = vmatpush1.msra.mxu0 %v1357
  %3903 = vmatprep.subr.mxu0 %v1361
  %3904 = vmatpush1.msra.mxu0 %v1360
  %3905 = vmatprep.subr.mxu0 %v1364
  %3906 = vmatpush1.msra.mxu0 %v1363
  %3907 = vmatprep.subr.mxu0 %v1367
  %3908 = vmatpush1.msra.mxu0 %v1366
  %3909 = vmatprep.subr.mxu0 0.0
  %3910 = vmatpush1.msra.mxu0 0.0
  %3911 = vmatprep.subr.mxu0 0.0
  %3912 = vmatpush1.msra.mxu0 0.0
  %3913 = vmatprep.subr.mxu0 0.0
  %3914 = vmatpush1.msra.mxu0 0.0
  %3915 = vmatprep.subr.mxu0 0.0
  %3916 = vmatpush1.msra.mxu0 0.0
  %3917 = vmatprep.subr.mxu0 0.0
  %3918 = vmatpush1.msra.mxu0 0.0
  %3919 = vmatprep.subr.mxu0 0.0
  %3920 = vmatpush1.msra.mxu0 0.0
  %3921 = vmatprep.subr.mxu0 0.0
  %3922 = vmatpush1.msra.mxu0 0.0
  %3923 = vmatprep.subr.mxu0 0.0
  %3924 = vmatpush1.msra.mxu0 0.0
  %3925 = vmatprep.subr.mxu0 0.0
  %3926 = vmatpush1.msra.mxu0 0.0
  %3927 = vmatprep.subr.mxu0 0.0
  %3928 = vmatpush1.msra.mxu0 0.0
  %3929 = vmatprep.subr.mxu0 0.0
  %3930 = vmatpush1.msra.mxu0 0.0
  %3931 = vmatprep.subr.mxu0 0.0
  %3932 = vmatpush1.msra.mxu0 0.0
  %3933 = vmatprep.subr.mxu0 0.0
  %3934 = vmatpush1.msra.mxu0 0.0
  %3935 = vmatprep.subr.mxu0 0.0
  %3936 = vmatpush1.msra.mxu0 0.0
  %3937 = vmatprep.subr.mxu0 0.0
  %3938 = vmatpush1.msra.mxu0 0.0
  %3939 = vmatprep.subr.mxu0 0.0
  %3940 = vmatpush1.msra.mxu0 0.0
  %3941 = vmatprep.mubr.f32.mxu0 0.0
  %3942 = vmatmul.mubr.f32.gmra.mrb[0].mxu0 %v3573
  %v3943 = vpop.f32.mrb[0].mxu0
  %v3944 = vadd.f32 %v1519, %v3943
  %v3945 = vpop.f32.mrb[0].mxu0
  %v3946 = vadd.f32 %v1523, %v3945
  %3947 = vdwg.mxu0
  %3948 = vmatprep.subr.mxu0 0.0
  %3949 = vmatpush1.msra.mxu0 %v1323
  %3950 = vmatprep.subr.mxu0 0.0
  %3951 = vmatpush1.msra.mxu0 %v1326
  %3952 = vmatprep.subr.mxu0 0.0
  %3953 = vmatpush1.msra.mxu0 %v1329
  %3954 = vmatprep.subr.mxu0 0.0
  %3955 = vmatpush1.msra.mxu0 %v1332
  %3956 = vmatprep.subr.mxu0 0.0
  %3957 = vmatpush1.msra.mxu0 %v1335
  %3958 = vmatprep.subr.mxu0 0.0
  %3959 = vmatpush1.msra.mxu0 %v1338
  %3960 = vmatprep.subr.mxu0 0.0
  %3961 = vmatpush1.msra.mxu0 %v1341
  %3962 = vmatprep.subr.mxu0 0.0
  %3963 = vmatpush1.msra.mxu0 %v1344
  %3964 = vmatprep.subr.mxu0 0.0
  %3965 = vmatpush1.msra.mxu0 %v1347
  %3966 = vmatprep.subr.mxu0 0.0
  %3967 = vmatpush1.msra.mxu0 %v1350
  %3968 = vmatprep.subr.mxu0 0.0
  %3969 = vmatpush1.msra.mxu0 %v1353
  %3970 = vmatprep.subr.mxu0 0.0
  %3971 = vmatpush1.msra.mxu0 %v1356
  %3972 = vmatprep.subr.mxu0 0.0
  %3973 = vmatpush1.msra.mxu0 %v1359
  %3974 = vmatprep.subr.mxu0 0.0
  %3975 = vmatpush1.msra.mxu0 %v1362
  %3976 = vmatprep.subr.mxu0 0.0
  %3977 = vmatpush1.msra.mxu0 %v1365
  %3978 = vmatprep.subr.mxu0 0.0
  %3979 = vmatpush1.msra.mxu0 %v1368
  %3980 = vmatprep.subr.mxu0 0.0
  %3981 = vmatpush1.msra.mxu0 0.0
  %3982 = vmatprep.subr.mxu0 0.0
  %3983 = vmatpush1.msra.mxu0 0.0
  %3984 = vmatprep.subr.mxu0 0.0
  %3985 = vmatpush1.msra.mxu0 0.0
  %3986 = vmatprep.subr.mxu0 0.0
  %3987 = vmatpush1.msra.mxu0 0.0
  %3988 = vmatprep.subr.mxu0 0.0
  %3989 = vmatpush1.msra.mxu0 0.0
  %3990 = vmatprep.subr.mxu0 0.0
  %3991 = vmatpush1.msra.mxu0 0.0
  %3992 = vmatprep.subr.mxu0 0.0
  %3993 = vmatpush1.msra.mxu0 0.0
  %3994 = vmatprep.subr.mxu0 0.0
  %3995 = vmatpush1.msra.mxu0 0.0
  %3996 = vmatprep.subr.mxu0 0.0
  %3997 = vmatpush1.msra.mxu0 0.0
  %3998 = vmatprep.subr.mxu0 0.0
  %3999 = vmatpush1.msra.mxu0 0.0
  %4000 = vmatprep.subr.mxu0 0.0
  %4001 = vmatpush1.msra.mxu0 0.0
  %4002 = vmatprep.subr.mxu0 0.0
  %4003 = vmatpush1.msra.mxu0 0.0
  %4004 = vmatprep.subr.mxu0 0.0
  %4005 = vmatpush1.msra.mxu0 0.0
  %4006 = vmatprep.subr.mxu0 0.0
  %4007 = vmatpush1.msra.mxu0 0.0
  %4008 = vmatprep.subr.mxu0 0.0
  %4009 = vmatpush1.msra.mxu0 0.0
  %4010 = vmatprep.subr.mxu0 0.0
  %4011 = vmatpush1.msra.mxu0 0.0
  %4012 = vmatprep.mubr.f32.mxu0 0.0
  %4013 = vmatmul.mubr.f32.gmra.mrb[0].mxu0 %v3573
  %v4014 = vpop.f32.mrb[0].mxu0
  %v4015 = vadd.f32 %v1527, %v4014
  %v4016 = vpop.f32.mrb[0].mxu0
  %4017 = vdwg.mxu0
  %v4018 = vadd.f32 %v1318, %v3944
  %v4019 = vadd.f32 %v1319, %v3946
  %v4020 = vxor.u32 %v4018, 2147483648
  %v4021 = vxor.u32 %v4019, 2147483648
  %v4022 = vmul.f32 %v4020, 1.442695
  %v4023 = vpow.pop %v4022
  %v4024 = vmul.f32 %v4021, 1.442695
  %v4025 = vpow.pop %v4024
  %v4026 = vadd.f32 %v4023, 1.0
  %v4027 = vadd.f32 %v4025, 1.0
  %v4028 = vrcp.pop %v4026
  %v4029 = vmul.f32 1.0, %v4028
  %v4030 = vrcp.pop %v4027
  %v4031 = vmul.f32 1.0, %v4030
  %v4032 = vmul.f32 %v4029, %v4015
  %v4033 = vadd.f32 %v1320, %v4032
  %v4034 = vtanh.pop %v4033
  %v4035 = vsub.f32 1.0, %v4031
  %v4036 = vmul.f32 %v4035, %v4034
  %v4037 = vmul.f32 %v4031, %v3573
  %v4038 = vadd.f32 %v4036, %v4037
  %4039 = vmatprep.subr.mxu0 %v1371
  %4040 = vmatpush1.msra.mxu0 %v1370
  %4041 = vmatprep.subr.mxu0 %v1374
  %4042 = vmatpush1.msra.mxu0 %v1373
  %4043 = vmatprep.subr.mxu0 %v1377
  %4044 = vmatpush1.msra.mxu0 %v1376
  %4045 = vmatprep.subr.mxu0 %v1380
  %4046 = vmatpush1.msra.mxu0 %v1379
  %4047 = vmatprep.subr.mxu0 %v1383
  %4048 = vmatpush1.msra.mxu0 %v1382
  %4049 = vmatprep.subr.mxu0 %v1386
  %4050 = vmatpush1.msra.mxu0 %v1385
  %4051 = vmatprep.subr.mxu0 %v1389
  %4052 = vmatpush1.msra.mxu0 %v1388
  %4053 = vmatprep.subr.mxu0 %v1392
  %4054 = vmatpush1.msra.mxu0 %v1391
  %4055 = vmatprep.subr.mxu0 %v1395
  %4056 = vmatpush1.msra.mxu0 %v1394
  %4057 = vmatprep.subr.mxu0 %v1398
  %4058 = vmatpush1.msra.mxu0 %v1397
  %4059 = vmatprep.subr.mxu0 %v1401
  %4060 = vmatpush1.msra.mxu0 %v1400
  %4061 = vmatprep.subr.mxu0 %v1404
  %4062 = vmatpush1.msra.mxu0 %v1403
  %4063 = vmatprep.subr.mxu0 %v1407
  %4064 = vmatpush1.msra.mxu0 %v1406
  %4065 = vmatprep.subr.mxu0 %v1410
  %4066 = vmatpush1.msra.mxu0 %v1409
  %4067 = vmatprep.subr.mxu0 %v1413
  %4068 = vmatpush1.msra.mxu0 %v1412
  %4069 = vmatprep.subr.mxu0 %v1416
  %4070 = vmatpush1.msra.mxu0 %v1415
  %4071 = vmatprep.subr.mxu0 0.0
  %4072 = vmatpush1.msra.mxu0 0.0
  %4073 = vmatprep.subr.mxu0 0.0
  %4074 = vmatpush1.msra.mxu0 0.0
  %4075 = vmatprep.subr.mxu0 0.0
  %4076 = vmatpush1.msra.mxu0 0.0
  %4077 = vmatprep.subr.mxu0 0.0
  %4078 = vmatpush1.msra.mxu0 0.0
  %4079 = vmatprep.subr.mxu0 0.0
  %4080 = vmatpush1.msra.mxu0 0.0
  %4081 = vmatprep.subr.mxu0 0.0
  %4082 = vmatpush1.msra.mxu0 0.0
  %4083 = vmatprep.subr.mxu0 0.0
  %4084 = vmatpush1.msra.mxu0 0.0
  %4085 = vmatprep.subr.mxu0 0.0
  %4086 = vmatpush1.msra.mxu0 0.0
  %4087 = vmatprep.subr.mxu0 0.0
  %4088 = vmatpush1.msra.mxu0 0.0
  %4089 = vmatprep.subr.mxu0 0.0
  %4090 = vmatpush1.msra.mxu0 0.0
  %4091 = vmatprep.subr.mxu0 0.0
  %4092 = vmatpush1.msra.mxu0 0.0
  %4093 = vmatprep.subr.mxu0 0.0
  %4094 = vmatpush1.msra.mxu0 0.0
  %4095 = vmatprep.subr.mxu0 0.0
  %4096 = vmatpush1.msra.mxu0 0.0
  %4097 = vmatprep.subr.mxu0 0.0
  %4098 = vmatpush1.msra.mxu0 0.0
  %4099 = vmatprep.subr.mxu0 0.0
  %4100 = vmatpush1.msra.mxu0 0.0
  %4101 = vmatprep.subr.mxu0 0.0
  %4102 = vmatpush1.msra.mxu0 0.0
  %4103 = vmatprep.mubr.f32.mxu0 0.0
  %4104 = vmatmul.mubr.f32.gmra.mrb[0].mxu0 %v4038
  %v4105 = vpop.f32.mrb[0].mxu0
  %v4106 = vadd.f32 %v1693, %v4105
  %v4107 = vpop.f32.mrb[0].mxu0
  %v4108 = vadd.f32 %v1697, %v4107
  %4109 = vdwg.mxu0
  %4110 = vmatprep.subr.mxu0 0.0
  %4111 = vmatpush1.msra.mxu0 %v1372
  %4112 = vmatprep.subr.mxu0 0.0
  %4113 = vmatpush1.msra.mxu0 %v1375
  %4114 = vmatprep.subr.mxu0 0.0
  %4115 = vmatpush1.msra.mxu0 %v1378
  %4116 = vmatprep.subr.mxu0 0.0
  %4117 = vmatpush1.msra.mxu0 %v1381
  %4118 = vmatprep.subr.mxu0 0.0
  %4119 = vmatpush1.msra.mxu0 %v1384
  %4120 = vmatprep.subr.mxu0 0.0
  %4121 = vmatpush1.msra.mxu0 %v1387
  %4122 = vmatprep.subr.mxu0 0.0
  %4123 = vmatpush1.msra.mxu0 %v1390
  %4124 = vmatprep.subr.mxu0 0.0
  %4125 = vmatpush1.msra.mxu0 %v1393
  %4126 = vmatprep.subr.mxu0 0.0
  %4127 = vmatpush1.msra.mxu0 %v1396
  %4128 = vmatprep.subr.mxu0 0.0
  %4129 = vmatpush1.msra.mxu0 %v1399
  %4130 = vmatprep.subr.mxu0 0.0
  %4131 = vmatpush1.msra.mxu0 %v1402
  %4132 = vmatprep.subr.mxu0 0.0
  %4133 = vmatpush1.msra.mxu0 %v1405
  %4134 = vmatprep.subr.mxu0 0.0
  %4135 = vmatpush1.msra.mxu0 %v1408
  %4136 = vmatprep.subr.mxu0 0.0
  %4137 = vmatpush1.msra.mxu0 %v1411
  %4138 = vmatprep.subr.mxu0 0.0
  %4139 = vmatpush1.msra.mxu0 %v1414
  %4140 = vmatprep.subr.mxu0 0.0
  %4141 = vmatpush1.msra.mxu0 %v1417
  %4142 = vmatprep.subr.mxu0 0.0
  %4143 = vmatpush1.msra.mxu0 0.0
  %4144 = vmatprep.subr.mxu0 0.0
  %4145 = vmatpush1.msra.mxu0 0.0
  %4146 = vmatprep.subr.mxu0 0.0
  %4147 = vmatpush1.msra.mxu0 0.0
  %4148 = vmatprep.subr.mxu0 0.0
  %4149 = vmatpush1.msra.mxu0 0.0
  %4150 = vmatprep.subr.mxu0 0.0
  %4151 = vmatpush1.msra.mxu0 0.0
  %4152 = vmatprep.subr.mxu0 0.0
  %4153 = vmatpush1.msra.mxu0 0.0
  %4154 = vmatprep.subr.mxu0 0.0
  %4155 = vmatpush1.msra.mxu0 0.0
  %4156 = vmatprep.subr.mxu0 0.0
  %4157 = vmatpush1.msra.mxu0 0.0
  %4158 = vmatprep.subr.mxu0 0.0
  %4159 = vmatpush1.msra.mxu0 0.0
  %4160 = vmatprep.subr.mxu0 0.0
  %4161 = vmatpush1.msra.mxu0 0.0
  %4162 = vmatprep.subr.mxu0 0.0
  %4163 = vmatpush1.msra.mxu0 0.0
  %4164 = vmatprep.subr.mxu0 0.0
  %4165 = vmatpush1.msra.mxu0 0.0
  %4166 = vmatprep.subr.mxu0 0.0
  %4167 = vmatpush1.msra.mxu0 0.0
  %4168 = vmatprep.subr.mxu0 0.0
  %4169 = vmatpush1.msra.mxu0 0.0
  %4170 = vmatprep.subr.mxu0 0.0
  %4171 = vmatpush1.msra.mxu0 0.0
  %4172 = vmatprep.subr.mxu0 0.0
  %4173 = vmatpush1.msra.mxu0 0.0
  %4174 = vmatprep.mubr.f32.mxu0 0.0
  %4175 = vmatmul.mubr.f32.gmra.mrb[0].mxu0 %v4038
  %v4176 = vpop.f32.mrb[0].mxu0
  %v4177 = vadd.f32 %v1701, %v4176
  %v4178 = vpop.f32.mrb[0].mxu0
  %4179 = vdwg.mxu0
  %4180 = vmatprep.subr.mxu0 %v1420
  %4181 = vmatpush1.msra.mxu0 %v1419
  %4182 = vmatprep.subr.mxu0 %v1423
  %4183 = vmatpush1.msra.mxu0 %v1422
  %4184 = vmatprep.subr.mxu0 %v1426
  %4185 = vmatpush1.msra.mxu0 %v1425
  %4186 = vmatprep.subr.mxu0 %v1429
  %4187 = vmatpush1.msra.mxu0 %v1428
  %4188 = vmatprep.subr.mxu0 %v1432
  %4189 = vmatpush1.msra.mxu0 %v1431
  %4190 = vmatprep.subr.mxu0 %v1435
  %4191 = vmatpush1.msra.mxu0 %v1434
  %4192 = vmatprep.subr.mxu0 %v1438
  %4193 = vmatpush1.msra.mxu0 %v1437
  %4194 = vmatprep.subr.mxu0 %v1441
  %4195 = vmatpush1.msra.mxu0 %v1440
  %4196 = vmatprep.subr.mxu0 %v1444
  %4197 = vmatpush1.msra.mxu0 %v1443
  %4198 = vmatprep.subr.mxu0 %v1447
  %4199 = vmatpush1.msra.mxu0 %v1446
  %4200 = vmatprep.subr.mxu0 %v1450
  %4201 = vmatpush1.msra.mxu0 %v1449
  %4202 = vmatprep.subr.mxu0 %v1453
  %4203 = vmatpush1.msra.mxu0 %v1452
  %4204 = vmatprep.subr.mxu0 %v1456
  %4205 = vmatpush1.msra.mxu0 %v1455
  %4206 = vmatprep.subr.mxu0 %v1459
  %4207 = vmatpush1.msra.mxu0 %v1458
  %4208 = vmatprep.subr.mxu0 %v1462
  %4209 = vmatpush1.msra.mxu0 %v1461
  %4210 = vmatprep.subr.mxu0 %v1465
  %4211 = vmatpush1.msra.mxu0 %v1464
  %4212 = vmatprep.subr.mxu0 0.0
  %4213 = vmatpush1.msra.mxu0 0.0
  %4214 = vmatprep.subr.mxu0 0.0
  %4215 = vmatpush1.msra.mxu0 0.0
  %4216 = vmatprep.subr.mxu0 0.0
  %4217 = vmatpush1.msra.mxu0 0.0
  %4218 = vmatprep.subr.mxu0 0.0
  %4219 = vmatpush1.msra.mxu0 0.0
  %4220 = vmatprep.subr.mxu0 0.0
  %4221 = vmatpush1.msra.mxu0 0.0
  %4222 = vmatprep.subr.mxu0 0.0
  %4223 = vmatpush1.msra.mxu0 0.0
  %4224 = vmatprep.subr.mxu0 0.0
  %4225 = vmatpush1.msra.mxu0 0.0
  %4226 = vmatprep.subr.mxu0 0.0
  %4227 = vmatpush1.msra.mxu0 0.0
  %4228 = vmatprep.subr.mxu0 0.0
  %4229 = vmatpush1.msra.mxu0 0.0
  %4230 = vmatprep.subr.mxu0 0.0
  %4231 = vmatpush1.msra.mxu0 0.0
  %4232 = vmatprep.subr.mxu0 0.0
  %4233 = vmatpush1.msra.mxu0 0.0
  %4234 = vmatprep.subr.mxu0 0.0
  %4235 = vmatpush1.msra.mxu0 0.0
  %4236 = vmatprep.subr.mxu0 0.0
  %4237 = vmatpush1.msra.mxu0 0.0
  %4238 = vmatprep.subr.mxu0 0.0
  %4239 = vmatpush1.msra.mxu0 0.0
  %4240 = vmatprep.subr.mxu0 0.0
  %4241 = vmatpush1.msra.mxu0 0.0
  %4242 = vmatprep.subr.mxu0 0.0
  %4243 = vmatpush1.msra.mxu0 0.0
  %4244 = vmatprep.mubr.f32.mxu0 0.0
  %4245 = vmatmul.mubr.f32.gmra.mrb[0].mxu0 %v3876
  %v4246 = vpop.f32.mrb[0].mxu0
  %v4247 = vadd.f32 %v1846, %v4246
  %v4248 = vpop.f32.mrb[0].mxu0
  %v4249 = vadd.f32 %v1850, %v4248
  %4250 = vdwg.mxu0
  %4251 = vmatprep.subr.mxu0 0.0
  %4252 = vmatpush1.msra.mxu0 %v1421
  %4253 = vmatprep.subr.mxu0 0.0
  %4254 = vmatpush1.msra.mxu0 %v1424
  %4255 = vmatprep.subr.mxu0 0.0
  %4256 = vmatpush1.msra.mxu0 %v1427
  %4257 = vmatprep.subr.mxu0 0.0
  %4258 = vmatpush1.msra.mxu0 %v1430
  %4259 = vmatprep.subr.mxu0 0.0
  %4260 = vmatpush1.msra.mxu0 %v1433
  %4261 = vmatprep.subr.mxu0 0.0
  %4262 = vmatpush1.msra.mxu0 %v1436
  %4263 = vmatprep.subr.mxu0 0.0
  %4264 = vmatpush1.msra.mxu0 %v1439
  %4265 = vmatprep.subr.mxu0 0.0
  %4266 = vmatpush1.msra.mxu0 %v1442
  %4267 = vmatprep.subr.mxu0 0.0
  %4268 = vmatpush1.msra.mxu0 %v1445
  %4269 = vmatprep.subr.mxu0 0.0
  %4270 = vmatpush1.msra.mxu0 %v1448
  %4271 = vmatprep.subr.mxu0 0.0
  %4272 = vmatpush1.msra.mxu0 %v1451
  %4273 = vmatprep.subr.mxu0 0.0
  %4274 = vmatpush1.msra.mxu0 %v1454
  %4275 = vmatprep.subr.mxu0 0.0
  %4276 = vmatpush1.msra.mxu0 %v1457
  %4277 = vmatprep.subr.mxu0 0.0
  %4278 = vmatpush1.msra.mxu0 %v1460
  %4279 = vmatprep.subr.mxu0 0.0
  %4280 = vmatpush1.msra.mxu0 %v1463
  %4281 = vmatprep.subr.mxu0 0.0
  %4282 = vmatpush1.msra.mxu0 %v1466
  %4283 = vmatprep.subr.mxu0 0.0
  %4284 = vmatpush1.msra.mxu0 0.0
  %4285 = vmatprep.subr.mxu0 0.0
  %4286 = vmatpush1.msra.mxu0 0.0
  %4287 = vmatprep.subr.mxu0 0.0
  %4288 = vmatpush1.msra.mxu0 0.0
  %4289 = vmatprep.subr.mxu0 0.0
  %4290 = vmatpush1.msra.mxu0 0.0
  %4291 = vmatprep.subr.mxu0 0.0
  %4292 = vmatpush1.msra.mxu0 0.0
  %4293 = vmatprep.subr.mxu0 0.0
  %4294 = vmatpush1.msra.mxu0 0.0
  %4295 = vmatprep.subr.mxu0 0.0
  %4296 = vmatpush1.msra.mxu0 0.0
  %4297 = vmatprep.subr.mxu0 0.0
  %4298 = vmatpush1.msra.mxu0 0.0
  %4299 = vmatprep.subr.mxu0 0.0
  %4300 = vmatpush1.msra.mxu0 0.0
  %4301 = vmatprep.subr.mxu0 0.0
  %4302 = vmatpush1.msra.mxu0 0.0
  %4303 = vmatprep.subr.mxu0 0.0
  %4304 = vmatpush1.msra.mxu0 0.0
  %4305 = vmatprep.subr.mxu0 0.0
  %4306 = vmatpush1.msra.mxu0 0.0
  %4307 = vmatprep.subr.mxu0 0.0
  %4308 = vmatpush1.msra.mxu0 0.0
  %4309 = vmatprep.subr.mxu0 0.0
  %4310 = vmatpush1.msra.mxu0 0.0
  %4311 = vmatprep.subr.mxu0 0.0
  %4312 = vmatpush1.msra.mxu0 0.0
  %4313 = vmatprep.subr.mxu0 0.0
  %4314 = vmatpush1.msra.mxu0 0.0
  %4315 = vmatprep.mubr.f32.mxu0 0.0
  %4316 = vmatmul.mubr.f32.gmra.mrb[0].mxu0 %v3876
  %v4317 = vpop.f32.mrb[0].mxu0
  %v4318 = vadd.f32 %v1854, %v4317
  %v4319 = vpop.f32.mrb[0].mxu0
  %4320 = vdwg.mxu0
  %v4321 = vadd.f32 %v4106, %v4247
  %v4322 = vadd.f32 %v4108, %v4249
  %v4323 = vxor.u32 %v4321, 2147483648
  %v4324 = vxor.u32 %v4322, 2147483648
  %v4325 = vmul.f32 %v4323, 1.442695
  %v4326 = vpow.pop %v4325
  %v4327 = vmul.f32 %v4324, 1.442695
  %v4328 = vpow.pop %v4327
  %v4329 = vadd.f32 %v4326, 1.0
  %v4330 = vadd.f32 %v4328, 1.0
  %v4331 = vrcp.pop %v4329
  %v4332 = vmul.f32 1.0, %v4331
  %v4333 = vrcp.pop %v4330
  %v4334 = vmul.f32 1.0, %v4333
  %v4335 = vmul.f32 %v4332, %v4318
  %v4336 = vadd.f32 %v4177, %v4335
  %v4337 = vtanh.pop %v4336
  %v4338 = vsub.f32 1.0, %v4334
  %v4339 = vmul.f32 %v4338, %v4337
  %v4340 = vmul.f32 %v4334, %v3876
  %v4341 = vadd.f32 %v4339, %v4340
  %4342 = vmatprep.subr.mxu0 %v1322
  %4343 = vmatpush1.msra.mxu0 %v1321
  %4344 = vmatprep.subr.mxu0 %v1325
  %4345 = vmatpush1.msra.mxu0 %v1324
  %4346 = vmatprep.subr.mxu0 %v1328
  %4347 = vmatpush1.msra.mxu0 %v1327
  %4348 = vmatprep.subr.mxu0 %v1331
  %4349 = vmatpush1.msra.mxu0 %v1330
  %4350 = vmatprep.subr.mxu0 %v1334
  %4351 = vmatpush1.msra.mxu0 %v1333
  %4352 = vmatprep.subr.mxu0 %v1337
  %4353 = vmatpush1.msra.mxu0 %v1336
  %4354 = vmatprep.subr.mxu0 %v1340
  %4355 = vmatpush1.msra.mxu0 %v1339
  %4356 = vmatprep.subr.mxu0 %v1343
  %4357 = vmatpush1.msra.mxu0 %v1342
  %4358 = vmatprep.subr.mxu0 %v1346
  %4359 = vmatpush1.msra.mxu0 %v1345
  %4360 = vmatprep.subr.mxu0 %v1349
  %4361 = vmatpush1.msra.mxu0 %v1348
  %4362 = vmatprep.subr.mxu0 %v1352
  %4363 = vmatpush1.msra.mxu0 %v1351
  %4364 = vmatprep.subr.mxu0 %v1355
  %4365 = vmatpush1.msra.mxu0 %v1354
  %4366 = vmatprep.subr.mxu0 %v1358
  %4367 = vmatpush1.msra.mxu0 %v1357
  %4368 = vmatprep.subr.mxu0 %v1361
  %4369 = vmatpush1.msra.mxu0 %v1360
  %4370 = vmatprep.subr.mxu0 %v1364
  %4371 = vmatpush1.msra.mxu0 %v1363
  %4372 = vmatprep.subr.mxu0 %v1367
  %4373 = vmatpush1.msra.mxu0 %v1366
  %4374 = vmatprep.subr.mxu0 0.0
  %4375 = vmatpush1.msra.mxu0 0.0
  %4376 = vmatprep.subr.mxu0 0.0
  %4377 = vmatpush1.msra.mxu0 0.0
  %4378 = vmatprep.subr.mxu0 0.0
  %4379 = vmatpush1.msra.mxu0 0.0
  %4380 = vmatprep.subr.mxu0 0.0
  %4381 = vmatpush1.msra.mxu0 0.0
  %4382 = vmatprep.subr.mxu0 0.0
  %4383 = vmatpush1.msra.mxu0 0.0
  %4384 = vmatprep.subr.mxu0 0.0
  %4385 = vmatpush1.msra.mxu0 0.0
  %4386 = vmatprep.subr.mxu0 0.0
  %4387 = vmatpush1.msra.mxu0 0.0
  %4388 = vmatprep.subr.mxu0 0.0
  %4389 = vmatpush1.msra.mxu0 0.0
  %4390 = vmatprep.subr.mxu0 0.0
  %4391 = vmatpush1.msra.mxu0 0.0
  %4392 = vmatprep.subr.mxu0 0.0
  %4393 = vmatpush1.msra.mxu0 0.0
  %4394 = vmatprep.subr.mxu0 0.0
  %4395 = vmatpush1.msra.mxu0 0.0
  %4396 = vmatprep.subr.mxu0 0.0
  %4397 = vmatpush1.msra.mxu0 0.0
  %4398 = vmatprep.subr.mxu0 0.0
  %4399 = vmatpush1.msra.mxu0 0.0
  %4400 = vmatprep.subr.mxu0 0.0
  %4401 = vmatpush1.msra.mxu0 0.0
  %4402 = vmatprep.subr.mxu0 0.0
  %4403 = vmatpush1.msra.mxu0 0.0
  %4404 = vmatprep.subr.mxu0 0.0
  %4405 = vmatpush1.msra.mxu0 0.0
  %4406 = vmatprep.mubr.f32.mxu0 0.0
  %4407 = vmatmul.mubr.f32.gmra.mrb[0].mxu0 %v4038
  %v4408 = vpop.f32.mrb[0].mxu0
  %v4409 = vadd.f32 %v1519, %v4408
  %v4410 = vpop.f32.mrb[0].mxu0
  %v4411 = vadd.f32 %v1523, %v4410
  %4412 = vdwg.mxu0
  %4413 = vmatprep.subr.mxu0 0.0
  %4414 = vmatpush1.msra.mxu0 %v1323
  %4415 = vmatprep.subr.mxu0 0.0
  %4416 = vmatpush1.msra.mxu0 %v1326
  %4417 = vmatprep.subr.mxu0 0.0
  %4418 = vmatpush1.msra.mxu0 %v1329
  %4419 = vmatprep.subr.mxu0 0.0
  %4420 = vmatpush1.msra.mxu0 %v1332
  %4421 = vmatprep.subr.mxu0 0.0
  %4422 = vmatpush1.msra.mxu0 %v1335
  %4423 = vmatprep.subr.mxu0 0.0
  %4424 = vmatpush1.msra.mxu0 %v1338
  %4425 = vmatprep.subr.mxu0 0.0
  %4426 = vmatpush1.msra.mxu0 %v1341
  %4427 = vmatprep.subr.mxu0 0.0
  %4428 = vmatpush1.msra.mxu0 %v1344
  %4429 = vmatprep.subr.mxu0 0.0
  %4430 = vmatpush1.msra.mxu0 %v1347
  %4431 = vmatprep.subr.mxu0 0.0
  %4432 = vmatpush1.msra.mxu0 %v1350
  %4433 = vmatprep.subr.mxu0 0.0
  %4434 = vmatpush1.msra.mxu0 %v1353
  %4435 = vmatprep.subr.mxu0 0.0
  %4436 = vmatpush1.msra.mxu0 %v1356
  %4437 = vmatprep.subr.mxu0 0.0
  %4438 = vmatpush1.msra.mxu0 %v1359
  %4439 = vmatprep.subr.mxu0 0.0
  %4440 = vmatpush1.msra.mxu0 %v1362
  %4441 = vmatprep.subr.mxu0 0.0
  %4442 = vmatpush1.msra.mxu0 %v1365
  %4443 = vmatprep.subr.mxu0 0.0
  %4444 = vmatpush1.msra.mxu0 %v1368
  %4445 = vmatprep.subr.mxu0 0.0
  %4446 = vmatpush1.msra.mxu0 0.0
  %4447 = vmatprep.subr.mxu0 0.0
  %4448 = vmatpush1.msra.mxu0 0.0
  %4449 = vmatprep.subr.mxu0 0.0
  %4450 = vmatpush1.msra.mxu0 0.0
  %4451 = vmatprep.subr.mxu0 0.0
  %4452 = vmatpush1.msra.mxu0 0.0
  %4453 = vmatprep.subr.mxu0 0.0
  %4454 = vmatpush1.msra.mxu0 0.0
  %4455 = vmatprep.subr.mxu0 0.0
  %4456 = vmatpush1.msra.mxu0 0.0
  %4457 = vmatprep.subr.mxu0 0.0
  %4458 = vmatpush1.msra.mxu0 0.0
  %4459 = vmatprep.subr.mxu0 0.0
  %4460 = vmatpush1.msra.mxu0 0.0
  %4461 = vmatprep.subr.mxu0 0.0
  %4462 = vmatpush1.msra.mxu0 0.0
  %4463 = vmatprep.subr.mxu0 0.0
  %4464 = vmatpush1.msra.mxu0 0.0
  %4465 = vmatprep.subr.mxu0 0.0
  %4466 = vmatpush1.msra.mxu0 0.0
  %4467 = vmatprep.subr.mxu0 0.0
  %4468 = vmatpush1.msra.mxu0 0.0
  %4469 = vmatprep.subr.mxu0 0.0
  %4470 = vmatpush1.msra.mxu0 0.0
  %4471 = vmatprep.subr.mxu0 0.0
  %4472 = vmatpush1.msra.mxu0 0.0
  %4473 = vmatprep.subr.mxu0 0.0
  %4474 = vmatpush1.msra.mxu0 0.0
  %4475 = vmatprep.subr.mxu0 0.0
  %4476 = vmatpush1.msra.mxu0 0.0
  %4477 = vmatprep.mubr.f32.mxu0 0.0
  %4478 = vmatmul.mubr.f32.gmra.mrb[0].mxu0 %v4038
  %v4479 = vpop.f32.mrb[0].mxu0
  %v4480 = vadd.f32 %v1527, %v4479
  %v4481 = vpop.f32.mrb[0].mxu0
  %4482 = vdwg.mxu0
  %v4483 = vadd.f32 %v1318, %v4409
  %v4484 = vadd.f32 %v1319, %v4411
  %v4485 = vxor.u32 %v4483, 2147483648
  %v4486 = vxor.u32 %v4484, 2147483648
  %v4487 = vmul.f32 %v4485, 1.442695
  %v4488 = vpow.pop %v4487
  %v4489 = vmul.f32 %v4486, 1.442695
  %v4490 = vpow.pop %v4489
  %v4491 = vadd.f32 %v4488, 1.0
  %v4492 = vadd.f32 %v4490, 1.0
  %v4493 = vrcp.pop %v4491
  %v4494 = vmul.f32 1.0, %v4493
  %v4495 = vrcp.pop %v4492
  %v4496 = vmul.f32 1.0, %v4495
  %v4497 = vmul.f32 %v4494, %v4480
  %v4498 = vadd.f32 %v1320, %v4497
  %v4499 = vtanh.pop %v4498
  %v4500 = vsub.f32 1.0, %v4496
  %v4501 = vmul.f32 %v4500, %v4499
  %v4502 = vmul.f32 %v4496, %v4038
  %v4503 = vadd.f32 %v4501, %v4502
  %4504 = vmatprep.subr.mxu0 %v1371
  %4505 = vmatpush1.msra.mxu0 %v1370
  %4506 = vmatprep.subr.mxu0 %v1374
  %4507 = vmatpush1.msra.mxu0 %v1373
  %4508 = vmatprep.subr.mxu0 %v1377
  %4509 = vmatpush1.msra.mxu0 %v1376
  %4510 = vmatprep.subr.mxu0 %v1380
  %4511 = vmatpush1.msra.mxu0 %v1379
  %4512 = vmatprep.subr.mxu0 %v1383
  %4513 = vmatpush1.msra.mxu0 %v1382
  %4514 = vmatprep.subr.mxu0 %v1386
  %4515 = vmatpush1.msra.mxu0 %v1385
  %4516 = vmatprep.subr.mxu0 %v1389
  %4517 = vmatpush1.msra.mxu0 %v1388
  %4518 = vmatprep.subr.mxu0 %v1392
  %4519 = vmatpush1.msra.mxu0 %v1391
  %4520 = vmatprep.subr.mxu0 %v1395
  %4521 = vmatpush1.msra.mxu0 %v1394
  %4522 = vmatprep.subr.mxu0 %v1398
  %4523 = vmatpush1.msra.mxu0 %v1397
  %4524 = vmatprep.subr.mxu0 %v1401
  %4525 = vmatpush1.msra.mxu0 %v1400
  %4526 = vmatprep.subr.mxu0 %v1404
  %4527 = vmatpush1.msra.mxu0 %v1403
  %4528 = vmatprep.subr.mxu0 %v1407
  %4529 = vmatpush1.msra.mxu0 %v1406
  %4530 = vmatprep.subr.mxu0 %v1410
  %4531 = vmatpush1.msra.mxu0 %v1409
  %4532 = vmatprep.subr.mxu0 %v1413
  %4533 = vmatpush1.msra.mxu0 %v1412
  %4534 = vmatprep.subr.mxu0 %v1416
  %4535 = vmatpush1.msra.mxu0 %v1415
  %4536 = vmatprep.subr.mxu0 0.0
  %4537 = vmatpush1.msra.mxu0 0.0
  %4538 = vmatprep.subr.mxu0 0.0
  %4539 = vmatpush1.msra.mxu0 0.0
  %4540 = vmatprep.subr.mxu0 0.0
  %4541 = vmatpush1.msra.mxu0 0.0
  %4542 = vmatprep.subr.mxu0 0.0
  %4543 = vmatpush1.msra.mxu0 0.0
  %4544 = vmatprep.subr.mxu0 0.0
  %4545 = vmatpush1.msra.mxu0 0.0
  %4546 = vmatprep.subr.mxu0 0.0
  %4547 = vmatpush1.msra.mxu0 0.0
  %4548 = vmatprep.subr.mxu0 0.0
  %4549 = vmatpush1.msra.mxu0 0.0
  %4550 = vmatprep.subr.mxu0 0.0
  %4551 = vmatpush1.msra.mxu0 0.0
  %4552 = vmatprep.subr.mxu0 0.0
  %4553 = vmatpush1.msra.mxu0 0.0
  %4554 = vmatprep.subr.mxu0 0.0
  %4555 = vmatpush1.msra.mxu0 0.0
  %4556 = vmatprep.subr.mxu0 0.0
  %4557 = vmatpush1.msra.mxu0 0.0
  %4558 = vmatprep.subr.mxu0 0.0
  %4559 = vmatpush1.msra.mxu0 0.0
  %4560 = vmatprep.subr.mxu0 0.0
  %4561 = vmatpush1.msra.mxu0 0.0
  %4562 = vmatprep.subr.mxu0 0.0
  %4563 = vmatpush1.msra.mxu0 0.0
  %4564 = vmatprep.subr.mxu0 0.0
  %4565 = vmatpush1.msra.mxu0 0.0
  %4566 = vmatprep.subr.mxu0 0.0
  %4567 = vmatpush1.msra.mxu0 0.0
  %4568 = vmatprep.mubr.f32.mxu0 0.0
  %4569 = vmatmul.mubr.f32.gmra.mrb[0].mxu0 %v4503
  %v4570 = vpop.f32.mrb[0].mxu0
  %v4571 = vadd.f32 %v1693, %v4570
  %v4572 = vpop.f32.mrb[0].mxu0
  %v4573 = vadd.f32 %v1697, %v4572
  %4574 = vdwg.mxu0
  %4575 = vmatprep.subr.mxu0 0.0
  %4576 = vmatpush1.msra.mxu0 %v1372
  %4577 = vmatprep.subr.mxu0 0.0
  %4578 = vmatpush1.msra.mxu0 %v1375
  %4579 = vmatprep.subr.mxu0 0.0
  %4580 = vmatpush1.msra.mxu0 %v1378
  %4581 = vmatprep.subr.mxu0 0.0
  %4582 = vmatpush1.msra.mxu0 %v1381
  %4583 = vmatprep.subr.mxu0 0.0
  %4584 = vmatpush1.msra.mxu0 %v1384
  %4585 = vmatprep.subr.mxu0 0.0
  %4586 = vmatpush1.msra.mxu0 %v1387
  %4587 = vmatprep.subr.mxu0 0.0
  %4588 = vmatpush1.msra.mxu0 %v1390
  %4589 = vmatprep.subr.mxu0 0.0
  %4590 = vmatpush1.msra.mxu0 %v1393
  %4591 = vmatprep.subr.mxu0 0.0
  %4592 = vmatpush1.msra.mxu0 %v1396
  %4593 = vmatprep.subr.mxu0 0.0
  %4594 = vmatpush1.msra.mxu0 %v1399
  %4595 = vmatprep.subr.mxu0 0.0
  %4596 = vmatpush1.msra.mxu0 %v1402
  %4597 = vmatprep.subr.mxu0 0.0
  %4598 = vmatpush1.msra.mxu0 %v1405
  %4599 = vmatprep.subr.mxu0 0.0
  %4600 = vmatpush1.msra.mxu0 %v1408
  %4601 = vmatprep.subr.mxu0 0.0
  %4602 = vmatpush1.msra.mxu0 %v1411
  %4603 = vmatprep.subr.mxu0 0.0
  %4604 = vmatpush1.msra.mxu0 %v1414
  %4605 = vmatprep.subr.mxu0 0.0
  %4606 = vmatpush1.msra.mxu0 %v1417
  %4607 = vmatprep.subr.mxu0 0.0
  %4608 = vmatpush1.msra.mxu0 0.0
  %4609 = vmatprep.subr.mxu0 0.0
  %4610 = vmatpush1.msra.mxu0 0.0
  %4611 = vmatprep.subr.mxu0 0.0
  %4612 = vmatpush1.msra.mxu0 0.0
  %4613 = vmatprep.subr.mxu0 0.0
  %4614 = vmatpush1.msra.mxu0 0.0
  %4615 = vmatprep.subr.mxu0 0.0
  %4616 = vmatpush1.msra.mxu0 0.0
  %4617 = vmatprep.subr.mxu0 0.0
  %4618 = vmatpush1.msra.mxu0 0.0
  %4619 = vmatprep.subr.mxu0 0.0
  %4620 = vmatpush1.msra.mxu0 0.0
  %4621 = vmatprep.subr.mxu0 0.0
  %4622 = vmatpush1.msra.mxu0 0.0
  %4623 = vmatprep.subr.mxu0 0.0
  %4624 = vmatpush1.msra.mxu0 0.0
  %4625 = vmatprep.subr.mxu0 0.0
  %4626 = vmatpush1.msra.mxu0 0.0
  %4627 = vmatprep.subr.mxu0 0.0
  %4628 = vmatpush1.msra.mxu0 0.0
  %4629 = vmatprep.subr.mxu0 0.0
  %4630 = vmatpush1.msra.mxu0 0.0
  %4631 = vmatprep.subr.mxu0 0.0
  %4632 = vmatpush1.msra.mxu0 0.0
  %4633 = vmatprep.subr.mxu0 0.0
  %4634 = vmatpush1.msra.mxu0 0.0
  %4635 = vmatprep.subr.mxu0 0.0
  %4636 = vmatpush1.msra.mxu0 0.0
  %4637 = vmatprep.subr.mxu0 0.0
  %4638 = vmatpush1.msra.mxu0 0.0
  %4639 = vmatprep.mubr.f32.mxu0 0.0
  %4640 = vmatmul.mubr.f32.gmra.mrb[0].mxu0 %v4503
  %v4641 = vpop.f32.mrb[0].mxu0
  %v4642 = vadd.f32 %v1701, %v4641
  %v4643 = vpop.f32.mrb[0].mxu0
  %4644 = vdwg.mxu0
  %4645 = vmatprep.subr.mxu0 %v1420
  %4646 = vmatpush1.msra.mxu0 %v1419
  %4647 = vmatprep.subr.mxu0 %v1423
  %4648 = vmatpush1.msra.mxu0 %v1422
  %4649 = vmatprep.subr.mxu0 %v1426
  %4650 = vmatpush1.msra.mxu0 %v1425
  %4651 = vmatprep.subr.mxu0 %v1429
  %4652 = vmatpush1.msra.mxu0 %v1428
  %4653 = vmatprep.subr.mxu0 %v1432
  %4654 = vmatpush1.msra.mxu0 %v1431
  %4655 = vmatprep.subr.mxu0 %v1435
  %4656 = vmatpush1.msra.mxu0 %v1434
  %4657 = vmatprep.subr.mxu0 %v1438
  %4658 = vmatpush1.msra.mxu0 %v1437
  %4659 = vmatprep.subr.mxu0 %v1441
  %4660 = vmatpush1.msra.mxu0 %v1440
  %4661 = vmatprep.subr.mxu0 %v1444
  %4662 = vmatpush1.msra.mxu0 %v1443
  %4663 = vmatprep.subr.mxu0 %v1447
  %4664 = vmatpush1.msra.mxu0 %v1446
  %4665 = vmatprep.subr.mxu0 %v1450
  %4666 = vmatpush1.msra.mxu0 %v1449
  %4667 = vmatprep.subr.mxu0 %v1453
  %4668 = vmatpush1.msra.mxu0 %v1452
  %4669 = vmatprep.subr.mxu0 %v1456
  %4670 = vmatpush1.msra.mxu0 %v1455
  %4671 = vmatprep.subr.mxu0 %v1459
  %4672 = vmatpush1.msra.mxu0 %v1458
  %4673 = vmatprep.subr.mxu0 %v1462
  %4674 = vmatpush1.msra.mxu0 %v1461
  %4675 = vmatprep.subr.mxu0 %v1465
  %4676 = vmatpush1.msra.mxu0 %v1464
  %4677 = vmatprep.subr.mxu0 0.0
  %4678 = vmatpush1.msra.mxu0 0.0
  %4679 = vmatprep.subr.mxu0 0.0
  %4680 = vmatpush1.msra.mxu0 0.0
  %4681 = vmatprep.subr.mxu0 0.0
  %4682 = vmatpush1.msra.mxu0 0.0
  %4683 = vmatprep.subr.mxu0 0.0
  %4684 = vmatpush1.msra.mxu0 0.0
  %4685 = vmatprep.subr.mxu0 0.0
  %4686 = vmatpush1.msra.mxu0 0.0
  %4687 = vmatprep.subr.mxu0 0.0
  %4688 = vmatpush1.msra.mxu0 0.0
  %4689 = vmatprep.subr.mxu0 0.0
  %4690 = vmatpush1.msra.mxu0 0.0
  %4691 = vmatprep.subr.mxu0 0.0
  %4692 = vmatpush1.msra.mxu0 0.0
  %4693 = vmatprep.subr.mxu0 0.0
  %4694 = vmatpush1.msra.mxu0 0.0
  %4695 = vmatprep.subr.mxu0 0.0
  %4696 = vmatpush1.msra.mxu0 0.0
  %4697 = vmatprep.subr.mxu0 0.0
  %4698 = vmatpush1.msra.mxu0 0.0
  %4699 = vmatprep.subr.mxu0 0.0
  %4700 = vmatpush1.msra.mxu0 0.0
  %4701 = vmatprep.subr.mxu0 0.0
  %4702 = vmatpush1.msra.mxu0 0.0
  %4703 = vmatprep.subr.mxu0 0.0
  %4704 = vmatpush1.msra.mxu0 0.0
  %4705 = vmatprep.subr.mxu0 0.0
  %4706 = vmatpush1.msra.mxu0 0.0
  %4707 = vmatprep.subr.mxu0 0.0
  %4708 = vmatpush1.msra.mxu0 0.0
  %4709 = vmatprep.mubr.f32.mxu0 0.0
  %4710 = vmatmul.mubr.f32.gmra.mrb[0].mxu0 %v4341
  %v4711 = vpop.f32.mrb[0].mxu0
  %v4712 = vadd.f32 %v1846, %v4711
  %v4713 = vpop.f32.mrb[0].mxu0
  %v4714 = vadd.f32 %v1850, %v4713
  %4715 = vdwg.mxu0
  %4716 = vmatprep.subr.mxu0 0.0
  %4717 = vmatpush1.msra.mxu0 %v1421
  %4718 = vmatprep.subr.mxu0 0.0
  %4719 = vmatpush1.msra.mxu0 %v1424
  %4720 = vmatprep.subr.mxu0 0.0
  %4721 = vmatpush1.msra.mxu0 %v1427
  %4722 = vmatprep.subr.mxu0 0.0
  %4723 = vmatpush1.msra.mxu0 %v1430
  %4724 = vmatprep.subr.mxu0 0.0
  %4725 = vmatpush1.msra.mxu0 %v1433
  %4726 = vmatprep.subr.mxu0 0.0
  %4727 = vmatpush1.msra.mxu0 %v1436
  %4728 = vmatprep.subr.mxu0 0.0
  %4729 = vmatpush1.msra.mxu0 %v1439
  %4730 = vmatprep.subr.mxu0 0.0
  %4731 = vmatpush1.msra.mxu0 %v1442
  %4732 = vmatprep.subr.mxu0 0.0
  %4733 = vmatpush1.msra.mxu0 %v1445
  %4734 = vmatprep.subr.mxu0 0.0
  %4735 = vmatpush1.msra.mxu0 %v1448
  %4736 = vmatprep.subr.mxu0 0.0
  %4737 = vmatpush1.msra.mxu0 %v1451
  %4738 = vmatprep.subr.mxu0 0.0
  %4739 = vmatpush1.msra.mxu0 %v1454
  %4740 = vmatprep.subr.mxu0 0.0
  %4741 = vmatpush1.msra.mxu0 %v1457
  %4742 = vmatprep.subr.mxu0 0.0
  %4743 = vmatpush1.msra.mxu0 %v1460
  %4744 = vmatprep.subr.mxu0 0.0
  %4745 = vmatpush1.msra.mxu0 %v1463
  %4746 = vmatprep.subr.mxu0 0.0
  %4747 = vmatpush1.msra.mxu0 %v1466
  %4748 = vmatprep.subr.mxu0 0.0
  %4749 = vmatpush1.msra.mxu0 0.0
  %4750 = vmatprep.subr.mxu0 0.0
  %4751 = vmatpush1.msra.mxu0 0.0
  %4752 = vmatprep.subr.mxu0 0.0
  %4753 = vmatpush1.msra.mxu0 0.0
  %4754 = vmatprep.subr.mxu0 0.0
  %4755 = vmatpush1.msra.mxu0 0.0
  %4756 = vmatprep.subr.mxu0 0.0
  %4757 = vmatpush1.msra.mxu0 0.0
  %4758 = vmatprep.subr.mxu0 0.0
  %4759 = vmatpush1.msra.mxu0 0.0
  %4760 = vmatprep.subr.mxu0 0.0
  %4761 = vmatpush1.msra.mxu0 0.0
  %4762 = vmatprep.subr.mxu0 0.0
  %4763 = vmatpush1.msra.mxu0 0.0
  %4764 = vmatprep.subr.mxu0 0.0
  %4765 = vmatpush1.msra.mxu0 0.0
  %4766 = vmatprep.subr.mxu0 0.0
  %4767 = vmatpush1.msra.mxu0 0.0
  %4768 = vmatprep.subr.mxu0 0.0
  %4769 = vmatpush1.msra.mxu0 0.0
  %4770 = vmatprep.subr.mxu0 0.0
  %4771 = vmatpush1.msra.mxu0 0.0
  %4772 = vmatprep.subr.mxu0 0.0
  %4773 = vmatpush1.msra.mxu0 0.0
  %4774 = vmatprep.subr.mxu0 0.0
  %4775 = vmatpush1.msra.mxu0 0.0
  %4776 = vmatprep.subr.mxu0 0.0
  %4777 = vmatpush1.msra.mxu0 0.0
  %4778 = vmatprep.subr.mxu0 0.0
  %4779 = vmatpush1.msra.mxu0 0.0
  %4780 = vmatprep.mubr.f32.mxu0 0.0
  %4781 = vmatmul.mubr.f32.gmra.mrb[0].mxu0 %v4341
  %v4782 = vpop.f32.mrb[0].mxu0
  %v4783 = vadd.f32 %v1854, %v4782
  %v4784 = vpop.f32.mrb[0].mxu0
  %4785 = vdwg.mxu0
  %v4786 = vadd.f32 %v4571, %v4712
  %v4787 = vadd.f32 %v4573, %v4714
  %v4788 = vxor.u32 %v4786, 2147483648
  %v4789 = vxor.u32 %v4787, 2147483648
  %v4790 = vmul.f32 %v4788, 1.442695
  %v4791 = vpow.pop %v4790
  %v4792 = vmul.f32 %v4789, 1.442695
  %v4793 = vpow.pop %v4792
  %v4794 = vadd.f32 %v4791, 1.0
  %v4795 = vadd.f32 %v4793, 1.0
  %v4796 = vrcp.pop %v4794
  %v4797 = vmul.f32 1.0, %v4796
  %v4798 = vrcp.pop %v4795
  %v4799 = vmul.f32 1.0, %v4798
  %v4800 = vmul.f32 %v4797, %v4783
  %v4801 = vadd.f32 %v4642, %v4800
  %v4802 = vtanh.pop %v4801
  %v4803 = vsub.f32 1.0, %v4799
  %v4804 = vmul.f32 %v4803, %v4802
  %v4805 = vmul.f32 %v4799, %v4341
  %v4806 = vadd.f32 %v4804, %v4805
  %4807 = vmatprep.subr.mxu0 %v1322
  %4808 = vmatpush1.msra.mxu0 %v1321
  %4809 = vmatprep.subr.mxu0 %v1325
  %4810 = vmatpush1.msra.mxu0 %v1324
  %4811 = vmatprep.subr.mxu0 %v1328
  %4812 = vmatpush1.msra.mxu0 %v1327
  %4813 = vmatprep.subr.mxu0 %v1331
  %4814 = vmatpush1.msra.mxu0 %v1330
  %4815 = vmatprep.subr.mxu0 %v1334
  %4816 = vmatpush1.msra.mxu0 %v1333
  %4817 = vmatprep.subr.mxu0 %v1337
  %4818 = vmatpush1.msra.mxu0 %v1336
  %4819 = vmatprep.subr.mxu0 %v1340
  %4820 = vmatpush1.msra.mxu0 %v1339
  %4821 = vmatprep.subr.mxu0 %v1343
  %4822 = vmatpush1.msra.mxu0 %v1342
  %4823 = vmatprep.subr.mxu0 %v1346
  %4824 = vmatpush1.msra.mxu0 %v1345
  %4825 = vmatprep.subr.mxu0 %v1349
  %4826 = vmatpush1.msra.mxu0 %v1348
  %4827 = vmatprep.subr.mxu0 %v1352
  %4828 = vmatpush1.msra.mxu0 %v1351
  %4829 = vmatprep.subr.mxu0 %v1355
  %4830 = vmatpush1.msra.mxu0 %v1354
  %4831 = vmatprep.subr.mxu0 %v1358
  %4832 = vmatpush1.msra.mxu0 %v1357
  %4833 = vmatprep.subr.mxu0 %v1361
  %4834 = vmatpush1.msra.mxu0 %v1360
  %4835 = vmatprep.subr.mxu0 %v1364
  %4836 = vmatpush1.msra.mxu0 %v1363
  %4837 = vmatprep.subr.mxu0 %v1367
  %4838 = vmatpush1.msra.mxu0 %v1366
  %4839 = vmatprep.subr.mxu0 0.0
  %4840 = vmatpush1.msra.mxu0 0.0
  %4841 = vmatprep.subr.mxu0 0.0
  %4842 = vmatpush1.msra.mxu0 0.0
  %4843 = vmatprep.subr.mxu0 0.0
  %4844 = vmatpush1.msra.mxu0 0.0
  %4845 = vmatprep.subr.mxu0 0.0
  %4846 = vmatpush1.msra.mxu0 0.0
  %4847 = vmatprep.subr.mxu0 0.0
  %4848 = vmatpush1.msra.mxu0 0.0
  %4849 = vmatprep.subr.mxu0 0.0
  %4850 = vmatpush1.msra.mxu0 0.0
  %4851 = vmatprep.subr.mxu0 0.0
  %4852 = vmatpush1.msra.mxu0 0.0
  %4853 = vmatprep.subr.mxu0 0.0
  %4854 = vmatpush1.msra.mxu0 0.0
  %4855 = vmatprep.subr.mxu0 0.0
  %4856 = vmatpush1.msra.mxu0 0.0
  %4857 = vmatprep.subr.mxu0 0.0
  %4858 = vmatpush1.msra.mxu0 0.0
  %4859 = vmatprep.subr.mxu0 0.0
  %4860 = vmatpush1.msra.mxu0 0.0
  %4861 = vmatprep.subr.mxu0 0.0
  %4862 = vmatpush1.msra.mxu0 0.0
  %4863 = vmatprep.subr.mxu0 0.0
  %4864 = vmatpush1.msra.mxu0 0.0
  %4865 = vmatprep.subr.mxu0 0.0
  %4866 = vmatpush1.msra.mxu0 0.0
  %4867 = vmatprep.subr.mxu0 0.0
  %4868 = vmatpush1.msra.mxu0 0.0
  %4869 = vmatprep.subr.mxu0 0.0
  %4870 = vmatpush1.msra.mxu0 0.0
  %4871 = vmatprep.mubr.f32.mxu0 0.0
  %4872 = vmatmul.mubr.f32.gmra.mrb[0].mxu0 %v4503
  %v4873 = vpop.f32.mrb[0].mxu0
  %v4874 = vadd.f32 %v1519, %v4873
  %v4875 = vpop.f32.mrb[0].mxu0
  %v4876 = vadd.f32 %v1523, %v4875
  %4877 = vdwg.mxu0
  %4878 = vmatprep.subr.mxu0 0.0
  %4879 = vmatpush1.msra.mxu0 %v1323
  %4880 = vmatprep.subr.mxu0 0.0
  %4881 = vmatpush1.msra.mxu0 %v1326
  %4882 = vmatprep.subr.mxu0 0.0
  %4883 = vmatpush1.msra.mxu0 %v1329
  %4884 = vmatprep.subr.mxu0 0.0
  %4885 = vmatpush1.msra.mxu0 %v1332
  %4886 = vmatprep.subr.mxu0 0.0
  %4887 = vmatpush1.msra.mxu0 %v1335
  %4888 = vmatprep.subr.mxu0 0.0
  %4889 = vmatpush1.msra.mxu0 %v1338
  %4890 = vmatprep.subr.mxu0 0.0
  %4891 = vmatpush1.msra.mxu0 %v1341
  %4892 = vmatprep.subr.mxu0 0.0
  %4893 = vmatpush1.msra.mxu0 %v1344
  %4894 = vmatprep.subr.mxu0 0.0
  %4895 = vmatpush1.msra.mxu0 %v1347
  %4896 = vmatprep.subr.mxu0 0.0
  %4897 = vmatpush1.msra.mxu0 %v1350
  %4898 = vmatprep.subr.mxu0 0.0
  %4899 = vmatpush1.msra.mxu0 %v1353
  %4900 = vmatprep.subr.mxu0 0.0
  %4901 = vmatpush1.msra.mxu0 %v1356
  %4902 = vmatprep.subr.mxu0 0.0
  %4903 = vmatpush1.msra.mxu0 %v1359
  %4904 = vmatprep.subr.mxu0 0.0
  %4905 = vmatpush1.msra.mxu0 %v1362
  %4906 = vmatprep.subr.mxu0 0.0
  %4907 = vmatpush1.msra.mxu0 %v1365
  %4908 = vmatprep.subr.mxu0 0.0
  %4909 = vmatpush1.msra.mxu0 %v1368
  %4910 = vmatprep.subr.mxu0 0.0
  %4911 = vmatpush1.msra.mxu0 0.0
  %4912 = vmatprep.subr.mxu0 0.0
  %4913 = vmatpush1.msra.mxu0 0.0
  %4914 = vmatprep.subr.mxu0 0.0
  %4915 = vmatpush1.msra.mxu0 0.0
  %4916 = vmatprep.subr.mxu0 0.0
  %4917 = vmatpush1.msra.mxu0 0.0
  %4918 = vmatprep.subr.mxu0 0.0
  %4919 = vmatpush1.msra.mxu0 0.0
  %4920 = vmatprep.subr.mxu0 0.0
  %4921 = vmatpush1.msra.mxu0 0.0
  %4922 = vmatprep.subr.mxu0 0.0
  %4923 = vmatpush1.msra.mxu0 0.0
  %4924 = vmatprep.subr.mxu0 0.0
  %4925 = vmatpush1.msra.mxu0 0.0
  %4926 = vmatprep.subr.mxu0 0.0
  %4927 = vmatpush1.msra.mxu0 0.0
  %4928 = vmatprep.subr.mxu0 0.0
  %4929 = vmatpush1.msra.mxu0 0.0
  %4930 = vmatprep.subr.mxu0 0.0
  %4931 = vmatpush1.msra.mxu0 0.0
  %4932 = vmatprep.subr.mxu0 0.0
  %4933 = vmatpush1.msra.mxu0 0.0
  %4934 = vmatprep.subr.mxu0 0.0
  %4935 = vmatpush1.msra.mxu0 0.0
  %4936 = vmatprep.subr.mxu0 0.0
  %4937 = vmatpush1.msra.mxu0 0.0
  %4938 = vmatprep.subr.mxu0 0.0
  %4939 = vmatpush1.msra.mxu0 0.0
  %4940 = vmatprep.subr.mxu0 0.0
  %4941 = vmatpush1.msra.mxu0 0.0
  %4942 = vmatprep.mubr.f32.mxu0 0.0
  %4943 = vmatmul.mubr.f32.gmra.mrb[0].mxu0 %v4503
  %v4944 = vpop.f32.mrb[0].mxu0
  %v4945 = vadd.f32 %v1527, %v4944
  %v4946 = vpop.f32.mrb[0].mxu0
  %4947 = vdwg.mxu0
  %v4948 = vadd.f32 %v1318, %v4874
  %v4949 = vadd.f32 %v1319, %v4876
  %v4950 = vxor.u32 %v4948, 2147483648
  %v4951 = vxor.u32 %v4949, 2147483648
  %v4952 = vmul.f32 %v4950, 1.442695
  %v4953 = vpow.pop %v4952
  %v4954 = vmul.f32 %v4951, 1.442695
  %v4955 = vpow.pop %v4954
  %v4956 = vadd.f32 %v4953, 1.0
  %v4957 = vadd.f32 %v4955, 1.0
  %v4958 = vrcp.pop %v4956
  %v4959 = vmul.f32 1.0, %v4958
  %v4960 = vrcp.pop %v4957
  %v4961 = vmul.f32 1.0, %v4960
  %v4962 = vmul.f32 %v4959, %v4945
  %v4963 = vadd.f32 %v1320, %v4962
  %v4964 = vtanh.pop %v4963
  %v4965 = vsub.f32 1.0, %v4961
  %v4966 = vmul.f32 %v4965, %v4964
  %v4967 = vmul.f32 %v4961, %v4503
  %v4968 = vadd.f32 %v4966, %v4967
  %4969 = vmatprep.subr.mxu0 %v1371
  %4970 = vmatpush1.msra.mxu0 %v1370
  %4971 = vmatprep.subr.mxu0 %v1374
  %4972 = vmatpush1.msra.mxu0 %v1373
  %4973 = vmatprep.subr.mxu0 %v1377
  %4974 = vmatpush1.msra.mxu0 %v1376
  %4975 = vmatprep.subr.mxu0 %v1380
  %4976 = vmatpush1.msra.mxu0 %v1379
  %4977 = vmatprep.subr.mxu0 %v1383
  %4978 = vmatpush1.msra.mxu0 %v1382
  %4979 = vmatprep.subr.mxu0 %v1386
  %4980 = vmatpush1.msra.mxu0 %v1385
  %4981 = vmatprep.subr.mxu0 %v1389
  %4982 = vmatpush1.msra.mxu0 %v1388
  %4983 = vmatprep.subr.mxu0 %v1392
  %4984 = vmatpush1.msra.mxu0 %v1391
  %4985 = vmatprep.subr.mxu0 %v1395
  %4986 = vmatpush1.msra.mxu0 %v1394
  %4987 = vmatprep.subr.mxu0 %v1398
  %4988 = vmatpush1.msra.mxu0 %v1397
  %4989 = vmatprep.subr.mxu0 %v1401
  %4990 = vmatpush1.msra.mxu0 %v1400
  %4991 = vmatprep.subr.mxu0 %v1404
  %4992 = vmatpush1.msra.mxu0 %v1403
  %4993 = vmatprep.subr.mxu0 %v1407
  %4994 = vmatpush1.msra.mxu0 %v1406
  %4995 = vmatprep.subr.mxu0 %v1410
  %4996 = vmatpush1.msra.mxu0 %v1409
  %4997 = vmatprep.subr.mxu0 %v1413
  %4998 = vmatpush1.msra.mxu0 %v1412
  %4999 = vmatprep.subr.mxu0 %v1416
  %5000 = vmatpush1.msra.mxu0 %v1415
  %5001 = vmatprep.subr.mxu0 0.0
  %5002 = vmatpush1.msra.mxu0 0.0
  %5003 = vmatprep.subr.mxu0 0.0
  %5004 = vmatpush1.msra.mxu0 0.0
  %5005 = vmatprep.subr.mxu0 0.0
  %5006 = vmatpush1.msra.mxu0 0.0
  %5007 = vmatprep.subr.mxu0 0.0
  %5008 = vmatpush1.msra.mxu0 0.0
  %5009 = vmatprep.subr.mxu0 0.0
  %5010 = vmatpush1.msra.mxu0 0.0
  %5011 = vmatprep.subr.mxu0 0.0
  %5012 = vmatpush1.msra.mxu0 0.0
  %5013 = vmatprep.subr.mxu0 0.0
  %5014 = vmatpush1.msra.mxu0 0.0
  %5015 = vmatprep.subr.mxu0 0.0
  %5016 = vmatpush1.msra.mxu0 0.0
  %5017 = vmatprep.subr.mxu0 0.0
  %5018 = vmatpush1.msra.mxu0 0.0
  %5019 = vmatprep.subr.mxu0 0.0
  %5020 = vmatpush1.msra.mxu0 0.0
  %5021 = vmatprep.subr.mxu0 0.0
  %5022 = vmatpush1.msra.mxu0 0.0
  %5023 = vmatprep.subr.mxu0 0.0
  %5024 = vmatpush1.msra.mxu0 0.0
  %5025 = vmatprep.subr.mxu0 0.0
  %5026 = vmatpush1.msra.mxu0 0.0
  %5027 = vmatprep.subr.mxu0 0.0
  %5028 = vmatpush1.msra.mxu0 0.0
  %5029 = vmatprep.subr.mxu0 0.0
  %5030 = vmatpush1.msra.mxu0 0.0
  %5031 = vmatprep.subr.mxu0 0.0
  %5032 = vmatpush1.msra.mxu0 0.0
  %5033 = vmatprep.mubr.f32.mxu0 0.0
  %5034 = vmatmul.mubr.f32.gmra.mrb[0].mxu0 %v4968
  %v5035 = vpop.f32.mrb[0].mxu0
  %v5036 = vadd.f32 %v1693, %v5035
  %v5037 = vpop.f32.mrb[0].mxu0
  %v5038 = vadd.f32 %v1697, %v5037
  %5039 = vdwg.mxu0
  %5040 = vmatprep.subr.mxu0 0.0
  %5041 = vmatpush1.msra.mxu0 %v1372
  %5042 = vmatprep.subr.mxu0 0.0
  %5043 = vmatpush1.msra.mxu0 %v1375
  %5044 = vmatprep.subr.mxu0 0.0
  %5045 = vmatpush1.msra.mxu0 %v1378
  %5046 = vmatprep.subr.mxu0 0.0
  %5047 = vmatpush1.msra.mxu0 %v1381
  %5048 = vmatprep.subr.mxu0 0.0
  %5049 = vmatpush1.msra.mxu0 %v1384
  %5050 = vmatprep.subr.mxu0 0.0
  %5051 = vmatpush1.msra.mxu0 %v1387
  %5052 = vmatprep.subr.mxu0 0.0
  %5053 = vmatpush1.msra.mxu0 %v1390
  %5054 = vmatprep.subr.mxu0 0.0
  %5055 = vmatpush1.msra.mxu0 %v1393
  %5056 = vmatprep.subr.mxu0 0.0
  %5057 = vmatpush1.msra.mxu0 %v1396
  %5058 = vmatprep.subr.mxu0 0.0
  %5059 = vmatpush1.msra.mxu0 %v1399
  %5060 = vmatprep.subr.mxu0 0.0
  %5061 = vmatpush1.msra.mxu0 %v1402
  %5062 = vmatprep.subr.mxu0 0.0
  %5063 = vmatpush1.msra.mxu0 %v1405
  %5064 = vmatprep.subr.mxu0 0.0
  %5065 = vmatpush1.msra.mxu0 %v1408
  %5066 = vmatprep.subr.mxu0 0.0
  %5067 = vmatpush1.msra.mxu0 %v1411
  %5068 = vmatprep.subr.mxu0 0.0
  %5069 = vmatpush1.msra.mxu0 %v1414
  %5070 = vmatprep.subr.mxu0 0.0
  %5071 = vmatpush1.msra.mxu0 %v1417
  %5072 = vmatprep.subr.mxu0 0.0
  %5073 = vmatpush1.msra.mxu0 0.0
  %5074 = vmatprep.subr.mxu0 0.0
  %5075 = vmatpush1.msra.mxu0 0.0
  %5076 = vmatprep.subr.mxu0 0.0
  %5077 = vmatpush1.msra.mxu0 0.0
  %5078 = vmatprep.subr.mxu0 0.0
  %5079 = vmatpush1.msra.mxu0 0.0
  %5080 = vmatprep.subr.mxu0 0.0
  %5081 = vmatpush1.msra.mxu0 0.0
  %5082 = vmatprep.subr.mxu0 0.0
  %5083 = vmatpush1.msra.mxu0 0.0
  %5084 = vmatprep.subr.mxu0 0.0
  %5085 = vmatpush1.msra.mxu0 0.0
  %5086 = vmatprep.subr.mxu0 0.0
  %5087 = vmatpush1.msra.mxu0 0.0
  %5088 = vmatprep.subr.mxu0 0.0
  %5089 = vmatpush1.msra.mxu0 0.0
  %5090 = vmatprep.subr.mxu0 0.0
  %5091 = vmatpush1.msra.mxu0 0.0
  %5092 = vmatprep.subr.mxu0 0.0
  %5093 = vmatpush1.msra.mxu0 0.0
  %5094 = vmatprep.subr.mxu0 0.0
  %5095 = vmatpush1.msra.mxu0 0.0
  %5096 = vmatprep.subr.mxu0 0.0
  %5097 = vmatpush1.msra.mxu0 0.0
  %5098 = vmatprep.subr.mxu0 0.0
  %5099 = vmatpush1.msra.mxu0 0.0
  %5100 = vmatprep.subr.mxu0 0.0
  %5101 = vmatpush1.msra.mxu0 0.0
  %5102 = vmatprep.subr.mxu0 0.0
  %5103 = vmatpush1.msra.mxu0 0.0
  %5104 = vmatprep.mubr.f32.mxu0 0.0
  %5105 = vmatmul.mubr.f32.gmra.mrb[0].mxu0 %v4968
  %v5106 = vpop.f32.mrb[0].mxu0
  %v5107 = vadd.f32 %v1701, %v5106
  %v5108 = vpop.f32.mrb[0].mxu0
  %5109 = vdwg.mxu0
  %5110 = vmatprep.subr.mxu0 %v1420
  %5111 = vmatpush1.msra.mxu0 %v1419
  %5112 = vmatprep.subr.mxu0 %v1423
  %5113 = vmatpush1.msra.mxu0 %v1422
  %5114 = vmatprep.subr.mxu0 %v1426
  %5115 = vmatpush1.msra.mxu0 %v1425
  %5116 = vmatprep.subr.mxu0 %v1429
  %5117 = vmatpush1.msra.mxu0 %v1428
  %5118 = vmatprep.subr.mxu0 %v1432
  %5119 = vmatpush1.msra.mxu0 %v1431
  %5120 = vmatprep.subr.mxu0 %v1435
  %5121 = vmatpush1.msra.mxu0 %v1434
  %5122 = vmatprep.subr.mxu0 %v1438
  %5123 = vmatpush1.msra.mxu0 %v1437
  %5124 = vmatprep.subr.mxu0 %v1441
  %5125 = vmatpush1.msra.mxu0 %v1440
  %5126 = vmatprep.subr.mxu0 %v1444
  %5127 = vmatpush1.msra.mxu0 %v1443
  %5128 = vmatprep.subr.mxu0 %v1447
  %5129 = vmatpush1.msra.mxu0 %v1446
  %5130 = vmatprep.subr.mxu0 %v1450
  %5131 = vmatpush1.msra.mxu0 %v1449
  %5132 = vmatprep.subr.mxu0 %v1453
  %5133 = vmatpush1.msra.mxu0 %v1452
  %5134 = vmatprep.subr.mxu0 %v1456
  %5135 = vmatpush1.msra.mxu0 %v1455
  %5136 = vmatprep.subr.mxu0 %v1459
  %5137 = vmatpush1.msra.mxu0 %v1458
  %5138 = vmatprep.subr.mxu0 %v1462
  %5139 = vmatpush1.msra.mxu0 %v1461
  %5140 = vmatprep.subr.mxu0 %v1465
  %5141 = vmatpush1.msra.mxu0 %v1464
  %5142 = vmatprep.subr.mxu0 0.0
  %5143 = vmatpush1.msra.mxu0 0.0
  %5144 = vmatprep.subr.mxu0 0.0
  %5145 = vmatpush1.msra.mxu0 0.0
  %5146 = vmatprep.subr.mxu0 0.0
  %5147 = vmatpush1.msra.mxu0 0.0
  %5148 = vmatprep.subr.mxu0 0.0
  %5149 = vmatpush1.msra.mxu0 0.0
  %5150 = vmatprep.subr.mxu0 0.0
  %5151 = vmatpush1.msra.mxu0 0.0
  %5152 = vmatprep.subr.mxu0 0.0
  %5153 = vmatpush1.msra.mxu0 0.0
  %5154 = vmatprep.subr.mxu0 0.0
  %5155 = vmatpush1.msra.mxu0 0.0
  %5156 = vmatprep.subr.mxu0 0.0
  %5157 = vmatpush1.msra.mxu0 0.0
  %5158 = vmatprep.subr.mxu0 0.0
  %5159 = vmatpush1.msra.mxu0 0.0
  %5160 = vmatprep.subr.mxu0 0.0
  %5161 = vmatpush1.msra.mxu0 0.0
  %5162 = vmatprep.subr.mxu0 0.0
  %5163 = vmatpush1.msra.mxu0 0.0
  %5164 = vmatprep.subr.mxu0 0.0
  %5165 = vmatpush1.msra.mxu0 0.0
  %5166 = vmatprep.subr.mxu0 0.0
  %5167 = vmatpush1.msra.mxu0 0.0
  %5168 = vmatprep.subr.mxu0 0.0
  %5169 = vmatpush1.msra.mxu0 0.0
  %5170 = vmatprep.subr.mxu0 0.0
  %5171 = vmatpush1.msra.mxu0 0.0
  %5172 = vmatprep.subr.mxu0 0.0
  %5173 = vmatpush1.msra.mxu0 0.0
  %5174 = vmatprep.mubr.f32.mxu0 0.0
  %5175 = vmatmul.mubr.f32.gmra.mrb[0].mxu0 %v4806
  %v5176 = vpop.f32.mrb[0].mxu0
  %v5177 = vadd.f32 %v1846, %v5176
  %v5178 = vpop.f32.mrb[0].mxu0
  %v5179 = vadd.f32 %v1850, %v5178
  %5180 = vdwg.mxu0
  %5181 = vmatprep.subr.mxu0 0.0
  %5182 = vmatpush1.msra.mxu0 %v1421
  %5183 = vmatprep.subr.mxu0 0.0
  %5184 = vmatpush1.msra.mxu0 %v1424
  %5185 = vmatprep.subr.mxu0 0.0
  %5186 = vmatpush1.msra.mxu0 %v1427
  %5187 = vmatprep.subr.mxu0 0.0
  %5188 = vmatpush1.msra.mxu0 %v1430
  %5189 = vmatprep.subr.mxu0 0.0
  %5190 = vmatpush1.msra.mxu0 %v1433
  %5191 = vmatprep.subr.mxu0 0.0
  %5192 = vmatpush1.msra.mxu0 %v1436
  %5193 = vmatprep.subr.mxu0 0.0
  %5194 = vmatpush1.msra.mxu0 %v1439
  %5195 = vmatprep.subr.mxu0 0.0
  %5196 = vmatpush1.msra.mxu0 %v1442
  %5197 = vmatprep.subr.mxu0 0.0
  %5198 = vmatpush1.msra.mxu0 %v1445
  %5199 = vmatprep.subr.mxu0 0.0
  %5200 = vmatpush1.msra.mxu0 %v1448
  %5201 = vmatprep.subr.mxu0 0.0
  %5202 = vmatpush1.msra.mxu0 %v1451
  %5203 = vmatprep.subr.mxu0 0.0
  %5204 = vmatpush1.msra.mxu0 %v1454
  %5205 = vmatprep.subr.mxu0 0.0
  %5206 = vmatpush1.msra.mxu0 %v1457
  %5207 = vmatprep.subr.mxu0 0.0
  %5208 = vmatpush1.msra.mxu0 %v1460
  %5209 = vmatprep.subr.mxu0 0.0
  %5210 = vmatpush1.msra.mxu0 %v1463
  %5211 = vmatprep.subr.mxu0 0.0
  %5212 = vmatpush1.msra.mxu0 %v1466
  %5213 = vmatprep.subr.mxu0 0.0
  %5214 = vmatpush1.msra.mxu0 0.0
  %5215 = vmatprep.subr.mxu0 0.0
  %5216 = vmatpush1.msra.mxu0 0.0
  %5217 = vmatprep.subr.mxu0 0.0
  %5218 = vmatpush1.msra.mxu0 0.0
  %5219 = vmatprep.subr.mxu0 0.0
  %5220 = vmatpush1.msra.mxu0 0.0
  %5221 = vmatprep.subr.mxu0 0.0
  %5222 = vmatpush1.msra.mxu0 0.0
  %5223 = vmatprep.subr.mxu0 0.0
  %5224 = vmatpush1.msra.mxu0 0.0
  %5225 = vmatprep.subr.mxu0 0.0
  %5226 = vmatpush1.msra.mxu0 0.0
  %5227 = vmatprep.subr.mxu0 0.0
  %5228 = vmatpush1.msra.mxu0 0.0
  %5229 = vmatprep.subr.mxu0 0.0
  %5230 = vmatpush1.msra.mxu0 0.0
  %5231 = vmatprep.subr.mxu0 0.0
  %5232 = vmatpush1.msra.mxu0 0.0
  %5233 = vmatprep.subr.mxu0 0.0
  %5234 = vmatpush1.msra.mxu0 0.0
  %5235 = vmatprep.subr.mxu0 0.0
  %5236 = vmatpush1.msra.mxu0 0.0
  %5237 = vmatprep.subr.mxu0 0.0
  %5238 = vmatpush1.msra.mxu0 0.0
  %5239 = vmatprep.subr.mxu0 0.0
  %5240 = vmatpush1.msra.mxu0 0.0
  %5241 = vmatprep.subr.mxu0 0.0
  %5242 = vmatpush1.msra.mxu0 0.0
  %5243 = vmatprep.subr.mxu0 0.0
  %5244 = vmatpush1.msra.mxu0 0.0
  %5245 = vmatprep.mubr.f32.mxu0 0.0
  %5246 = vmatmul.mubr.f32.gmra.mrb[0].mxu0 %v4806
  %v5247 = vpop.f32.mrb[0].mxu0
  %v5248 = vadd.f32 %v1854, %v5247
  %v5249 = vpop.f32.mrb[0].mxu0
  %5250 = vdwg.mxu0
  %v5251 = vadd.f32 %v5036, %v5177
  %v5252 = vadd.f32 %v5038, %v5179
  %v5253 = vxor.u32 %v5251, 2147483648
  %v5254 = vxor.u32 %v5252, 2147483648
  %v5255 = vmul.f32 %v5253, 1.442695
  %v5256 = vpow.pop %v5255
  %v5257 = vmul.f32 %v5254, 1.442695
  %v5258 = vpow.pop %v5257
  %v5259 = vadd.f32 %v5256, 1.0
  %v5260 = vadd.f32 %v5258, 1.0
  %v5261 = vrcp.pop %v5259
  %v5262 = vmul.f32 1.0, %v5261
  %v5263 = vrcp.pop %v5260
  %v5264 = vmul.f32 1.0, %v5263
  %v5265 = vmul.f32 %v5262, %v5248
  %v5266 = vadd.f32 %v5107, %v5265
  %v5267 = vtanh.pop %v5266
  %v5268 = vsub.f32 1.0, %v5264
  %v5269 = vmul.f32 %v5268, %v5267
  %v5270 = vmul.f32 %v5264, %v4806
  %v5271 = vadd.f32 %v5269, %v5270
  %v5272 = vlaneseq
  %v5273 = vshrl.u32 %v5272, 7
  %v5274 = vsub.s32 4, %v5273
  %v5275 = vrot.slane %v1011, %v5274
  %v5276 = vlaneseq
  %v5277 = vshrl.u32 %v5276, 7
  %v5278 = vsub.s32 4, %v5277
  %v5279 = vrot.slane %v1012, %v5278
  %v5280 = vlaneseq
  %v5281 = vshrl.u32 %v5280, 7
  %v5282 = vsub.s32 4, %v5281
  %v5283 = vrot.slane %v1013, %v5282
  %5284 = vmatprep.subr.mxu0 %v1469
  %5285 = vmatpush1.msra.mxu0 %v1468
  %5286 = vmatprep.subr.mxu0 %v1472
  %5287 = vmatpush1.msra.mxu0 %v1471
  %5288 = vmatprep.subr.mxu0 %v1475
  %5289 = vmatpush1.msra.mxu0 %v1474
  %5290 = vmatprep.subr.mxu0 %v1478
  %5291 = vmatpush1.msra.mxu0 %v1477
  %5292 = vmatprep.subr.mxu0 %v1481
  %5293 = vmatpush1.msra.mxu0 %v1480
  %5294 = vmatprep.subr.mxu0 %v1484
  %5295 = vmatpush1.msra.mxu0 %v1483
  %5296 = vmatprep.subr.mxu0 %v1487
  %5297 = vmatpush1.msra.mxu0 %v1486
  %5298 = vmatprep.subr.mxu0 %v1490
  %5299 = vmatpush1.msra.mxu0 %v1489
  %5300 = vmatprep.subr.mxu0 %v1493
  %5301 = vmatpush1.msra.mxu0 %v1492
  %5302 = vmatprep.subr.mxu0 %v1496
  %5303 = vmatpush1.msra.mxu0 %v1495
  %5304 = vmatprep.subr.mxu0 %v1499
  %5305 = vmatpush1.msra.mxu0 %v1498
  %5306 = vmatprep.subr.mxu0 %v1502
  %5307 = vmatpush1.msra.mxu0 %v1501
  %5308 = vmatprep.subr.mxu0 %v1505
  %5309 = vmatpush1.msra.mxu0 %v1504
  %5310 = vmatprep.subr.mxu0 %v1508
  %5311 = vmatpush1.msra.mxu0 %v1507
  %5312 = vmatprep.subr.mxu0 %v1511
  %5313 = vmatpush1.msra.mxu0 %v1510
  %5314 = vmatprep.subr.mxu0 %v1514
  %5315 = vmatpush1.msra.mxu0 %v1513
  %5316 = vmatprep.subr.mxu0 0.0
  %5317 = vmatpush1.msra.mxu0 0.0
  %5318 = vmatprep.subr.mxu0 0.0
  %5319 = vmatpush1.msra.mxu0 0.0
  %5320 = vmatprep.subr.mxu0 0.0
  %5321 = vmatpush1.msra.mxu0 0.0
  %5322 = vmatprep.subr.mxu0 0.0
  %5323 = vmatpush1.msra.mxu0 0.0
  %5324 = vmatprep.subr.mxu0 0.0
  %5325 = vmatpush1.msra.mxu0 0.0
  %5326 = vmatprep.subr.mxu0 0.0
  %5327 = vmatpush1.msra.mxu0 0.0
  %5328 = vmatprep.subr.mxu0 0.0
  %5329 = vmatpush1.msra.mxu0 0.0
  %5330 = vmatprep.subr.mxu0 0.0
  %5331 = vmatpush1.msra.mxu0 0.0
  %5332 = vmatprep.subr.mxu0 0.0
  %5333 = vmatpush1.msra.mxu0 0.0
  %5334 = vmatprep.subr.mxu0 0.0
  %5335 = vmatpush1.msra.mxu0 0.0
  %5336 = vmatprep.subr.mxu0 0.0
  %5337 = vmatpush1.msra.mxu0 0.0
  %5338 = vmatprep.subr.mxu0 0.0
  %5339 = vmatpush1.msra.mxu0 0.0
  %5340 = vmatprep.subr.mxu0 0.0
  %5341 = vmatpush1.msra.mxu0 0.0
  %5342 = vmatprep.subr.mxu0 0.0
  %5343 = vmatpush1.msra.mxu0 0.0
  %5344 = vmatprep.subr.mxu0 0.0
  %5345 = vmatpush1.msra.mxu0 0.0
  %5346 = vmatprep.subr.mxu0 0.0
  %5347 = vmatpush1.msra.mxu0 0.0
  %5348 = vmatprep.mubr.f32.mxu0 0.0
  %5349 = vmatmul.mubr.f32.gmra.mrb[0].mxu0 %v5271
  %v5350 = vpop.f32.mrb[0].mxu0
  %v5351 = vadd.f32 %v5275, %v5350
  %v5352 = vpop.f32.mrb[0].mxu0
  %v5353 = vadd.f32 %v5279, %v5352
  %5354 = vdwg.mxu0
  %5355 = vmatprep.subr.mxu0 0.0
  %5356 = vmatpush1.msra.mxu0 %v1470
  %5357 = vmatprep.subr.mxu0 0.0
  %5358 = vmatpush1.msra.mxu0 %v1473
  %5359 = vmatprep.subr.mxu0 0.0
  %5360 = vmatpush1.msra.mxu0 %v1476
  %5361 = vmatprep.subr.mxu0 0.0
  %5362 = vmatpush1.msra.mxu0 %v1479
  %5363 = vmatprep.subr.mxu0 0.0
  %5364 = vmatpush1.msra.mxu0 %v1482
  %5365 = vmatprep.subr.mxu0 0.0
  %5366 = vmatpush1.msra.mxu0 %v1485
  %5367 = vmatprep.subr.mxu0 0.0
  %5368 = vmatpush1.msra.mxu0 %v1488
  %5369 = vmatprep.subr.mxu0 0.0
  %5370 = vmatpush1.msra.mxu0 %v1491
  %5371 = vmatprep.subr.mxu0 0.0
  %5372 = vmatpush1.msra.mxu0 %v1494
  %5373 = vmatprep.subr.mxu0 0.0
  %5374 = vmatpush1.msra.mxu0 %v1497
  %5375 = vmatprep.subr.mxu0 0.0
  %5376 = vmatpush1.msra.mxu0 %v1500
  %5377 = vmatprep.subr.mxu0 0.0
  %5378 = vmatpush1.msra.mxu0 %v1503
  %5379 = vmatprep.subr.mxu0 0.0
  %5380 = vmatpush1.msra.mxu0 %v1506
  %5381 = vmatprep.subr.mxu0 0.0
  %5382 = vmatpush1.msra.mxu0 %v1509
  %5383 = vmatprep.subr.mxu0 0.0
  %5384 = vmatpush1.msra.mxu0 %v1512
  %5385 = vmatprep.subr.mxu0 0.0
  %5386 = vmatpush1.msra.mxu0 %v1515
  %5387 = vmatprep.subr.mxu0 0.0
  %5388 = vmatpush1.msra.mxu0 0.0
  %5389 = vmatprep.subr.mxu0 0.0
  %5390 = vmatpush1.msra.mxu0 0.0
  %5391 = vmatprep.subr.mxu0 0.0
  %5392 = vmatpush1.msra.mxu0 0.0
  %5393 = vmatprep.subr.mxu0 0.0
  %5394 = vmatpush1.msra.mxu0 0.0
  %5395 = vmatprep.subr.mxu0 0.0
  %5396 = vmatpush1.msra.mxu0 0.0
  %5397 = vmatprep.subr.mxu0 0.0
  %5398 = vmatpush1.msra.mxu0 0.0
  %5399 = vmatprep.subr.mxu0 0.0
  %5400 = vmatpush1.msra.mxu0 0.0
  %5401 = vmatprep.subr.mxu0 0.0
  %5402 = vmatpush1.msra.mxu0 0.0
  %5403 = vmatprep.subr.mxu0 0.0
  %5404 = vmatpush1.msra.mxu0 0.0
  %5405 = vmatprep.subr.mxu0 0.0
  %5406 = vmatpush1.msra.mxu0 0.0
  %5407 = vmatprep.subr.mxu0 0.0
  %5408 = vmatpush1.msra.mxu0 0.0
  %5409 = vmatprep.subr.mxu0 0.0
  %5410 = vmatpush1.msra.mxu0 0.0
  %5411 = vmatprep.subr.mxu0 0.0
  %5412 = vmatpush1.msra.mxu0 0.0
  %5413 = vmatprep.subr.mxu0 0.0
  %5414 = vmatpush1.msra.mxu0 0.0
  %5415 = vmatprep.subr.mxu0 0.0
  %5416 = vmatpush1.msra.mxu0 0.0
  %5417 = vmatprep.subr.mxu0 0.0
  %5418 = vmatpush1.msra.mxu0 0.0
  %5419 = vmatprep.mubr.f32.mxu0 0.0
  %5420 = vmatmul.mubr.f32.gmra.mrb[0].mxu0 %v5271
  %v5421 = vpop.f32.mrb[0].mxu0
  %v5422 = vadd.f32 %v5283, %v5421
  %v5423 = vpop.f32.mrb[0].mxu0
  %5424 = vdwg.mxu0
  %v5428 = vcombine.low %v5351, %v5353
  %v5430 = vunpack.c.l.s4 1983009808
  %v5431 = vunpack.c.0.s8 %v5430
  %v5432 = vlaneseq
  %v5433 = vshrl.u32 %v5432, 7
  %v5434 = vsub.s32 %v5431, %v5433
  %v5435 = vrot.slane %v5428, %v5434
  %v5437 = vunpack.c.l.s4 1983009808
  %v5438 = vunpack.c.0.s8 %v5437
  %v5439 = vlaneseq
  %v5440 = vshrl.u32 %v5439, 7
  %v5441 = vsub.s32 %v5438, %v5440
  %v5442 = vrot.slane %v5422, %v5441
  %v5443 = vcombine.low %v5435, %v5442
  %5445 = vst [vmem:[%s6] sm:$0x3f] %v5443
  // Predicated region
  $region26: #{forward.1} parent=0 // pred_check
    _
  $region27: #{forward.1} parent=0 // pred_check_branch
    %5447 = sbr.rel (0) target = $region29
  $region28: #{forward.1} parent=0 // pred_region
    _
  $region29: #{forward.1} parent=0 // pred_fallthru
    _
  // Predicated region
  $region30: #{forward.1} parent=0 // pred_check
    _
  $region31: #{forward.1} parent=0 // pred_check_branch
    %5449 = sbr.rel (0) target = $region33
  $region32: #{forward.1} parent=0 // pred_region
    _
  $region33: #{forward.1} parent=0 // pred_fallthru
    _

</llo_original>
